<compile_context>
chip_gen: v7x
topology: tpu7x:2x2x1
jax: 0.10.0
libtpu: 0.0.40
codegen_flags: <defaults>
</compile_context>

<pallas_src>
import functools

import jax
import jax.numpy as jnp
from jax import lax
from jax.experimental import pallas as pl
from jax.experimental.pallas import tpu as pltpu
import numpy as np


def bottleneck_kernel(x_ref, w1_ref, w2_ref, w3_ref,
                      s1_ref, b1_ref, s2_ref, b2_ref, s3_ref, b3_ref,
                      o_ref, yp_ref, *, nr):
    """Fused Bottleneck block for one (image, row-tile) grid step (NHWC).

    yp_ref is an im2col scratch (TH+2, W, 3P) in the compute dtype: scratch
    row s holds conv1-output row (row0 + s - 1); lane group dx holds that row
    shifted by (dx - 1) columns with zero padding baked in.
    """
    TH = o_ref.shape[1]
    W = x_ref.shape[2]
    Cin = x_ref.shape[3]
    P = w1_ref.shape[1]
    cd = w1_ref.dtype                       # matmul compute dtype (bf16 or f32)

    r = pl.program_id(1)
    row0 = r * TH

    w1 = w1_ref[...]
    s1 = s1_ref[...]
    b1 = b1_ref[...]

    def conv1_to_scratch(x_row0, s_row0, nrows):
        # 1x1 conv == (rows*W, Cin) @ (Cin, P) matmul; BN folded to scale/bias.
        xs = x_ref[0, pl.ds(x_row0, nrows), :, :].astype(cd).reshape(nrows * W, Cin)
        y = jnp.dot(xs, w1, preferred_element_type=jnp.float32)
        y = jnp.maximum(y * s1 + b1, 0.0).astype(cd).reshape(nrows, W, P)
        zc = jnp.zeros((nrows, 1, P), cd)
        rs = slice(s_row0, s_row0 + nrows)
        # dx = 0 tap: columns shifted right; zero left-pad column baked in.
        yp_ref[rs, :, 0:P] = jnp.concatenate([zc, y[:, :W - 1, :]], axis=1)
        # dx = 1 tap: unshifted.
        yp_ref[rs, :, P:2 * P] = y
        # dx = 2 tap: columns shifted left; zero right-pad column baked in.
        yp_ref[rs, :, 2 * P:3 * P] = jnp.concatenate([y[:, 1:, :], zc], axis=1)

    zrow = jnp.zeros((1, W, 3 * P), cd)

    # ---- conv1 (1x1) + bn1 + relu, including the conv2 halo rows ----------
    if nr == 1:                              # whole image in one tile
        yp_ref[0:1, :, :] = zrow
        yp_ref[TH + 1:TH + 2, :, :] = zrow
        conv1_to_scratch(0, 1, TH)
    else:
        @pl.when(r == 0)
        def _():                             # top image edge
            yp_ref[0:1, :, :] = zrow
            conv1_to_scratch(row0, 1, TH + 1)

        @pl.when(r == nr - 1)
        def _():                             # bottom image edge
            conv1_to_scratch(row0 - 1, 0, TH + 1)
            yp_ref[TH + 1:TH + 2, :, :] = zrow

        if nr > 2:
            @pl.when(jnp.logical_and(r > 0, r < nr - 1))
            def _():                         # interior tile: halos folded in
                conv1_to_scratch(row0 - 1, 0, TH + 2)

    # ---- conv2 (3x3, stride 1, pad 1) + bn2 + relu -------------------------
    # Each dy tap: major-axis slice of the im2col scratch, contiguous reshape,
    # one K = 3P matmul.  Uninterrupted accumulate chain (MRB-friendly).
    acc = jnp.dot(yp_ref[0:TH, :, :].reshape(TH * W, 3 * P), w2_ref[0],
                  preferred_element_type=jnp.float32)
    acc = acc + jnp.dot(yp_ref[1:TH + 1, :, :].reshape(TH * W, 3 * P), w2_ref[1],
                        preferred_element_type=jnp.float32)
    acc = acc + jnp.dot(yp_ref[2:TH + 2, :, :].reshape(TH * W, 3 * P), w2_ref[2],
                        preferred_element_type=jnp.float32)
    y2 = jnp.maximum(acc * s2_ref[...] + b2_ref[...], 0.0)       # (TH*W, P) f32

    # ---- conv3 (1x1) + bn3 + identity residual + relu ----------------------
    y3 = jnp.dot(y2.astype(cd), w3_ref[...], preferred_element_type=jnp.float32)
    y3 = y3 * s3_ref[...] + b3_ref[...]                          # (TH*W, Cin)
    residual = x_ref[0, pl.ds(row0, TH), :, :].reshape(TH * W, Cin)
    out = jnp.maximum(y3 + residual.astype(jnp.float32), 0.0)
    o_ref[...] = out.reshape(1, TH, W, Cin).astype(o_ref.dtype)


def fold_bn(gamma, beta, mean, var, eps=1e-5):
    scale = gamma / jnp.sqrt(var + eps)
    bias = beta - mean * scale
    return scale.reshape(1, -1), bias.reshape(1, -1)


def _pick_row_tile(h, w, row_tile=None):
    if row_tile is None:
        # Whole image for small feature maps; otherwise aim for ~512 matmul rows.
        row_tile = h if h * w <= 4096 else max(8, -(-512 // w))
    th = max(1, min(int(row_tile), h))
    while h % th:
        th -= 1
    return th


@functools.partial(jax.jit, static_argnames=("compute_dtype", "row_tile"))
def bottleneck_forward(x, params, compute_dtype=jnp.bfloat16, row_tile=None):
    """x: (N, H, W, Cin) float32 NHWC, with Cin == 4 * planes (identity residual)."""
    N, H, W, Cin = x.shape
    P = params['w1'].shape[1]
    C4 = params['w3'].shape[1]
    assert Cin == C4, "identity residual requires inplanes == 4 * planes"

    TH = _pick_row_tile(H, W, row_tile)
    nr = H // TH
    cd = compute_dtype
    cd_size = jnp.dtype(cd).itemsize

    w1 = params['w1'].astype(cd)                        # (Cin, P)
    w2 = params['w2'].reshape(3, 3 * P, P).astype(cd)   # (3, 3P, P), K = dx*P+cin
    w3 = params['w3'].astype(cd)                        # (P, 4P)

    s1, b1 = fold_bn(params['bn1_g'], params['bn1_b'],
                     params['bn1_m'], params['bn1_v'])
    s2, b2 = fold_bn(params['bn2_g'], params['bn2_b'],
                     params['bn2_m'], params['bn2_v'])
    s3, b3 = fold_bn(params['bn3_g'], params['bn3_b'],
                     params['bn3_m'], params['bn3_v'])

    flops = 2 * N * H * W * (Cin * P + 9 * P * P + P * C4)
    bytes_accessed = int(
        N * H * W * Cin * jnp.dtype(x.dtype).itemsize * 2       # x read + out write
        + (w1.size + w2.size + w3.size) * cd_size                # weights
        + 2 * (2 * P + C4) * 2 * 4)                              # folded BN scale/bias

    # VMEM budget from the actual footprint (double-buffered blocks + scratch)
    # plus headroom for Mosaic temporaries.
    block_bytes = ((H * W * Cin + TH * W * Cin) * jnp.dtype(x.dtype).itemsize
                   + (w1.size + w2.size + w3.size) * cd_size
                   + 2 * (2 * P + C4) * 4)
    scratch_bytes = (TH + 2) * W * 3 * P * cd_size
    vmem_limit = int(min(112 * 2 ** 20,
                         2 * block_bytes + scratch_bytes + 24 * 2 ** 20))

    kernel = functools.partial(bottleneck_kernel, nr=nr)
    out = pl.pallas_call(
        kernel,
        out_shape=jax.ShapeDtypeStruct((N, H, W, Cin), x.dtype),
        grid_spec=pltpu.PrefetchScalarGridSpec(
            num_scalar_prefetch=0,
            grid=(N, nr),
            in_specs=[
                # whole image resident; index only depends on n -> fetched once
                pl.BlockSpec((1, H, W, Cin), lambda n, r: (n, 0, 0, 0)),
                pl.BlockSpec((Cin, P), lambda n, r: (0, 0)),
                pl.BlockSpec((3, 3 * P, P), lambda n, r: (0, 0, 0)),
                pl.BlockSpec((P, C4), lambda n, r: (0, 0)),
                pl.BlockSpec((1, P), lambda n, r: (0, 0)),
                pl.BlockSpec((1, P), lambda n, r: (0, 0)),
                pl.BlockSpec((1, P), lambda n, r: (0, 0)),
                pl.BlockSpec((1, P), lambda n, r: (0, 0)),
                pl.BlockSpec((1, C4), lambda n, r: (0, 0)),
                pl.BlockSpec((1, C4), lambda n, r: (0, 0)),
            ],
            out_specs=pl.BlockSpec((1, TH, W, Cin), lambda n, r: (n, r, 0, 0)),
            scratch_shapes=[pltpu.VMEM((TH + 2, W, 3 * P), cd)],
        ),
        compiler_params=pltpu.CompilerParams(
            dimension_semantics=("parallel", "arbitrary"),
            vmem_limit_bytes=vmem_limit),
        cost_estimate=pl.CostEstimate(flops=flops, transcendentals=0,
                                      bytes_accessed=bytes_accessed),
    )(x, w1, w2, w3, s1, b1, s2, b2, s3, b3)
    return out


def bottleneck_forward_nchw(x_nchw, params, **kw):
    # Convenience adapter for PyTorch's NCHW layout. Prefer the NHWC entry
    # point: each transpose here is a full HBM round trip of the activations.
    x = jnp.transpose(x_nchw, (0, 2, 3, 1))
    y = bottleneck_forward(x, params, **kw)
    return jnp.transpose(y, (0, 3, 1, 2))


# ---------------------------------------------------------------------------
# Pure-JAX NHWC reference (same math, same matmul operand dtype) for checking.
# ---------------------------------------------------------------------------
def ref_forward(x, params, compute_dtype, eps=1e-5):
    dn = ('NHWC', 'HWIO', 'NHWC')
    cd = compute_dtype

    def bn(y, g, b, m, v):
        return (y - m) / jnp.sqrt(v + eps) * g + b

    w1 = params['w1'].astype(cd)[None, None]            # (1,1,Cin,P)
    w2 = params['w2'].astype(cd)                        # (3,3,P,P)
    w3 = params['w3'].astype(cd)[None, None]            # (1,1,P,4P)

    y = lax.conv_general_dilated(x.astype(cd), w1, (1, 1), 'VALID',
                                 dimension_numbers=dn,
                                 preferred_element_type=jnp.float32)
    y = jax.nn.relu(bn(y, params['bn1_g'], params['bn1_b'],
                       params['bn1_m'], params['bn1_v']))
    y = lax.conv_general_dilated(y.astype(cd), w2, (1, 1),
                                 ((1, 1), (1, 1)), dimension_numbers=dn,
                                 preferred_element_type=jnp.float32)
    y = jax.nn.relu(bn(y, params['bn2_g'], params['bn2_b'],
                       params['bn2_m'], params['bn2_v']))
    y = lax.conv_general_dilated(y.astype(cd), w3, (1, 1), 'VALID',
                                 dimension_numbers=dn,
                                 preferred_element_type=jnp.float32)
    y = bn(y, params['bn3_g'], params['bn3_b'],
           params['bn3_m'], params['bn3_v'])
    return jax.nn.relu(y + x)


def make_params(key, inplanes, planes):
    ks = jax.random.split(key, 12)
    C4 = planes * 4
    # PyTorch conv weights are (Cout, Cin, kH, kW); store in kernel-friendly
    # layouts: 1x1 -> (Cin, Cout), 3x3 -> (kH, kW, Cin, Cout) (HWIO).
    w1_pt = jax.random.normal(ks[0], (planes, inplanes, 1, 1), jnp.float32) * 0.1
    w2_pt = jax.random.normal(ks[1], (planes, planes, 3, 3), jnp.float32) * 0.1
    w3_pt = jax.random.normal(ks[2], (C4, planes, 1, 1), jnp.float32) * 0.1
    return {
        'w1': jnp.transpose(w1_pt[:, :, 0, 0], (1, 0)),
        'w2': jnp.transpose(w2_pt, (2, 3, 1, 0)),
        'w3': jnp.transpose(w3_pt[:, :, 0, 0], (1, 0)),
        'bn1_g': 1.0 + 0.1 * jax.random.normal(ks[3], (planes,), jnp.float32),
        'bn1_b': 0.1 * jax.random.normal(ks[4], (planes,), jnp.float32),
        'bn1_m': 0.1 * jax.random.normal(ks[5], (planes,), jnp.float32),
        'bn1_v': jax.random.uniform(ks[6], (planes,), jnp.float32, 0.5, 1.5),
        'bn2_g': 1.0 + 0.1 * jax.random.normal(ks[7], (planes,), jnp.float32),
        'bn2_b': 0.1 * jax.random.normal(ks[8], (planes,), jnp.float32),
        'bn2_m': jnp.zeros((planes,), jnp.float32),
        'bn2_v': jnp.ones((planes,), jnp.float32),
        'bn3_g': 1.0 + 0.1 * jax.random.normal(ks[9], (C4,), jnp.float32),
        'bn3_b': 0.1 * jax.random.normal(ks[10], (C4,), jnp.float32),
        'bn3_m': 0.1 * jax.random.normal(ks[11], (C4,), jnp.float32),
        'bn3_v': jnp.ones((C4,), jnp.float32),
    }


if __name__ == "__main__":
    # Small shapes: batch=2, inplanes=16, planes=4 (so planes*4 == inplanes and
    # the identity residual is valid), spatial 16x16, stride=1.
    N, inplanes, planes, H, W = 2, 16, 4, 16, 16

    key = jax.random.PRNGKey(0)
    kx, kp = jax.random.split(key)
    x = jax.random.normal(kx, (N, H, W, inplanes), jnp.float32)   # NHWC input
    params = make_params(kp, inplanes, planes)

    # f32 matmul path: tight check against the reference.  Sweep the row tile
    # to exercise the single-tile (nr=1), edge-only (nr=2) and interior (nr=4)
    # kernel branches.
    ref_f32 = jax.block_until_ready(ref_forward(x, params, jnp.float32))
    for rt in (16, 8, 4):
        out_f32 = jax.block_until_ready(
            bottleneck_forward(x, params, compute_dtype=jnp.float32, row_tile=rt))
        np.testing.assert_allclose(np.asarray(out_f32), np.asarray(ref_f32),
                                   rtol=2e-4, atol=2e-4)

    # Default bf16 matmul path: compare against a bf16-operand reference.
    out_bf16 = jax.block_until_ready(bottleneck_forward(x, params))
    ref_bf16 = jax.block_until_ready(ref_forward(x, params, jnp.bfloat16))
    np.testing.assert_allclose(np.asarray(out_bf16), np.asarray(ref_bf16),
                               rtol=2e-2, atol=2e-2)

    assert out_bf16.shape == (N, H, W, inplanes)
    print("KERNEL_OK")
</pallas_src>

<mosaic_0001>
module attributes {stable_mosaic.version = 11 : i64} {
  func.func @bottleneck_kernel(%arg0: i32, %arg1: i32, %arg2: memref<1x16x16x16xf32, #tpu.memory_space<vmem>>, %arg3: memref<16x4xf32, #tpu.memory_space<vmem>>, %arg4: memref<3x12x4xf32, #tpu.memory_space<vmem>>, %arg5: memref<4x16xf32, #tpu.memory_space<vmem>>, %arg6: memref<1x4xf32, #tpu.memory_space<vmem>>, %arg7: memref<1x4xf32, #tpu.memory_space<vmem>>, %arg8: memref<1x4xf32, #tpu.memory_space<vmem>>, %arg9: memref<1x4xf32, #tpu.memory_space<vmem>>, %arg10: memref<1x16xf32, #tpu.memory_space<vmem>>, %arg11: memref<1x16xf32, #tpu.memory_space<vmem>>, %arg12: memref<1x16x16x16xf32, #tpu.memory_space<vmem>>, %arg13: memref<18x16x12xf32, #tpu.memory_space<vmem>>) attributes {dimension_semantics = [#tpu.dimension_semantics<parallel>, #tpu.dimension_semantics<arbitrary>], iteration_bounds = array<i64: 2, 1>, scalar_prefetch = 0 : i64, scratch_operands = 1 : i64, tpu.core_type = #tpu.core_type<tc>, window_params = [{transform_indices = @transform_0, window_bounds = array<i64: 1, 16, 16, 16>}, {pipeline_mode = #tpu.pipeline_mode<synchronous>, transform_indices = @transform_1, window_bounds = array<i64: 16, 4>}, {pipeline_mode = #tpu.pipeline_mode<synchronous>, transform_indices = @transform_2, window_bounds = array<i64: 3, 12, 4>}, {pipeline_mode = #tpu.pipeline_mode<synchronous>, transform_indices = @transform_3, window_bounds = array<i64: 4, 16>}, {pipeline_mode = #tpu.pipeline_mode<synchronous>, transform_indices = @transform_4, window_bounds = array<i64: 1, 4>}, {pipeline_mode = #tpu.pipeline_mode<synchronous>, transform_indices = @transform_5, window_bounds = array<i64: 1, 4>}, {pipeline_mode = #tpu.pipeline_mode<synchronous>, transform_indices = @transform_6, window_bounds = array<i64: 1, 4>}, {pipeline_mode = #tpu.pipeline_mode<synchronous>, transform_indices = @transform_7, window_bounds = array<i64: 1, 4>}, {pipeline_mode = #tpu.pipeline_mode<synchronous>, transform_indices = @transform_8, window_bounds = array<i64: 1, 16>}, {pipeline_mode = #tpu.pipeline_mode<synchronous>, transform_indices = @transform_9, window_bounds = array<i64: 1, 16>}, {transform_indices = @transform_10, window_bounds = array<i64: 1, 16, 16, 16>}]} {
    %c16_i32 = arith.constant 16 : i32
    %0 = arith.muli %arg1, %c16_i32 : i32
    %c0 = arith.constant 0 : index
    %c0_0 = arith.constant 0 : index
    %1 = vector.load %arg3[%c0, %c0_0] : memref<16x4xf32, #tpu.memory_space<vmem>>, vector<16x4xf32>
    %c0_1 = arith.constant 0 : index
    %c0_2 = arith.constant 0 : index
    %2 = vector.load %arg6[%c0_1, %c0_2] : memref<1x4xf32, #tpu.memory_space<vmem>>, vector<1x4xf32>
    %c0_3 = arith.constant 0 : index
    %c0_4 = arith.constant 0 : index
    %3 = vector.load %arg7[%c0_3, %c0_4] : memref<1x4xf32, #tpu.memory_space<vmem>>, vector<1x4xf32>
    %cst = arith.constant 0.000000e+00 : f32
    %4 = vector.broadcast %cst : f32 to vector<1x16x12xf32>
    %c0_5 = arith.constant 0 : index
    %c0_6 = arith.constant 0 : index
    %c0_7 = arith.constant 0 : index
    %5 = vector.load %arg13[%c0_5, %c0_6, %c0_7] : memref<18x16x12xf32, #tpu.memory_space<vmem>>, vector<1x16x12xf32>
    tpu.vector_store %arg13[%c0_5, %c0_6, %c0_7], %4 {strides = array<i32>} : memref<18x16x12xf32, #tpu.memory_space<vmem>>, vector<1x16x12xf32>,
    %c17 = arith.constant 17 : index
    %c0_8 = arith.constant 0 : index
    %c0_9 = arith.constant 0 : index
    %6 = vector.load %arg13[%c17, %c0_8, %c0_9] : memref<18x16x12xf32, #tpu.memory_space<vmem>>, vector<1x16x12xf32>
    tpu.vector_store %arg13[%c17, %c0_8, %c0_9], %4 {strides = array<i32>} : memref<18x16x12xf32, #tpu.memory_space<vmem>>, vector<1x16x12xf32>,
    %c0_10 = arith.constant 0 : index
    %c0_11 = arith.constant 0 : index
    %c0_12 = arith.constant 0 : index
    %c0_13 = arith.constant 0 : index
    %7 = vector.load %arg2[%c0_10, %c0_11, %c0_12, %c0_13] : memref<1x16x16x16xf32, #tpu.memory_space<vmem>>, vector<1x16x16x16xf32>
    %8 = vector.shape_cast %7 : vector<1x16x16x16xf32> to vector<16x16x16xf32>
    %9 = vector.shape_cast %8 : vector<16x16x16xf32> to vector<256x16xf32>
    %cst_14 = arith.constant dense<0.000000e+00> : vector<256x4xf32>
    %10 = tpu.matmul %9, %1, %cst_14 {dimension_numbers = #tpu.dot_dimension_numbers<[1], [0], [0], [1], [0, 0, 1, 1], [], []>} : vector<256x16xf32>, vector<16x4xf32>, vector<256x4xf32> -> vector<256x4xf32>
    %11 = vector.broadcast %2 : vector<1x4xf32> to vector<256x4xf32>
    %12 = arith.mulf %10, %11 : vector<256x4xf32>
    %13 = vector.broadcast %3 : vector<1x4xf32> to vector<256x4xf32>
    %14 = arith.addf %12, %13 : vector<256x4xf32>
    %cst_15 = arith.constant 0.000000e+00 : f32
    %15 = vector.broadcast %cst_15 : f32 to vector<256x4xf32>
    %16 = arith.maximumf %14, %15 : vector<256x4xf32>
    %17 = vector.shape_cast %16 : vector<256x4xf32> to vector<16x16x4xf32>
    %cst_16 = arith.constant 0.000000e+00 : f32
    %18 = vector.broadcast %cst_16 : f32 to vector<16x1x4xf32>
    %19 = vector.extract_strided_slice %17 {offsets = [0, 0, 0], sizes = [16, 15, 4], strides = [1, 1, 1]} : vector<16x16x4xf32> to vector<16x15x4xf32>
    %20 = tpu.concatenate %18, %19 in 1 : vector<16x1x4xf32>, vector<16x15x4xf32> -> vector<16x16x4xf32>
    %c1 = arith.constant 1 : index
    %c0_17 = arith.constant 0 : index
    %c0_18 = arith.constant 0 : index
    %21 = vector.load %arg13[%c1, %c0_17, %c0_18] : memref<18x16x12xf32, #tpu.memory_space<vmem>>, vector<16x16x4xf32>
    tpu.vector_store %arg13[%c1, %c0_17, %c0_18], %20 {strides = array<i32>} : memref<18x16x12xf32, #tpu.memory_space<vmem>>, vector<16x16x4xf32>,
    %c1_19 = arith.constant 1 : index
    %c0_20 = arith.constant 0 : index
    %c4 = arith.constant 4 : index
    %22 = vector.load %arg13[%c1_19, %c0_20, %c4] : memref<18x16x12xf32, #tpu.memory_space<vmem>>, vector<16x16x4xf32>
    tpu.vector_store %arg13[%c1_19, %c0_20, %c4], %17 {strides = array<i32>} : memref<18x16x12xf32, #tpu.memory_space<vmem>>, vector<16x16x4xf32>,
    %23 = vector.extract_strided_slice %17 {offsets = [0, 1, 0], sizes = [16, 15, 4], strides = [1, 1, 1]} : vector<16x16x4xf32> to vector<16x15x4xf32>
    %24 = tpu.concatenate %23, %18 in 1 : vector<16x15x4xf32>, vector<16x1x4xf32> -> vector<16x16x4xf32>
    %c1_21 = arith.constant 1 : index
    %c0_22 = arith.constant 0 : index
    %c8 = arith.constant 8 : index
    %25 = vector.load %arg13[%c1_21, %c0_22, %c8] : memref<18x16x12xf32, #tpu.memory_space<vmem>>, vector<16x16x4xf32>
    tpu.vector_store %arg13[%c1_21, %c0_22, %c8], %24 {strides = array<i32>} : memref<18x16x12xf32, #tpu.memory_space<vmem>>, vector<16x16x4xf32>,
    %c0_23 = arith.constant 0 : index
    %c0_24 = arith.constant 0 : index
    %c0_25 = arith.constant 0 : index
    %26 = vector.load %arg13[%c0_23, %c0_24, %c0_25] : memref<18x16x12xf32, #tpu.memory_space<vmem>>, vector<16x16x12xf32>
    %27 = vector.shape_cast %26 : vector<16x16x12xf32> to vector<256x12xf32>
    %c0_26 = arith.constant 0 : index
    %c0_27 = arith.constant 0 : index
    %c0_28 = arith.constant 0 : index
    %28 = vector.load %arg4[%c0_26, %c0_27, %c0_28] : memref<3x12x4xf32, #tpu.memory_space<vmem>>, vector<1x12x4xf32>
    %29 = vector.shape_cast %28 : vector<1x12x4xf32> to vector<12x4xf32>
    %cst_29 = arith.constant dense<0.000000e+00> : vector<256x4xf32>
    %30 = tpu.matmul %27, %29, %cst_29 {dimension_numbers = #tpu.dot_dimension_numbers<[1], [0], [0], [1], [0, 0, 1, 1], [], []>} : vector<256x12xf32>, vector<12x4xf32>, vector<256x4xf32> -> vector<256x4xf32>
    %c1_30 = arith.constant 1 : index
    %c0_31 = arith.constant 0 : index
    %c0_32 = arith.constant 0 : index
    %31 = vector.load %arg13[%c1_30, %c0_31, %c0_32] : memref<18x16x12xf32, #tpu.memory_space<vmem>>, vector<16x16x12xf32>
    %32 = vector.shape_cast %31 : vector<16x16x12xf32> to vector<256x12xf32>
    %c1_33 = arith.constant 1 : index
    %c0_34 = arith.constant 0 : index
    %c0_35 = arith.constant 0 : index
    %33 = vector.load %arg4[%c1_33, %c0_34, %c0_35] : memref<3x12x4xf32, #tpu.memory_space<vmem>>, vector<1x12x4xf32>
    %34 = vector.shape_cast %33 : vector<1x12x4xf32> to vector<12x4xf32>
    %cst_36 = arith.constant dense<0.000000e+00> : vector<256x4xf32>
    %35 = tpu.matmul %32, %34, %cst_36 {dimension_numbers = #tpu.dot_dimension_numbers<[1], [0], [0], [1], [0, 0, 1, 1], [], []>} : vector<256x12xf32>, vector<12x4xf32>, vector<256x4xf32> -> vector<256x4xf32>
    %36 = arith.addf %30, %35 : vector<256x4xf32>
    %c2 = arith.constant 2 : index
    %c0_37 = arith.constant 0 : index
    %c0_38 = arith.constant 0 : index
    %37 = vector.load %arg13[%c2, %c0_37, %c0_38] : memref<18x16x12xf32, #tpu.memory_space<vmem>>, vector<16x16x12xf32>
    %38 = vector.shape_cast %37 : vector<16x16x12xf32> to vector<256x12xf32>
    %c2_39 = arith.constant 2 : index
    %c0_40 = arith.constant 0 : index
    %c0_41 = arith.constant 0 : index
    %39 = vector.load %arg4[%c2_39, %c0_40, %c0_41] : memref<3x12x4xf32, #tpu.memory_space<vmem>>, vector<1x12x4xf32>
    %40 = vector.shape_cast %39 : vector<1x12x4xf32> to vector<12x4xf32>
    %cst_42 = arith.constant dense<0.000000e+00> : vector<256x4xf32>
    %41 = tpu.matmul %38, %40, %cst_42 {dimension_numbers = #tpu.dot_dimension_numbers<[1], [0], [0], [1], [0, 0, 1, 1], [], []>} : vector<256x12xf32>, vector<12x4xf32>, vector<256x4xf32> -> vector<256x4xf32>
    %42 = arith.addf %36, %41 : vector<256x4xf32>
    %c0_43 = arith.constant 0 : index
    %c0_44 = arith.constant 0 : index
    %43 = vector.load %arg8[%c0_43, %c0_44] : memref<1x4xf32, #tpu.memory_space<vmem>>, vector<1x4xf32>
    %44 = vector.broadcast %43 : vector<1x4xf32> to vector<256x4xf32>
    %45 = arith.mulf %42, %44 : vector<256x4xf32>
    %c0_45 = arith.constant 0 : index
    %c0_46 = arith.constant 0 : index
    %46 = vector.load %arg9[%c0_45, %c0_46] : memref<1x4xf32, #tpu.memory_space<vmem>>, vector<1x4xf32>
    %47 = vector.broadcast %46 : vector<1x4xf32> to vector<256x4xf32>
    %48 = arith.addf %45, %47 : vector<256x4xf32>
    %cst_47 = arith.constant 0.000000e+00 : f32
    %49 = vector.broadcast %cst_47 : f32 to vector<256x4xf32>
    %50 = arith.maximumf %48, %49 : vector<256x4xf32>
    %c0_48 = arith.constant 0 : index
    %c0_49 = arith.constant 0 : index
    %51 = vector.load %arg5[%c0_48, %c0_49] : memref<4x16xf32, #tpu.memory_space<vmem>>, vector<4x16xf32>
    %cst_50 = arith.constant dense<0.000000e+00> : vector<256x16xf32>
    %52 = tpu.matmul %50, %51, %cst_50 {dimension_numbers = #tpu.dot_dimension_numbers<[1], [0], [0], [1], [0, 0, 1, 1], [], []>} : vector<256x4xf32>, vector<4x16xf32>, vector<256x16xf32> -> vector<256x16xf32>
    %c0_51 = arith.constant 0 : index
    %c0_52 = arith.constant 0 : index
    %53 = vector.load %arg10[%c0_51, %c0_52] : memref<1x16xf32, #tpu.memory_space<vmem>>, vector<1x16xf32>
    %54 = vector.broadcast %53 : vector<1x16xf32> to vector<256x16xf32>
    %55 = arith.mulf %52, %54 : vector<256x16xf32>
    %c0_53 = arith.constant 0 : index
    %c0_54 = arith.constant 0 : index
    %56 = vector.load %arg11[%c0_53, %c0_54] : memref<1x16xf32, #tpu.memory_space<vmem>>, vector<1x16xf32>
    %57 = vector.broadcast %56 : vector<1x16xf32> to vector<256x16xf32>
    %58 = arith.addf %55, %57 : vector<256x16xf32>
    %c0_55 = arith.constant 0 : index
    %59 = arith.index_cast %0 : i32 to index
    %c0_56 = arith.constant 0 : index
    %c0_57 = arith.constant 0 : index
    %60 = vector.load %arg2[%c0_55, %59, %c0_56, %c0_57] : memref<1x16x16x16xf32, #tpu.memory_space<vmem>>, vector<1x16x16x16xf32>
    %61 = vector.shape_cast %60 : vector<1x16x16x16xf32> to vector<16x16x16xf32>
    %62 = vector.shape_cast %61 : vector<16x16x16xf32> to vector<256x16xf32>
    %63 = arith.addf %58, %62 : vector<256x16xf32>
    %cst_58 = arith.constant 0.000000e+00 : f32
    %64 = vector.broadcast %cst_58 : f32 to vector<256x16xf32>
    %65 = arith.maximumf %63, %64 : vector<256x16xf32>
    %66 = vector.shape_cast %65 : vector<256x16xf32> to vector<1x16x16x16xf32>
    %c0_59 = arith.constant 0 : index
    %c0_60 = arith.constant 0 : index
    %c0_61 = arith.constant 0 : index
    %c0_62 = arith.constant 0 : index
    %67 = vector.load %arg12[%c0_59, %c0_60, %c0_61, %c0_62] : memref<1x16x16x16xf32, #tpu.memory_space<vmem>>, vector<1x16x16x16xf32>
    tpu.vector_store %arg12[%c0_59, %c0_60, %c0_61, %c0_62], %66 {strides = array<i32>} : memref<1x16x16x16xf32, #tpu.memory_space<vmem>>, vector<1x16x16x16xf32>,
    return
  }
  func.func @transform_0(%arg0: i32, %arg1: i32) -> (i32, i32, i32, i32) {
    %c0_i32 = arith.constant 0 : i32
    %c0_i32_0 = arith.constant 0 : i32
    %c0_i32_1 = arith.constant 0 : i32
    %c0_i32_2 = arith.constant 0 : i32
    return %arg0, %c0_i32, %c0_i32_0, %c0_i32_1 : i32, i32, i32, i32
  }
  func.func @transform_1(%arg0: i32, %arg1: i32) -> (i32, i32) {
    %c0_i32 = arith.constant 0 : i32
    %c0_i32_0 = arith.constant 0 : i32
    %c0_i32_1 = arith.constant 0 : i32
    return %c0_i32, %c0_i32_0 : i32, i32
  }
  func.func @transform_2(%arg0: i32, %arg1: i32) -> (i32, i32, i32) {
    %c0_i32 = arith.constant 0 : i32
    %c0_i32_0 = arith.constant 0 : i32
    %c0_i32_1 = arith.constant 0 : i32
    %c0_i32_2 = arith.constant 0 : i32
    return %c0_i32, %c0_i32_0, %c0_i32_1 : i32, i32, i32
  }
  func.func @transform_3(%arg0: i32, %arg1: i32) -> (i32, i32) {
    %c0_i32 = arith.constant 0 : i32
    %c0_i32_0 = arith.constant 0 : i32
    %c0_i32_1 = arith.constant 0 : i32
    return %c0_i32, %c0_i32_0 : i32, i32
  }
  func.func @transform_4(%arg0: i32, %arg1: i32) -> (i32, i32) {
    %c0_i32 = arith.constant 0 : i32
    %c0_i32_0 = arith.constant 0 : i32
    %c0_i32_1 = arith.constant 0 : i32
    return %c0_i32, %c0_i32_0 : i32, i32
  }
  func.func @transform_5(%arg0: i32, %arg1: i32) -> (i32, i32) {
    %c0_i32 = arith.constant 0 : i32
    %c0_i32_0 = arith.constant 0 : i32
    %c0_i32_1 = arith.constant 0 : i32
    return %c0_i32, %c0_i32_0 : i32, i32
  }
  func.func @transform_6(%arg0: i32, %arg1: i32) -> (i32, i32) {
    %c0_i32 = arith.constant 0 : i32
    %c0_i32_0 = arith.constant 0 : i32
    %c0_i32_1 = arith.constant 0 : i32
    return %c0_i32, %c0_i32_0 : i32, i32
  }
  func.func @transform_7(%arg0: i32, %arg1: i32) -> (i32, i32) {
    %c0_i32 = arith.constant 0 : i32
    %c0_i32_0 = arith.constant 0 : i32
    %c0_i32_1 = arith.constant 0 : i32
    return %c0_i32, %c0_i32_0 : i32, i32
  }
  func.func @transform_8(%arg0: i32, %arg1: i32) -> (i32, i32) {
    %c0_i32 = arith.constant 0 : i32
    %c0_i32_0 = arith.constant 0 : i32
    %c0_i32_1 = arith.constant 0 : i32
    return %c0_i32, %c0_i32_0 : i32, i32
  }
  func.func @transform_9(%arg0: i32, %arg1: i32) -> (i32, i32) {
    %c0_i32 = arith.constant 0 : i32
    %c0_i32_0 = arith.constant 0 : i32
    %c0_i32_1 = arith.constant 0 : i32
    return %c0_i32, %c0_i32_0 : i32, i32
  }
  func.func @transform_10(%arg0: i32, %arg1: i32) -> (i32, i32, i32, i32) {
    %c0_i32 = arith.constant 0 : i32
    %c0_i32_0 = arith.constant 0 : i32
    %c0_i32_1 = arith.constant 0 : i32
    return %arg0, %arg1, %c0_i32, %c0_i32_0 : i32, i32, i32, i32
  }
}

</mosaic_0001>

<llo_original>
// kernel: bottleneck_forward.1
$region0: #{bottleneck_forward.1}
  #allocation0 [shape = 'u32[]', space=smem, size = 0x4, offset = 0x4, fixed_abs, tag = 'smem constant byte address 0x4 - core index']
  #allocation1 [shape = 'u32[144,128]{1,0:T(1,128)}', space=vmem, size = 0x12000, scoped, tag = 'internal scratch']
  #allocation2 [shape = 'f32[18,16,12]{2,1,0:T(8,128)}', space=vmem, size = 0x24000, scoped, tag = 'scratch operand']
  %s0 = inlined_call_operand.hbm [shape: f32[2,16,16,16], index: 0, kind: input, shape index: {}]
  %s1 = inlined_call_operand.vmem [shape: f32[16,4], index: 1, kind: input, shape index: {}]
  %s2 = inlined_call_operand.vmem [shape: f32[3,12,4], index: 2, kind: input, shape index: {}]
  %s3 = inlined_call_operand.vmem [shape: f32[4,16], index: 3, kind: input, shape index: {}]
  %s4 = inlined_call_operand.vmem [shape: f32[1,4], index: 4, kind: input, shape index: {}]
  %s5 = inlined_call_operand.vmem [shape: f32[1,4], index: 5, kind: input, shape index: {}]
  %s6 = inlined_call_operand.vmem [shape: f32[1,4], index: 6, kind: input, shape index: {}]
  %s7 = inlined_call_operand.vmem [shape: f32[1,4], index: 7, kind: input, shape index: {}]
  %s8 = inlined_call_operand.vmem [shape: f32[1,16], index: 8, kind: input, shape index: {}]
  %s9 = inlined_call_operand.vmem [shape: f32[1,16], index: 9, kind: input, shape index: {}]
  %s10 = inlined_call_operand.hbm [shape: f32[2,16,16,16], index: 10, kind: output, shape index: {}]
  %s11 = sld [smem:[#allocation0]]
  $region77: #{bottleneck_forward.1} parent=0
    _
  %s13 = ssub.s32 1, %s11
  %s14 = scalar_select 0, %s13, %s11
  $region1: #{bottleneck_forward.1} parent=0
    #allocation3 [shape = 'u8[262144]{0}', space=vmem, size = 0x40000, scoped, tag = 'input window, operand 0']
    #allocation4 [shape = 's32[2]{0}', space=sflag, size = 0x8, scoped, tag = 'scoped memory for bottleneck_forward.1']
    #allocation5 [shape = 's32[2]{0}', space=sflag, size = 0x8, scoped, tag = 'scoped memory for bottleneck_forward.1']
    #allocation6 [shape = 'u8[262144]{0}', space=vmem, size = 0x40000, scoped, tag = 'output window, operand 0']
    %15 = vsyncpa [#allocation4], 0
    %s16 = scalar_lea.sflag [#allocation4], 1
    %17 = vsyncpa %s16, 0
    %18 = vsyncpa [#allocation5], 0
    %s19 = scalar_lea.sflag [#allocation5], 1
    %20 = vsyncpa %s19, 0
    loop: start=0, step=1, limit=4
    $region2: #{bottleneck_forward.1} parent=1 // loop_pre_header
      _
    $region3: #{bottleneck_forward.1} parent=1 // loop_header
      %s22 = sphi 0, %s26
      %p23 = scmp.ge.s32.totalorder %s22, 4
      %s29 = sphi 0, %s41
      %s30 = sphi 0, %s37
      %s31 = sphi 0, %s29
      %s32 = sphi 0, %s30
      %s33 = sphi 0, %s31
      %s34 = sphi 0, %s32
      %s44 = sphi 0, %s46
      %s47 = sphi 0, %s44
      %s48 = sphi 0, %s47
      %s64 = sphi 0, %s48
      %s68 = sphi 0, %s68
      %s70 = sphi 0, %s68
      %s71 = sphi 0, %s70
      %s85 = sphi 0, %s71
      %s89 = sphi 0, %s89
      %s91 = sphi 0, %s89
      %s92 = sphi 0, %s91
      %s106 = sphi 0, %s92
      %s110 = sphi 0, %s110
      %s112 = sphi 0, %s110
      %s113 = sphi 0, %s112
      %s127 = sphi 0, %s113
      %s131 = sphi 0, %s131
      %s133 = sphi 0, %s131
      %s134 = sphi 0, %s133
      %s148 = sphi 0, %s134
      %s152 = sphi 0, %s152
      %s154 = sphi 0, %s152
      %s155 = sphi 0, %s154
      %s169 = sphi 0, %s155
      %s173 = sphi 0, %s173
      %s175 = sphi 0, %s173
      %s176 = sphi 0, %s175
      %s190 = sphi 0, %s176
      %s194 = sphi 0, %s194
      %s196 = sphi 0, %s194
      %s197 = sphi 0, %s196
      %s211 = sphi 0, %s197
      %s215 = sphi 0, %s215
      %s217 = sphi 0, %s215
      %s218 = sphi 0, %s217
      %s232 = sphi 0, %s218
      %s236 = sphi 0, %s236
      %s238 = sphi 0, %s236
      %s239 = sphi 0, %s238
      %s253 = sphi 0, %s239
      %s261 = sphi 0, %s263
      %s264 = sphi 0, %s261
      %s265 = sphi 0, %s264
      %s281 = sphi 0, %s265
    $region4: #{bottleneck_forward.1} parent=1 // loop_header_branch
      %25 = sbr.rel (%p23) target = $region8
    $region5: #{bottleneck_forward.1} parent=1 // loop_body
      %s27 = ssub.s32 %s22, 1
      %s28 = ssub.s32 %s22, 2
      %s35 = sadd.s32 1, %s30
      %p36 = scmp.ge.s32.totalorder %s35, 1
      %s37 = scalar_select %p36, 0, %s35
      %s38 = sadd.s32 1, %s29
      %s39 = scalar_select %p36, %s38, %s29
      %p40 = scmp.ge.s32.totalorder %s39, 2
      %s41 = scalar_select %p40, 0, %s39
      %s42 = ssub.s32 %s29, %s41
      %p43 = scmp.eq.s32.totalorder %s42, 0
      %s45 = sadd.s32 %s44, 1
      %s46 = scalar_select %p43, %s44, %s45
      %p49 = pneg %p43
      %p50 = scmp.eq.s32.totalorder %s22, 1
      %p51 = por %p49, %p50
      %p52 = scmp.ne.s32.totalorder %s44, %s47
      %p53 = scmp.eq.s32.totalorder %s22, 0
      %p54 = por %p52, %p53
      %p55 = scmp.ne.s32.totalorder %s44, %s47
      %p56 = scmp.eq.s32.totalorder %s27, 1
      %p57 = por %p55, %p56
      %p58 = scmp.ne.s32.totalorder %s47, %s48
      %p59 = scmp.eq.s32.totalorder %s27, 0
      %p60 = por %p58, %p59
      %p61 = scmp.ne.s32.totalorder %s47, %s48
      %p62 = scmp.eq.s32.totalorder %s28, 1
      %p63 = por %p61, %p62
      %p65 = scmp.ne.s32.totalorder %s48, %s64
      %p66 = scmp.eq.s32.totalorder %s28, 0
      %p67 = por %p65, %p66
      %s69 = sadd.s32 %s68, 1
      %p72 = scmp.eq.s32.totalorder %s22, 1
      %p73 = scmp.ne.s32.totalorder %s68, %s70
      %p74 = scmp.eq.s32.totalorder %s22, 0
      %p75 = por %p73, %p74
      %p76 = scmp.ne.s32.totalorder %s68, %s70
      %p77 = scmp.eq.s32.totalorder %s27, 1
      %p78 = por %p76, %p77
      %p79 = scmp.ne.s32.totalorder %s70, %s71
      %p80 = scmp.eq.s32.totalorder %s27, 0
      %p81 = por %p79, %p80
      %p82 = scmp.ne.s32.totalorder %s70, %s71
      %p83 = scmp.eq.s32.totalorder %s28, 1
      %p84 = por %p82, %p83
      %p86 = scmp.ne.s32.totalorder %s71, %s85
      %p87 = scmp.eq.s32.totalorder %s28, 0
      %p88 = por %p86, %p87
      %s90 = sadd.s32 %s89, 1
      %p93 = scmp.eq.s32.totalorder %s22, 1
      %p94 = scmp.ne.s32.totalorder %s89, %s91
      %p95 = scmp.eq.s32.totalorder %s22, 0
      %p96 = por %p94, %p95
      %p97 = scmp.ne.s32.totalorder %s89, %s91
      %p98 = scmp.eq.s32.totalorder %s27, 1
      %p99 = por %p97, %p98
      %p100 = scmp.ne.s32.totalorder %s91, %s92
      %p101 = scmp.eq.s32.totalorder %s27, 0
      %p102 = por %p100, %p101
      %p103 = scmp.ne.s32.totalorder %s91, %s92
      %p104 = scmp.eq.s32.totalorder %s28, 1
      %p105 = por %p103, %p104
      %p107 = scmp.ne.s32.totalorder %s92, %s106
      %p108 = scmp.eq.s32.totalorder %s28, 0
      %p109 = por %p107, %p108
      %s111 = sadd.s32 %s110, 1
      %p114 = scmp.eq.s32.totalorder %s22, 1
      %p115 = scmp.ne.s32.totalorder %s110, %s112
      %p116 = scmp.eq.s32.totalorder %s22, 0
      %p117 = por %p115, %p116
      %p118 = scmp.ne.s32.totalorder %s110, %s112
      %p119 = scmp.eq.s32.totalorder %s27, 1
      %p120 = por %p118, %p119
      %p121 = scmp.ne.s32.totalorder %s112, %s113
      %p122 = scmp.eq.s32.totalorder %s27, 0
      %p123 = por %p121, %p122
      %p124 = scmp.ne.s32.totalorder %s112, %s113
      %p125 = scmp.eq.s32.totalorder %s28, 1
      %p126 = por %p124, %p125
      %p128 = scmp.ne.s32.totalorder %s113, %s127
      %p129 = scmp.eq.s32.totalorder %s28, 0
      %p130 = por %p128, %p129
      %s132 = sadd.s32 %s131, 1
      %p135 = scmp.eq.s32.totalorder %s22, 1
      %p136 = scmp.ne.s32.totalorder %s131, %s133
      %p137 = scmp.eq.s32.totalorder %s22, 0
      %p138 = por %p136, %p137
      %p139 = scmp.ne.s32.totalorder %s131, %s133
      %p140 = scmp.eq.s32.totalorder %s27, 1
      %p141 = por %p139, %p140
      %p142 = scmp.ne.s32.totalorder %s133, %s134
      %p143 = scmp.eq.s32.totalorder %s27, 0
      %p144 = por %p142, %p143
      %p145 = scmp.ne.s32.totalorder %s133, %s134
      %p146 = scmp.eq.s32.totalorder %s28, 1
      %p147 = por %p145, %p146
      %p149 = scmp.ne.s32.totalorder %s134, %s148
      %p150 = scmp.eq.s32.totalorder %s28, 0
      %p151 = por %p149, %p150
      %s153 = sadd.s32 %s152, 1
      %p156 = scmp.eq.s32.totalorder %s22, 1
      %p157 = scmp.ne.s32.totalorder %s152, %s154
      %p158 = scmp.eq.s32.totalorder %s22, 0
      %p159 = por %p157, %p158
      %p160 = scmp.ne.s32.totalorder %s152, %s154
      %p161 = scmp.eq.s32.totalorder %s27, 1
      %p162 = por %p160, %p161
      %p163 = scmp.ne.s32.totalorder %s154, %s155
      %p164 = scmp.eq.s32.totalorder %s27, 0
      %p165 = por %p163, %p164
      %p166 = scmp.ne.s32.totalorder %s154, %s155
      %p167 = scmp.eq.s32.totalorder %s28, 1
      %p168 = por %p166, %p167
      %p170 = scmp.ne.s32.totalorder %s155, %s169
      %p171 = scmp.eq.s32.totalorder %s28, 0
      %p172 = por %p170, %p171
      %s174 = sadd.s32 %s173, 1
      %p177 = scmp.eq.s32.totalorder %s22, 1
      %p178 = scmp.ne.s32.totalorder %s173, %s175
      %p179 = scmp.eq.s32.totalorder %s22, 0
      %p180 = por %p178, %p179
      %p181 = scmp.ne.s32.totalorder %s173, %s175
      %p182 = scmp.eq.s32.totalorder %s27, 1
      %p183 = por %p181, %p182
      %p184 = scmp.ne.s32.totalorder %s175, %s176
      %p185 = scmp.eq.s32.totalorder %s27, 0
      %p186 = por %p184, %p185
      %p187 = scmp.ne.s32.totalorder %s175, %s176
      %p188 = scmp.eq.s32.totalorder %s28, 1
      %p189 = por %p187, %p188
      %p191 = scmp.ne.s32.totalorder %s176, %s190
      %p192 = scmp.eq.s32.totalorder %s28, 0
      %p193 = por %p191, %p192
      %s195 = sadd.s32 %s194, 1
      %p198 = scmp.eq.s32.totalorder %s22, 1
      %p199 = scmp.ne.s32.totalorder %s194, %s196
      %p200 = scmp.eq.s32.totalorder %s22, 0
      %p201 = por %p199, %p200
      %p202 = scmp.ne.s32.totalorder %s194, %s196
      %p203 = scmp.eq.s32.totalorder %s27, 1
      %p204 = por %p202, %p203
      %p205 = scmp.ne.s32.totalorder %s196, %s197
      %p206 = scmp.eq.s32.totalorder %s27, 0
      %p207 = por %p205, %p206
      %p208 = scmp.ne.s32.totalorder %s196, %s197
      %p209 = scmp.eq.s32.totalorder %s28, 1
      %p210 = por %p208, %p209
      %p212 = scmp.ne.s32.totalorder %s197, %s211
      %p213 = scmp.eq.s32.totalorder %s28, 0
      %p214 = por %p212, %p213
      %s216 = sadd.s32 %s215, 1
      %p219 = scmp.eq.s32.totalorder %s22, 1
      %p220 = scmp.ne.s32.totalorder %s215, %s217
      %p221 = scmp.eq.s32.totalorder %s22, 0
      %p222 = por %p220, %p221
      %p223 = scmp.ne.s32.totalorder %s215, %s217
      %p224 = scmp.eq.s32.totalorder %s27, 1
      %p225 = por %p223, %p224
      %p226 = scmp.ne.s32.totalorder %s217, %s218
      %p227 = scmp.eq.s32.totalorder %s27, 0
      %p228 = por %p226, %p227
      %p229 = scmp.ne.s32.totalorder %s217, %s218
      %p230 = scmp.eq.s32.totalorder %s28, 1
      %p231 = por %p229, %p230
      %p233 = scmp.ne.s32.totalorder %s218, %s232
      %p234 = scmp.eq.s32.totalorder %s28, 0
      %p235 = por %p233, %p234
      %s237 = sadd.s32 %s236, 1
      %p240 = scmp.eq.s32.totalorder %s22, 1
      %p241 = scmp.ne.s32.totalorder %s236, %s238
      %p242 = scmp.eq.s32.totalorder %s22, 0
      %p243 = por %p241, %p242
      %p244 = scmp.ne.s32.totalorder %s236, %s238
      %p245 = scmp.eq.s32.totalorder %s27, 1
      %p246 = por %p244, %p245
      %p247 = scmp.ne.s32.totalorder %s238, %s239
      %p248 = scmp.eq.s32.totalorder %s27, 0
      %p249 = por %p247, %p248
      %p250 = scmp.ne.s32.totalorder %s238, %s239
      %p251 = scmp.eq.s32.totalorder %s28, 1
      %p252 = por %p250, %p251
      %p254 = scmp.ne.s32.totalorder %s239, %s253
      %p255 = scmp.eq.s32.totalorder %s28, 0
      %p256 = por %p254, %p255
      %s257 = ssub.s32 %s29, %s41
      %s258 = ssub.s32 %s30, %s37
      %s259 = sor.u32 %s257, %s258
      %p260 = scmp.eq.s32.totalorder %s259, 0
      %s262 = sadd.s32 %s261, 1
      %s263 = scalar_select %p260, %s261, %s262
      %p266 = pneg %p260
      %p267 = scmp.eq.s32.totalorder %s22, 1
      %p268 = por %p266, %p267
      %p269 = scmp.ne.s32.totalorder %s261, %s264
      %p270 = scmp.eq.s32.totalorder %s22, 0
      %p271 = por %p269, %p270
      %p272 = scmp.ne.s32.totalorder %s261, %s264
      %p273 = scmp.eq.s32.totalorder %s27, 1
      %p274 = por %p272, %p273
      %p275 = scmp.ne.s32.totalorder %s264, %s265
      %p276 = scmp.eq.s32.totalorder %s27, 0
      %p277 = por %p275, %p276
      %p278 = scmp.ne.s32.totalorder %s264, %s265
      %p279 = scmp.eq.s32.totalorder %s28, 1
      %p280 = por %p278, %p279
      %p282 = scmp.ne.s32.totalorder %s265, %s281
      %p283 = scmp.eq.s32.totalorder %s28, 0
      %p284 = por %p282, %p283
      %p285 = scmp.le.s32.totalorder 1, %s22
      %p286 = scmp.lt.s32.totalorder %s22, 3
      %p287 = pnand %p285, %p286
      %p288 = pneg %p287
      // Predicated region
      $region9: #{bottleneck_forward.1} parent=5 // pred_check
        _
      $region10: #{bottleneck_forward.1} parent=5 // pred_check_branch
        %290 = sbr.rel (%p287) target = $region12
      $region11: #{bottleneck_forward.1} parent=5 // pred_region
        %s291 = ssub.s32 %s22, 1
        // Predicated region
        $region13: #{bottleneck_forward.1} parent=11 // pred_check
          %p292 = pneg %p81
        $region14: #{bottleneck_forward.1} parent=11 // pred_check_branch
          %294 = sbr.rel (%p292) target = $region16
        $region15: #{bottleneck_forward.1} parent=11 // pred_region
          _
        $region16: #{bottleneck_forward.1} parent=11 // pred_fallthru
          _
        // Predicated region
        $region17: #{bottleneck_forward.1} parent=11 // pred_check
          %p295 = pneg %p102
        $region18: #{bottleneck_forward.1} parent=11 // pred_check_branch
          %297 = sbr.rel (%p295) target = $region20
        $region19: #{bottleneck_forward.1} parent=11 // pred_region
          _
        $region20: #{bottleneck_forward.1} parent=11 // pred_fallthru
          _
        // Predicated region
        $region21: #{bottleneck_forward.1} parent=11 // pred_check
          %p298 = pneg %p123
        $region22: #{bottleneck_forward.1} parent=11 // pred_check_branch
          %300 = sbr.rel (%p298) target = $region24
        $region23: #{bottleneck_forward.1} parent=11 // pred_region
          _
        $region24: #{bottleneck_forward.1} parent=11 // pred_fallthru
          _
        // Predicated region
        $region25: #{bottleneck_forward.1} parent=11 // pred_check
          %p301 = pneg %p144
        $region26: #{bottleneck_forward.1} parent=11 // pred_check_branch
          %303 = sbr.rel (%p301) target = $region28
        $region27: #{bottleneck_forward.1} parent=11 // pred_region
          _
        $region28: #{bottleneck_forward.1} parent=11 // pred_fallthru
          _
        // Predicated region
        $region29: #{bottleneck_forward.1} parent=11 // pred_check
          %p304 = pneg %p165
        $region30: #{bottleneck_forward.1} parent=11 // pred_check_branch
          %306 = sbr.rel (%p304) target = $region32
        $region31: #{bottleneck_forward.1} parent=11 // pred_region
          _
        $region32: #{bottleneck_forward.1} parent=11 // pred_fallthru
          _
        // Predicated region
        $region33: #{bottleneck_forward.1} parent=11 // pred_check
          %p307 = pneg %p186
        $region34: #{bottleneck_forward.1} parent=11 // pred_check_branch
          %309 = sbr.rel (%p307) target = $region36
        $region35: #{bottleneck_forward.1} parent=11 // pred_region
          _
        $region36: #{bottleneck_forward.1} parent=11 // pred_fallthru
          _
        // Predicated region
        $region37: #{bottleneck_forward.1} parent=11 // pred_check
          %p310 = pneg %p207
        $region38: #{bottleneck_forward.1} parent=11 // pred_check_branch
          %312 = sbr.rel (%p310) target = $region40
        $region39: #{bottleneck_forward.1} parent=11 // pred_region
          _
        $region40: #{bottleneck_forward.1} parent=11 // pred_fallthru
          _
        // Predicated region
        $region41: #{bottleneck_forward.1} parent=11 // pred_check
          %p313 = pneg %p228
        $region42: #{bottleneck_forward.1} parent=11 // pred_check_branch
          %315 = sbr.rel (%p313) target = $region44
        $region43: #{bottleneck_forward.1} parent=11 // pred_region
          _
        $region44: #{bottleneck_forward.1} parent=11 // pred_fallthru
          _
        // Predicated region
        $region45: #{bottleneck_forward.1} parent=11 // pred_check
          %p316 = pneg %p249
        $region46: #{bottleneck_forward.1} parent=11 // pred_check_branch
          %318 = sbr.rel (%p316) target = $region48
        $region47: #{bottleneck_forward.1} parent=11 // pred_region
          _
        $region48: #{bottleneck_forward.1} parent=11 // pred_fallthru
          _
      $region12: #{bottleneck_forward.1} parent=5 // pred_fallthru
        _
      %p319 = scmp.lt.s32.totalorder %s22, 2
      // Predicated region
      $region49: #{bottleneck_forward.1} parent=5 // pred_check
        %p320 = pneg %p319
      $region50: #{bottleneck_forward.1} parent=5 // pred_check_branch
        %322 = sbr.rel (%p320) target = $region52
      $region51: #{bottleneck_forward.1} parent=5 // pred_region
        // Predicated region
        $region53: #{bottleneck_forward.1} parent=51 // pred_check
          %p323 = pneg %p54
        $region54: #{bottleneck_forward.1} parent=51 // pred_check_branch
          %325 = sbr.rel (%p323) target = $region56
        $region55: #{bottleneck_forward.1} parent=51 // pred_region
          %s326 = sand.u32 %s44, 1
          %s327 = scalar_lea.sflag [#allocation4], %s326
          %s328 = sand.u32 %s44, 1
          %s329 = smul.addr %s328, 256
          %s330 = scalar_lea.vmem [#allocation3], %s329
          %s332 = ssub.s32 4096, 4096
          %333 = vsyncadd %s327, %s332
          %s334 = smul.addr %s29, 32
          %s335 = smul.addr %s334, 128
          %s336 = scalar_lea.hbm %s0, %s335
          %s337 = sshll.u32 %s330, 4
          %s338 = int_to_ptr.vmem [resolvable:$true] %s337
          %343 = dma.hbm_to_vmem [thread:$0]  %s336, 4096, %s338, %s327, 128, 128, 8
        $region56: #{bottleneck_forward.1} parent=51 // pred_fallthru
          _
      $region52: #{bottleneck_forward.1} parent=5 // pred_fallthru
        _
      %p344 = scmp.le.s32.totalorder 1, %s22
      %p345 = scmp.lt.s32.totalorder %s22, 3
      %p346 = pnand %p344, %p345
      %p347 = pneg %p346
      // Predicated region
      $region57: #{bottleneck_forward.1} parent=5 // pred_check
        _
      $region58: #{bottleneck_forward.1} parent=5 // pred_check_branch
        %349 = sbr.rel (%p346) target = $region60
      $region59: #{bottleneck_forward.1} parent=5 // pred_region
        %s350 = ssub.s32 %s22, 1
        %s351 = sand.u32 %s47, 1
        %s352 = scalar_lea.sflag [#allocation4], %s351
        %s353 = sand.u32 %s47, 1
        %s354 = smul.addr %s353, 256
        %s355 = scalar_lea.vmem [#allocation3], %s354
        // Predicated region
        $region61: #{bottleneck_forward.1} parent=59 // pred_check
          %p356 = pneg %p60
        $region62: #{bottleneck_forward.1} parent=59 // pred_check_branch
          %358 = sbr.rel (%p356) target = $region64
        $region63: #{bottleneck_forward.1} parent=59 // pred_region
          %359 = dma.done %s352, 4096
        $region64: #{bottleneck_forward.1} parent=59 // pred_fallthru
          _
        %s360 = sand.u32 %s47, 1
        %s361 = scalar_lea.sflag [#allocation4], %s360
        %s362 = sand.u32 %s47, 1
        %s363 = smul.addr %s362, 256
        %s364 = scalar_lea.vmem [#allocation3], %s363
        %p365 = pneg %p60
        %p366 = pneg %p57
        %p367 = pneg %p81
        %p368 = pneg %p78
        %p369 = pneg %p102
        %p370 = pneg %p99
        %p371 = pneg %p123
        %p372 = pneg %p120
        %p373 = pneg %p144
        %p374 = pneg %p141
        %p375 = pneg %p165
        %p376 = pneg %p162
        %p377 = pneg %p186
        %p378 = pneg %p183
        %p379 = pneg %p207
        %p380 = pneg %p204
        %p381 = pneg %p228
        %p382 = pneg %p225
        %p383 = pneg %p249
        %p384 = pneg %p246
        %p385 = pneg %p277
        %p386 = pneg %p274
        %s387 = sand.u32 %s264, 1
        %s388 = scalar_lea.sflag [#allocation5], %s387
        %s389 = sand.u32 %s264, 1
        %s390 = smul.addr %s389, 256
        %s391 = scalar_lea.vmem [#allocation6], %s390
        %s392 = smul.u32 16, %s32
        %s393 = smul.u32 %s32, 16
        %v394 = vld [vmem:[%s1] sm:$0xff]
        %v395 = vld [vmem:[%s1 + $0x8] sm:$0xff]
        %v396 = vld [vmem:[%s4] sm:$0x1]
        %v397 = vld [vmem:[%s5] sm:$0x1]
        %vm398 = vcmask 97280
        %399 = vst.msk [vmem:[#allocation2] sm:$0xff] %vm398, 0.0
        %400 = vst.msk [vmem:[#allocation2 + $0x8] sm:$0xff] %vm398, 0.0
        %s401 = scalar_lea.vmem [#allocation2], 272
        %402 = vst.msk [vmem:[%s401] sm:$0xff] %vm398, 0.0
        %403 = vst.msk [vmem:[%s401 + $0x8] sm:$0xff] %vm398, 0.0
        %v404 = vld [vmem:[%s355] sm:$0xff]
        %v405 = vld [vmem:[%s355 + $0x8] sm:$0xff]
        %v406 = vld [vmem:[%s355 + $0x10] sm:$0xff]
        %v407 = vld [vmem:[%s355 + $0x18] sm:$0xff]
        %v408 = vld [vmem:[%s355 + $0x20] sm:$0xff]
        %v409 = vld [vmem:[%s355 + $0x28] sm:$0xff]
        %v410 = vld [vmem:[%s355 + $0x30] sm:$0xff]
        %v411 = vld [vmem:[%s355 + $0x38] sm:$0xff]
        %v412 = vld [vmem:[%s355 + $0x40] sm:$0xff]
        %v413 = vld [vmem:[%s355 + $0x48] sm:$0xff]
        %v414 = vld [vmem:[%s355 + $0x50] sm:$0xff]
        %v415 = vld [vmem:[%s355 + $0x58] sm:$0xff]
        %v416 = vld [vmem:[%s355 + $0x60] sm:$0xff]
        %v417 = vld [vmem:[%s355 + $0x68] sm:$0xff]
        %v418 = vld [vmem:[%s355 + $0x70] sm:$0xff]
        %v419 = vld [vmem:[%s355 + $0x78] sm:$0xff]
        %v420 = vld [vmem:[%s355 + $0x80] sm:$0xff]
        %v421 = vld [vmem:[%s355 + $0x88] sm:$0xff]
        %v422 = vld [vmem:[%s355 + $0x90] sm:$0xff]
        %v423 = vld [vmem:[%s355 + $0x98] sm:$0xff]
        %v424 = vld [vmem:[%s355 + $0xa0] sm:$0xff]
        %v425 = vld [vmem:[%s355 + $0xa8] sm:$0xff]
        %v426 = vld [vmem:[%s355 + $0xb0] sm:$0xff]
        %v427 = vld [vmem:[%s355 + $0xb8] sm:$0xff]
        %v428 = vld [vmem:[%s355 + $0xc0] sm:$0xff]
        %v429 = vld [vmem:[%s355 + $0xc8] sm:$0xff]
        %v430 = vld [vmem:[%s355 + $0xd0] sm:$0xff]
        %v431 = vld [vmem:[%s355 + $0xd8] sm:$0xff]
        %v432 = vld [vmem:[%s355 + $0xe0] sm:$0xff]
        %v433 = vld [vmem:[%s355 + $0xe8] sm:$0xff]
        %v434 = vld [vmem:[%s355 + $0xf0] sm:$0xff]
        %v435 = vld [vmem:[%s355 + $0xf8] sm:$0xff]
        %vm436 = vcmask 130048
        %v438 = vsel %vm436, %v404, 0
        %v441 = vsel %vm436, %v405, 0
        %v444 = vsel %vm436, %v406, 0
        %v447 = vsel %vm436, %v407, 0
        %v450 = vsel %vm436, %v408, 0
        %v453 = vsel %vm436, %v409, 0
        %v456 = vsel %vm436, %v410, 0
        %v459 = vsel %vm436, %v411, 0
        %v462 = vsel %vm436, %v412, 0
        %v465 = vsel %vm436, %v413, 0
        %v468 = vsel %vm436, %v414, 0
        %v471 = vsel %vm436, %v415, 0
        %v474 = vsel %vm436, %v416, 0
        %v477 = vsel %vm436, %v417, 0
        %v480 = vsel %vm436, %v418, 0
        %v483 = vsel %vm436, %v419, 0
        %v486 = vsel %vm436, %v420, 0
        %v489 = vsel %vm436, %v421, 0
        %v492 = vsel %vm436, %v422, 0
        %v495 = vsel %vm436, %v423, 0
        %v498 = vsel %vm436, %v424, 0
        %v501 = vsel %vm436, %v425, 0
        %v504 = vsel %vm436, %v426, 0
        %v507 = vsel %vm436, %v427, 0
        %v510 = vsel %vm436, %v428, 0
        %v513 = vsel %vm436, %v429, 0
        %v516 = vsel %vm436, %v430, 0
        %v519 = vsel %vm436, %v431, 0
        %v522 = vsel %vm436, %v432, 0
        %v525 = vsel %vm436, %v433, 0
        %v528 = vsel %vm436, %v434, 0
        %v531 = vsel %vm436, %v435, 0
        %533 = vmatprep.subr.mxu0 0.0
        %534 = vmatpush1.msra.mxu0 %v394
        %535 = vmatprep.subr.mxu0 0.0
        %536 = vmatpush1.msra.mxu0 %v395
        %537 = vmatprep.subr.mxu0 0.0
        %538 = vmatpush1.msra.mxu0 0.0
        %539 = vmatprep.subr.mxu0 0.0
        %540 = vmatpush1.msra.mxu0 0.0
        %541 = vmatprep.subr.mxu0 0.0
        %542 = vmatpush1.msra.mxu0 0.0
        %543 = vmatprep.subr.mxu0 0.0
        %544 = vmatpush1.msra.mxu0 0.0
        %545 = vmatprep.subr.mxu0 0.0
        %546 = vmatpush1.msra.mxu0 0.0
        %547 = vmatprep.subr.mxu0 0.0
        %548 = vmatpush1.msra.mxu0 0.0
        %549 = vmatprep.subr.mxu0 0.0
        %550 = vmatpush1.msra.mxu0 0.0
        %551 = vmatprep.subr.mxu0 0.0
        %552 = vmatpush1.msra.mxu0 0.0
        %553 = vmatprep.subr.mxu0 0.0
        %554 = vmatpush1.msra.mxu0 0.0
        %555 = vmatprep.subr.mxu0 0.0
        %556 = vmatpush1.msra.mxu0 0.0
        %557 = vmatprep.subr.mxu0 0.0
        %558 = vmatpush1.msra.mxu0 0.0
        %559 = vmatprep.subr.mxu0 0.0
        %560 = vmatpush1.msra.mxu0 0.0
        %561 = vmatprep.subr.mxu0 0.0
        %562 = vmatpush1.msra.mxu0 0.0
        %563 = vmatprep.subr.mxu0 0.0
        %564 = vmatpush1.msra.mxu0 0.0
        %565 = vmatprep.subr.mxu0 0.0
        %566 = vmatpush1.msra.mxu0 0.0
        %567 = vmatprep.subr.mxu0 0.0
        %568 = vmatpush1.msra.mxu0 0.0
        %569 = vmatprep.subr.mxu0 0.0
        %570 = vmatpush1.msra.mxu0 0.0
        %571 = vmatprep.subr.mxu0 0.0
        %572 = vmatpush1.msra.mxu0 0.0
        %573 = vmatprep.subr.mxu0 0.0
        %574 = vmatpush1.msra.mxu0 0.0
        %575 = vmatprep.subr.mxu0 0.0
        %576 = vmatpush1.msra.mxu0 0.0
        %577 = vmatprep.subr.mxu0 0.0
        %578 = vmatpush1.msra.mxu0 0.0
        %579 = vmatprep.subr.mxu0 0.0
        %580 = vmatpush1.msra.mxu0 0.0
        %581 = vmatprep.subr.mxu0 0.0
        %582 = vmatpush1.msra.mxu0 0.0
        %583 = vmatprep.subr.mxu0 0.0
        %584 = vmatpush1.msra.mxu0 0.0
        %585 = vmatprep.subr.mxu0 0.0
        %586 = vmatpush1.msra.mxu0 0.0
        %587 = vmatprep.subr.mxu0 0.0
        %588 = vmatpush1.msra.mxu0 0.0
        %589 = vmatprep.subr.mxu0 0.0
        %590 = vmatpush1.msra.mxu0 0.0
        %591 = vmatprep.subr.mxu0 0.0
        %592 = vmatpush1.msra.mxu0 0.0
        %593 = vmatprep.subr.mxu0 0.0
        %594 = vmatpush1.msra.mxu0 0.0
        %595 = vmatprep.subr.mxu0 0.0
        %596 = vmatpush1.msra.mxu0 0.0
        %597 = vmatprep.mubr.f32.mxu0 0.0
        %598 = vmatmul.mubr.f32.gmra.mrb[0].mxu0 %v438
        %v599 = vpop.f32.mrb[0].mxu0
        %v600 = vadd.f32 0.0, %v599
        %v601 = vpop.f32.mrb[0].mxu0
        %602 = vmatprep.mubr.f32.mxu0 0.0
        %603 = vmatmul.mubr.f32.gmra.mrb[0].mxu0 %v441
        %v604 = vpop.f32.mrb[0].mxu0
        %v605 = vadd.f32 0.0, %v604
        %v606 = vpop.f32.mrb[0].mxu0
        %607 = vmatprep.mubr.f32.mxu0 0.0
        %608 = vmatmul.mubr.f32.gmra.mrb[0].mxu0 %v444
        %v609 = vpop.f32.mrb[0].mxu0
        %v610 = vadd.f32 0.0, %v609
        %v611 = vpop.f32.mrb[0].mxu0
        %612 = vmatprep.mubr.f32.mxu0 0.0
        %613 = vmatmul.mubr.f32.gmra.mrb[0].mxu0 %v447
        %v614 = vpop.f32.mrb[0].mxu0
        %v615 = vadd.f32 0.0, %v614
        %v616 = vpop.f32.mrb[0].mxu0
        %617 = vmatprep.mubr.f32.mxu0 0.0
        %618 = vmatmul.mubr.f32.gmra.mrb[0].mxu0 %v450
        %v619 = vpop.f32.mrb[0].mxu0
        %v620 = vadd.f32 0.0, %v619
        %v621 = vpop.f32.mrb[0].mxu0
        %622 = vmatprep.mubr.f32.mxu0 0.0
        %623 = vmatmul.mubr.f32.gmra.mrb[0].mxu0 %v453
        %v624 = vpop.f32.mrb[0].mxu0
        %v625 = vadd.f32 0.0, %v624
        %v626 = vpop.f32.mrb[0].mxu0
        %627 = vmatprep.mubr.f32.mxu0 0.0
        %628 = vmatmul.mubr.f32.gmra.mrb[0].mxu0 %v456
        %v629 = vpop.f32.mrb[0].mxu0
        %v630 = vadd.f32 0.0, %v629
        %v631 = vpop.f32.mrb[0].mxu0
        %632 = vmatprep.mubr.f32.mxu0 0.0
        %633 = vmatmul.mubr.f32.gmra.mrb[0].mxu0 %v459
        %v634 = vpop.f32.mrb[0].mxu0
        %v635 = vadd.f32 0.0, %v634
        %v636 = vpop.f32.mrb[0].mxu0
        %637 = vmatprep.mubr.f32.mxu0 0.0
        %638 = vmatmul.mubr.f32.gmra.mrb[0].mxu0 %v462
        %v639 = vpop.f32.mrb[0].mxu0
        %v640 = vadd.f32 0.0, %v639
        %v641 = vpop.f32.mrb[0].mxu0
        %642 = vmatprep.mubr.f32.mxu0 0.0
        %643 = vmatmul.mubr.f32.gmra.mrb[0].mxu0 %v465
        %v644 = vpop.f32.mrb[0].mxu0
        %v645 = vadd.f32 0.0, %v644
        %v646 = vpop.f32.mrb[0].mxu0
        %647 = vmatprep.mubr.f32.mxu0 0.0
        %648 = vmatmul.mubr.f32.gmra.mrb[0].mxu0 %v468
        %v649 = vpop.f32.mrb[0].mxu0
        %v650 = vadd.f32 0.0, %v649
        %v651 = vpop.f32.mrb[0].mxu0
        %652 = vmatprep.mubr.f32.mxu0 0.0
        %653 = vmatmul.mubr.f32.gmra.mrb[0].mxu0 %v471
        %v654 = vpop.f32.mrb[0].mxu0
        %v655 = vadd.f32 0.0, %v654
        %v656 = vpop.f32.mrb[0].mxu0
        %657 = vmatprep.mubr.f32.mxu0 0.0
        %658 = vmatmul.mubr.f32.gmra.mrb[0].mxu0 %v474
        %v659 = vpop.f32.mrb[0].mxu0
        %v660 = vadd.f32 0.0, %v659
        %v661 = vpop.f32.mrb[0].mxu0
        %662 = vmatprep.mubr.f32.mxu0 0.0
        %663 = vmatmul.mubr.f32.gmra.mrb[0].mxu0 %v477
        %v664 = vpop.f32.mrb[0].mxu0
        %v665 = vadd.f32 0.0, %v664
        %v666 = vpop.f32.mrb[0].mxu0
        %667 = vmatprep.mubr.f32.mxu0 0.0
        %668 = vmatmul.mubr.f32.gmra.mrb[0].mxu0 %v480
        %v669 = vpop.f32.mrb[0].mxu0
        %v670 = vadd.f32 0.0, %v669
        %v671 = vpop.f32.mrb[0].mxu0
        %672 = vmatprep.mubr.f32.mxu0 0.0
        %673 = vmatmul.mubr.f32.gmra.mrb[0].mxu0 %v483
        %v674 = vpop.f32.mrb[0].mxu0
        %v675 = vadd.f32 0.0, %v674
        %v676 = vpop.f32.mrb[0].mxu0
        %677 = vmatprep.mubr.f32.mxu0 0.0
        %678 = vmatmul.mubr.f32.gmra.mrb[0].mxu0 %v486
        %v679 = vpop.f32.mrb[0].mxu0
        %v680 = vadd.f32 0.0, %v679
        %v681 = vpop.f32.mrb[0].mxu0
        %682 = vmatprep.mubr.f32.mxu0 0.0
        %683 = vmatmul.mubr.f32.gmra.mrb[0].mxu0 %v489
        %v684 = vpop.f32.mrb[0].mxu0
        %v685 = vadd.f32 0.0, %v684
        %v686 = vpop.f32.mrb[0].mxu0
        %687 = vmatprep.mubr.f32.mxu0 0.0
        %688 = vmatmul.mubr.f32.gmra.mrb[0].mxu0 %v492
        %v689 = vpop.f32.mrb[0].mxu0
        %v690 = vadd.f32 0.0, %v689
        %v691 = vpop.f32.mrb[0].mxu0
        %692 = vmatprep.mubr.f32.mxu0 0.0
        %693 = vmatmul.mubr.f32.gmra.mrb[0].mxu0 %v495
        %v694 = vpop.f32.mrb[0].mxu0
        %v695 = vadd.f32 0.0, %v694
        %v696 = vpop.f32.mrb[0].mxu0
        %697 = vmatprep.mubr.f32.mxu0 0.0
        %698 = vmatmul.mubr.f32.gmra.mrb[0].mxu0 %v498
        %v699 = vpop.f32.mrb[0].mxu0
        %v700 = vadd.f32 0.0, %v699
        %v701 = vpop.f32.mrb[0].mxu0
        %702 = vmatprep.mubr.f32.mxu0 0.0
        %703 = vmatmul.mubr.f32.gmra.mrb[0].mxu0 %v501
        %v704 = vpop.f32.mrb[0].mxu0
        %v705 = vadd.f32 0.0, %v704
        %v706 = vpop.f32.mrb[0].mxu0
        %707 = vmatprep.mubr.f32.mxu0 0.0
        %708 = vmatmul.mubr.f32.gmra.mrb[0].mxu0 %v504
        %v709 = vpop.f32.mrb[0].mxu0
        %v710 = vadd.f32 0.0, %v709
        %v711 = vpop.f32.mrb[0].mxu0
        %712 = vmatprep.mubr.f32.mxu0 0.0
        %713 = vmatmul.mubr.f32.gmra.mrb[0].mxu0 %v507
        %v714 = vpop.f32.mrb[0].mxu0
        %v715 = vadd.f32 0.0, %v714
        %v716 = vpop.f32.mrb[0].mxu0
        %717 = vmatprep.mubr.f32.mxu0 0.0
        %718 = vmatmul.mubr.f32.gmra.mrb[0].mxu0 %v510
        %v719 = vpop.f32.mrb[0].mxu0
        %v720 = vadd.f32 0.0, %v719
        %v721 = vpop.f32.mrb[0].mxu0
        %722 = vmatprep.mubr.f32.mxu0 0.0
        %723 = vmatmul.mubr.f32.gmra.mrb[0].mxu0 %v513
        %v724 = vpop.f32.mrb[0].mxu0
        %v725 = vadd.f32 0.0, %v724
        %v726 = vpop.f32.mrb[0].mxu0
        %727 = vmatprep.mubr.f32.mxu0 0.0
        %728 = vmatmul.mubr.f32.gmra.mrb[0].mxu0 %v516
        %v729 = vpop.f32.mrb[0].mxu0
        %v730 = vadd.f32 0.0, %v729
        %v731 = vpop.f32.mrb[0].mxu0
        %732 = vmatprep.mubr.f32.mxu0 0.0
        %733 = vmatmul.mubr.f32.gmra.mrb[0].mxu0 %v519
        %v734 = vpop.f32.mrb[0].mxu0
        %v735 = vadd.f32 0.0, %v734
        %v736 = vpop.f32.mrb[0].mxu0
        %737 = vmatprep.mubr.f32.mxu0 0.0
        %738 = vmatmul.mubr.f32.gmra.mrb[0].mxu0 %v522
        %v739 = vpop.f32.mrb[0].mxu0
        %v740 = vadd.f32 0.0, %v739
        %v741 = vpop.f32.mrb[0].mxu0
        %742 = vmatprep.mubr.f32.mxu0 0.0
        %743 = vmatmul.mubr.f32.gmra.mrb[0].mxu0 %v525
        %v744 = vpop.f32.mrb[0].mxu0
        %v745 = vadd.f32 0.0, %v744
        %v746 = vpop.f32.mrb[0].mxu0
        %747 = vmatprep.mubr.f32.mxu0 0.0
        %748 = vmatmul.mubr.f32.gmra.mrb[0].mxu0 %v528
        %v749 = vpop.f32.mrb[0].mxu0
        %v750 = vadd.f32 0.0, %v749
        %v751 = vpop.f32.mrb[0].mxu0
        %752 = vmatprep.mubr.f32.mxu0 0.0
        %753 = vmatmul.mubr.f32.gmra.mrb[0].mxu0 %v531
        %v754 = vpop.f32.mrb[0].mxu0
        %v755 = vadd.f32 0.0, %v754
        %v756 = vpop.f32.mrb[0].mxu0
        %757 = vdwg.mxu0
        %v759 = vlaneseq
        %v760 = vshrl.u32 %v759, 7
        %v761 = vsub.s32 0, %v760
        %v762 = vrot.slane %v396, %v761
        %v764 = vmul.f32 %v600, %v762
        %v765 = vmul.f32 %v605, %v762
        %v766 = vmul.f32 %v610, %v762
        %v767 = vmul.f32 %v615, %v762
        %v768 = vmul.f32 %v620, %v762
        %v769 = vmul.f32 %v625, %v762
        %v770 = vmul.f32 %v630, %v762
        %v771 = vmul.f32 %v635, %v762
        %v772 = vmul.f32 %v640, %v762
        %v773 = vmul.f32 %v645, %v762
        %v774 = vmul.f32 %v650, %v762
        %v775 = vmul.f32 %v655, %v762
        %v776 = vmul.f32 %v660, %v762
        %v777 = vmul.f32 %v665, %v762
        %v778 = vmul.f32 %v670, %v762
        %v779 = vmul.f32 %v675, %v762
        %v780 = vmul.f32 %v680, %v762
        %v781 = vmul.f32 %v685, %v762
        %v782 = vmul.f32 %v690, %v762
        %v783 = vmul.f32 %v695, %v762
        %v784 = vmul.f32 %v700, %v762
        %v785 = vmul.f32 %v705, %v762
        %v786 = vmul.f32 %v710, %v762
        %v787 = vmul.f32 %v715, %v762
        %v788 = vmul.f32 %v720, %v762
        %v789 = vmul.f32 %v725, %v762
        %v790 = vmul.f32 %v730, %v762
        %v791 = vmul.f32 %v735, %v762
        %v792 = vmul.f32 %v740, %v762
        %v793 = vmul.f32 %v745, %v762
        %v794 = vmul.f32 %v750, %v762
        %v795 = vmul.f32 %v755, %v762
        %v797 = vlaneseq
        %v798 = vshrl.u32 %v797, 7
        %v799 = vsub.s32 0, %v798
        %v800 = vrot.slane %v397, %v799
        %v802 = vadd.f32 %v764, %v800
        %v803 = vadd.f32 %v765, %v800
        %v804 = vadd.f32 %v766, %v800
        %v805 = vadd.f32 %v767, %v800
        %v806 = vadd.f32 %v768, %v800
        %v807 = vadd.f32 %v769, %v800
        %v808 = vadd.f32 %v770, %v800
        %v809 = vadd.f32 %v771, %v800
        %v810 = vadd.f32 %v772, %v800
        %v811 = vadd.f32 %v773, %v800
        %v812 = vadd.f32 %v774, %v800
        %v813 = vadd.f32 %v775, %v800
        %v814 = vadd.f32 %v776, %v800
        %v815 = vadd.f32 %v777, %v800
        %v816 = vadd.f32 %v778, %v800
        %v817 = vadd.f32 %v779, %v800
        %v818 = vadd.f32 %v780, %v800
        %v819 = vadd.f32 %v781, %v800
        %v820 = vadd.f32 %v782, %v800
        %v821 = vadd.f32 %v783, %v800
        %v822 = vadd.f32 %v784, %v800
        %v823 = vadd.f32 %v785, %v800
        %v824 = vadd.f32 %v786, %v800
        %v825 = vadd.f32 %v787, %v800
        %v826 = vadd.f32 %v788, %v800
        %v827 = vadd.f32 %v789, %v800
        %v828 = vadd.f32 %v790, %v800
        %v829 = vadd.f32 %v791, %v800
        %v830 = vadd.f32 %v792, %v800
        %v831 = vadd.f32 %v793, %v800
        %v832 = vadd.f32 %v794, %v800
        %v833 = vadd.f32 %v795, %v800
        %v834 = vmax.f32 %v802, 0.0
        %v835 = vmax.f32 %v803, 0.0
        %v836 = vmax.f32 %v804, 0.0
        %v837 = vmax.f32 %v805, 0.0
        %v838 = vmax.f32 %v806, 0.0
        %v839 = vmax.f32 %v807, 0.0
        %v840 = vmax.f32 %v808, 0.0
        %v841 = vmax.f32 %v809, 0.0
        %v842 = vmax.f32 %v810, 0.0
        %v843 = vmax.f32 %v811, 0.0
        %v844 = vmax.f32 %v812, 0.0
        %v845 = vmax.f32 %v813, 0.0
        %v846 = vmax.f32 %v814, 0.0
        %v847 = vmax.f32 %v815, 0.0
        %v848 = vmax.f32 %v816, 0.0
        %v849 = vmax.f32 %v817, 0.0
        %v850 = vmax.f32 %v818, 0.0
        %v851 = vmax.f32 %v819, 0.0
        %v852 = vmax.f32 %v820, 0.0
        %v853 = vmax.f32 %v821, 0.0
        %v854 = vmax.f32 %v822, 0.0
        %v855 = vmax.f32 %v823, 0.0
        %v856 = vmax.f32 %v824, 0.0
        %v857 = vmax.f32 %v825, 0.0
        %v858 = vmax.f32 %v826, 0.0
        %v859 = vmax.f32 %v827, 0.0
        %v860 = vmax.f32 %v828, 0.0
        %v861 = vmax.f32 %v829, 0.0
        %v862 = vmax.f32 %v830, 0.0
        %v863 = vmax.f32 %v831, 0.0
        %v864 = vmax.f32 %v832, 0.0
        %v865 = vmax.f32 %v833, 0.0
        %vm898 = vcmask 1040384
        %v899 = vrot.slane %v834, 7
        %v900 = vrot.slane %v835, 7
        %v901 = vsel %vm898, %v899, %v900
        %v902 = vrot.slane %v836, 7
        %v903 = vrot.slane %v837, 7
        %v904 = vsel %vm898, %v902, %v903
        %v905 = vrot.slane %v838, 7
        %v906 = vrot.slane %v839, 7
        %v907 = vsel %vm898, %v905, %v906
        %v908 = vrot.slane %v840, 7
        %v909 = vrot.slane %v841, 7
        %v910 = vsel %vm898, %v908, %v909
        %v911 = vrot.slane %v842, 7
        %v912 = vrot.slane %v843, 7
        %v913 = vsel %vm898, %v911, %v912
        %v914 = vrot.slane %v844, 7
        %v915 = vrot.slane %v845, 7
        %v916 = vsel %vm898, %v914, %v915
        %v917 = vrot.slane %v846, 7
        %v918 = vrot.slane %v847, 7
        %v919 = vsel %vm898, %v917, %v918
        %v920 = vrot.slane %v848, 7
        %v921 = vrot.slane %v849, 7
        %v922 = vsel %vm898, %v920, %v921
        %v923 = vrot.slane %v850, 7
        %v924 = vrot.slane %v851, 7
        %v925 = vsel %vm898, %v923, %v924
        %v926 = vrot.slane %v852, 7
        %v927 = vrot.slane %v853, 7
        %v928 = vsel %vm898, %v926, %v927
        %v929 = vrot.slane %v854, 7
        %v930 = vrot.slane %v855, 7
        %v931 = vsel %vm898, %v929, %v930
        %v932 = vrot.slane %v856, 7
        %v933 = vrot.slane %v857, 7
        %v934 = vsel %vm898, %v932, %v933
        %v935 = vrot.slane %v858, 7
        %v936 = vrot.slane %v859, 7
        %v937 = vsel %vm898, %v935, %v936
        %v938 = vrot.slane %v860, 7
        %v939 = vrot.slane %v861, 7
        %v940 = vsel %vm898, %v938, %v939
        %v941 = vrot.slane %v862, 7
        %v942 = vrot.slane %v863, 7
        %v943 = vsel %vm898, %v941, %v942
        %v944 = vrot.slane %v864, 7
        %v945 = vrot.slane %v865, 7
        %v946 = vsel %vm898, %v944, %v945
        %v979 = vsel %vm898, 0.0, %v899
        %v980 = vsel %vm898, 0.0, %v902
        %v981 = vsel %vm898, 0.0, %v905
        %v982 = vsel %vm898, 0.0, %v908
        %v983 = vsel %vm898, 0.0, %v911
        %v984 = vsel %vm898, 0.0, %v914
        %v985 = vsel %vm898, 0.0, %v917
        %v986 = vsel %vm898, 0.0, %v920
        %v987 = vsel %vm898, 0.0, %v923
        %v988 = vsel %vm898, 0.0, %v926
        %v989 = vsel %vm898, 0.0, %v929
        %v990 = vsel %vm898, 0.0, %v932
        %v991 = vsel %vm898, 0.0, %v935
        %v992 = vsel %vm898, 0.0, %v938
        %v993 = vsel %vm898, 0.0, %v941
        %v994 = vsel %vm898, 0.0, %v944
        %s995 = scalar_lea.vmem [#allocation2], 16
        %vm996 = vcmask 31744
        %997 = vst.msk [vmem:[%s995] sm:$0xff] %vm996, %v979
        %998 = vst.msk [vmem:[%s995 + $0x8] sm:$0xff] %vm996, %v901
        %999 = vst.msk [vmem:[%s995 + $0x10] sm:$0xff] %vm996, %v980
        %1000 = vst.msk [vmem:[%s995 + $0x18] sm:$0xff] %vm996, %v904
        %1001 = vst.msk [vmem:[%s995 + $0x20] sm:$0xff] %vm996, %v981
        %1002 = vst.msk [vmem:[%s995 + $0x28] sm:$0xff] %vm996, %v907
        %1003 = vst.msk [vmem:[%s995 + $0x30] sm:$0xff] %vm996, %v982
        %1004 = vst.msk [vmem:[%s995 + $0x38] sm:$0xff] %vm996, %v910
        %1005 = vst.msk [vmem:[%s995 + $0x40] sm:$0xff] %vm996, %v983
        %1006 = vst.msk [vmem:[%s995 + $0x48] sm:$0xff] %vm996, %v913
        %1007 = vst.msk [vmem:[%s995 + $0x50] sm:$0xff] %vm996, %v984
        %1008 = vst.msk [vmem:[%s995 + $0x58] sm:$0xff] %vm996, %v916
        %1009 = vst.msk [vmem:[%s995 + $0x60] sm:$0xff] %vm996, %v985
        %1010 = vst.msk [vmem:[%s995 + $0x68] sm:$0xff] %vm996, %v919
        %1011 = vst.msk [vmem:[%s995 + $0x70] sm:$0xff] %vm996, %v986
        %1012 = vst.msk [vmem:[%s995 + $0x78] sm:$0xff] %vm996, %v922
        %1013 = vst.msk [vmem:[%s995 + $0x80] sm:$0xff] %vm996, %v987
        %1014 = vst.msk [vmem:[%s995 + $0x88] sm:$0xff] %vm996, %v925
        %1015 = vst.msk [vmem:[%s995 + $0x90] sm:$0xff] %vm996, %v988
        %1016 = vst.msk [vmem:[%s995 + $0x98] sm:$0xff] %vm996, %v928
        %1017 = vst.msk [vmem:[%s995 + $0xa0] sm:$0xff] %vm996, %v989
        %1018 = vst.msk [vmem:[%s995 + $0xa8] sm:$0xff] %vm996, %v931
        %1019 = vst.msk [vmem:[%s995 + $0xb0] sm:$0xff] %vm996, %v990
        %1020 = vst.msk [vmem:[%s995 + $0xb8] sm:$0xff] %vm996, %v934
        %1021 = vst.msk [vmem:[%s995 + $0xc0] sm:$0xff] %vm996, %v991
        %1022 = vst.msk [vmem:[%s995 + $0xc8] sm:$0xff] %vm996, %v937
        %1023 = vst.msk [vmem:[%s995 + $0xd0] sm:$0xff] %vm996, %v992
        %1024 = vst.msk [vmem:[%s995 + $0xd8] sm:$0xff] %vm996, %v940
        %1025 = vst.msk [vmem:[%s995 + $0xe0] sm:$0xff] %vm996, %v993
        %1026 = vst.msk [vmem:[%s995 + $0xe8] sm:$0xff] %vm996, %v943
        %1027 = vst.msk [vmem:[%s995 + $0xf0] sm:$0xff] %vm996, %v994
        %1028 = vst.msk [vmem:[%s995 + $0xf8] sm:$0xff] %vm996, %v946
        %1029 = vrot.lane.b32.xlu0 %v834, 4
        %v1030 = vpop.permute.xlu0 %1029
        %1031 = vrot.lane.b32.xlu0 %v835, 4
        %v1032 = vpop.permute.xlu0 %1031
        %1033 = vrot.lane.b32.xlu0 %v836, 4
        %v1034 = vpop.permute.xlu0 %1033
        %1035 = vrot.lane.b32.xlu0 %v837, 4
        %v1036 = vpop.permute.xlu0 %1035
        %1037 = vrot.lane.b32.xlu0 %v838, 4
        %v1038 = vpop.permute.xlu0 %1037
        %1039 = vrot.lane.b32.xlu0 %v839, 4
        %v1040 = vpop.permute.xlu0 %1039
        %1041 = vrot.lane.b32.xlu0 %v840, 4
        %v1042 = vpop.permute.xlu0 %1041
        %1043 = vrot.lane.b32.xlu0 %v841, 4
        %v1044 = vpop.permute.xlu0 %1043
        %1045 = vrot.lane.b32.xlu0 %v842, 4
        %v1046 = vpop.permute.xlu0 %1045
        %1047 = vrot.lane.b32.xlu0 %v843, 4
        %v1048 = vpop.permute.xlu0 %1047
        %1049 = vrot.lane.b32.xlu0 %v844, 4
        %v1050 = vpop.permute.xlu0 %1049
        %1051 = vrot.lane.b32.xlu0 %v845, 4
        %v1052 = vpop.permute.xlu0 %1051
        %1053 = vrot.lane.b32.xlu0 %v846, 4
        %v1054 = vpop.permute.xlu0 %1053
        %1055 = vrot.lane.b32.xlu0 %v847, 4
        %v1056 = vpop.permute.xlu0 %1055
        %1057 = vrot.lane.b32.xlu0 %v848, 4
        %v1058 = vpop.permute.xlu0 %1057
        %1059 = vrot.lane.b32.xlu0 %v849, 4
        %v1060 = vpop.permute.xlu0 %1059
        %1061 = vrot.lane.b32.xlu0 %v850, 4
        %v1062 = vpop.permute.xlu0 %1061
        %1063 = vrot.lane.b32.xlu0 %v851, 4
        %v1064 = vpop.permute.xlu0 %1063
        %1065 = vrot.lane.b32.xlu0 %v852, 4
        %v1066 = vpop.permute.xlu0 %1065
        %1067 = vrot.lane.b32.xlu0 %v853, 4
        %v1068 = vpop.permute.xlu0 %1067
        %1069 = vrot.lane.b32.xlu0 %v854, 4
        %v1070 = vpop.permute.xlu0 %1069
        %1071 = vrot.lane.b32.xlu0 %v855, 4
        %v1072 = vpop.permute.xlu0 %1071
        %1073 = vrot.lane.b32.xlu0 %v856, 4
        %v1074 = vpop.permute.xlu0 %1073
        %1075 = vrot.lane.b32.xlu0 %v857, 4
        %v1076 = vpop.permute.xlu0 %1075
        %1077 = vrot.lane.b32.xlu0 %v858, 4
        %v1078 = vpop.permute.xlu0 %1077
        %1079 = vrot.lane.b32.xlu0 %v859, 4
        %v1080 = vpop.permute.xlu0 %1079
        %1081 = vrot.lane.b32.xlu0 %v860, 4
        %v1082 = vpop.permute.xlu0 %1081
        %1083 = vrot.lane.b32.xlu0 %v861, 4
        %v1084 = vpop.permute.xlu0 %1083
        %1085 = vrot.lane.b32.xlu0 %v862, 4
        %v1086 = vpop.permute.xlu0 %1085
        %1087 = vrot.lane.b32.xlu0 %v863, 4
        %v1088 = vpop.permute.xlu0 %1087
        %1089 = vrot.lane.b32.xlu0 %v864, 4
        %v1090 = vpop.permute.xlu0 %1089
        %1091 = vrot.lane.b32.xlu0 %v865, 4
        %v1092 = vpop.permute.xlu0 %1091
        %vm1125 = vcmask 64544
        %1126 = vst.msk [vmem:[%s995] sm:$0xff] %vm1125, %v1030
        %1127 = vst.msk [vmem:[%s995 + $0x8] sm:$0xff] %vm1125, %v1032
        %1128 = vst.msk [vmem:[%s995 + $0x10] sm:$0xff] %vm1125, %v1034
        %1129 = vst.msk [vmem:[%s995 + $0x18] sm:$0xff] %vm1125, %v1036
        %1130 = vst.msk [vmem:[%s995 + $0x20] sm:$0xff] %vm1125, %v1038
        %1131 = vst.msk [vmem:[%s995 + $0x28] sm:$0xff] %vm1125, %v1040
        %1132 = vst.msk [vmem:[%s995 + $0x30] sm:$0xff] %vm1125, %v1042
        %1133 = vst.msk [vmem:[%s995 + $0x38] sm:$0xff] %vm1125, %v1044
        %1134 = vst.msk [vmem:[%s995 + $0x40] sm:$0xff] %vm1125, %v1046
        %1135 = vst.msk [vmem:[%s995 + $0x48] sm:$0xff] %vm1125, %v1048
        %1136 = vst.msk [vmem:[%s995 + $0x50] sm:$0xff] %vm1125, %v1050
        %1137 = vst.msk [vmem:[%s995 + $0x58] sm:$0xff] %vm1125, %v1052
        %1138 = vst.msk [vmem:[%s995 + $0x60] sm:$0xff] %vm1125, %v1054
        %1139 = vst.msk [vmem:[%s995 + $0x68] sm:$0xff] %vm1125, %v1056
        %1140 = vst.msk [vmem:[%s995 + $0x70] sm:$0xff] %vm1125, %v1058
        %1141 = vst.msk [vmem:[%s995 + $0x78] sm:$0xff] %vm1125, %v1060
        %1142 = vst.msk [vmem:[%s995 + $0x80] sm:$0xff] %vm1125, %v1062
        %1143 = vst.msk [vmem:[%s995 + $0x88] sm:$0xff] %vm1125, %v1064
        %1144 = vst.msk [vmem:[%s995 + $0x90] sm:$0xff] %vm1125, %v1066
        %1145 = vst.msk [vmem:[%s995 + $0x98] sm:$0xff] %vm1125, %v1068
        %1146 = vst.msk [vmem:[%s995 + $0xa0] sm:$0xff] %vm1125, %v1070
        %1147 = vst.msk [vmem:[%s995 + $0xa8] sm:$0xff] %vm1125, %v1072
        %1148 = vst.msk [vmem:[%s995 + $0xb0] sm:$0xff] %vm1125, %v1074
        %1149 = vst.msk [vmem:[%s995 + $0xb8] sm:$0xff] %vm1125, %v1076
        %1150 = vst.msk [vmem:[%s995 + $0xc0] sm:$0xff] %vm1125, %v1078
        %1151 = vst.msk [vmem:[%s995 + $0xc8] sm:$0xff] %vm1125, %v1080
        %1152 = vst.msk [vmem:[%s995 + $0xd0] sm:$0xff] %vm1125, %v1082
        %1153 = vst.msk [vmem:[%s995 + $0xd8] sm:$0xff] %vm1125, %v1084
        %1154 = vst.msk [vmem:[%s995 + $0xe0] sm:$0xff] %vm1125, %v1086
        %1155 = vst.msk [vmem:[%s995 + $0xe8] sm:$0xff] %vm1125, %v1088
        %1156 = vst.msk [vmem:[%s995 + $0xf0] sm:$0xff] %vm1125, %v1090
        %1157 = vst.msk [vmem:[%s995 + $0xf8] sm:$0xff] %vm1125, %v1092
        %vm1158 = vcmask 1046528
        %v1159 = vrot.slane %v834, 1
        %v1160 = vrot.slane %v835, 1
        %v1161 = vsel %vm1158, %v1159, %v1160
        %v1162 = vrot.slane %v836, 1
        %v1163 = vrot.slane %v837, 1
        %v1164 = vsel %vm1158, %v1162, %v1163
        %v1165 = vrot.slane %v838, 1
        %v1166 = vrot.slane %v839, 1
        %v1167 = vsel %vm1158, %v1165, %v1166
        %v1168 = vrot.slane %v840, 1
        %v1169 = vrot.slane %v841, 1
        %v1170 = vsel %vm1158, %v1168, %v1169
        %v1171 = vrot.slane %v842, 1
        %v1172 = vrot.slane %v843, 1
        %v1173 = vsel %vm1158, %v1171, %v1172
        %v1174 = vrot.slane %v844, 1
        %v1175 = vrot.slane %v845, 1
        %v1176 = vsel %vm1158, %v1174, %v1175
        %v1177 = vrot.slane %v846, 1
        %v1178 = vrot.slane %v847, 1
        %v1179 = vsel %vm1158, %v1177, %v1178
        %v1180 = vrot.slane %v848, 1
        %v1181 = vrot.slane %v849, 1
        %v1182 = vsel %vm1158, %v1180, %v1181
        %v1183 = vrot.slane %v850, 1
        %v1184 = vrot.slane %v851, 1
        %v1185 = vsel %vm1158, %v1183, %v1184
        %v1186 = vrot.slane %v852, 1
        %v1187 = vrot.slane %v853, 1
        %v1188 = vsel %vm1158, %v1186, %v1187
        %v1189 = vrot.slane %v854, 1
        %v1190 = vrot.slane %v855, 1
        %v1191 = vsel %vm1158, %v1189, %v1190
        %v1192 = vrot.slane %v856, 1
        %v1193 = vrot.slane %v857, 1
        %v1194 = vsel %vm1158, %v1192, %v1193
        %v1195 = vrot.slane %v858, 1
        %v1196 = vrot.slane %v859, 1
        %v1197 = vsel %vm1158, %v1195, %v1196
        %v1198 = vrot.slane %v860, 1
        %v1199 = vrot.slane %v861, 1
        %v1200 = vsel %vm1158, %v1198, %v1199
        %v1201 = vrot.slane %v862, 1
        %v1202 = vrot.slane %v863, 1
        %v1203 = vsel %vm1158, %v1201, %v1202
        %v1204 = vrot.slane %v864, 1
        %v1205 = vrot.slane %v865, 1
        %v1206 = vsel %vm1158, %v1204, %v1205
        %v1223 = vsel %vm1158, %v1160, 0.0
        %v1224 = vsel %vm1158, %v1163, 0.0
        %v1225 = vsel %vm1158, %v1166, 0.0
        %v1226 = vsel %vm1158, %v1169, 0.0
        %v1227 = vsel %vm1158, %v1172, 0.0
        %v1228 = vsel %vm1158, %v1175, 0.0
        %v1229 = vsel %vm1158, %v1178, 0.0
        %v1230 = vsel %vm1158, %v1181, 0.0
        %v1231 = vsel %vm1158, %v1184, 0.0
        %v1232 = vsel %vm1158, %v1187, 0.0
        %v1233 = vsel %vm1158, %v1190, 0.0
        %v1234 = vsel %vm1158, %v1193, 0.0
        %v1235 = vsel %vm1158, %v1196, 0.0
        %v1236 = vsel %vm1158, %v1199, 0.0
        %v1237 = vsel %vm1158, %v1202, 0.0
        %v1238 = vsel %vm1158, %v1205, 0.0
        %1255 = vrot.lane.b32.xlu0 %v1161, 8
        %v1256 = vpop.permute.xlu0 %1255
        %1257 = vrot.lane.b32.xlu0 %v1223, 8
        %v1258 = vpop.permute.xlu0 %1257
        %1259 = vrot.lane.b32.xlu0 %v1164, 8
        %v1260 = vpop.permute.xlu0 %1259
        %1261 = vrot.lane.b32.xlu0 %v1224, 8
        %v1262 = vpop.permute.xlu0 %1261
        %1263 = vrot.lane.b32.xlu0 %v1167, 8
        %v1264 = vpop.permute.xlu0 %1263
        %1265 = vrot.lane.b32.xlu0 %v1225, 8
        %v1266 = vpop.permute.xlu0 %1265
        %1267 = vrot.lane.b32.xlu0 %v1170, 8
        %v1268 = vpop.permute.xlu0 %1267
        %1269 = vrot.lane.b32.xlu0 %v1226, 8
        %v1270 = vpop.permute.xlu0 %1269
        %1271 = vrot.lane.b32.xlu0 %v1173, 8
        %v1272 = vpop.permute.xlu0 %1271
        %1273 = vrot.lane.b32.xlu0 %v1227, 8
        %v1274 = vpop.permute.xlu0 %1273
        %1275 = vrot.lane.b32.xlu0 %v1176, 8
        %v1276 = vpop.permute.xlu0 %1275
        %1277 = vrot.lane.b32.xlu0 %v1228, 8
        %v1278 = vpop.permute.xlu0 %1277
        %1279 = vrot.lane.b32.xlu0 %v1179, 8
        %v1280 = vpop.permute.xlu0 %1279
        %1281 = vrot.lane.b32.xlu0 %v1229, 8
        %v1282 = vpop.permute.xlu0 %1281
        %1283 = vrot.lane.b32.xlu0 %v1182, 8
        %v1284 = vpop.permute.xlu0 %1283
        %1285 = vrot.lane.b32.xlu0 %v1230, 8
        %v1286 = vpop.permute.xlu0 %1285
        %1287 = vrot.lane.b32.xlu0 %v1185, 8
        %v1288 = vpop.permute.xlu0 %1287
        %1289 = vrot.lane.b32.xlu0 %v1231, 8
        %v1290 = vpop.permute.xlu0 %1289
        %1291 = vrot.lane.b32.xlu0 %v1188, 8
        %v1292 = vpop.permute.xlu0 %1291
        %1293 = vrot.lane.b32.xlu0 %v1232, 8
        %v1294 = vpop.permute.xlu0 %1293
        %1295 = vrot.lane.b32.xlu0 %v1191, 8
        %v1296 = vpop.permute.xlu0 %1295
        %1297 = vrot.lane.b32.xlu0 %v1233, 8
        %v1298 = vpop.permute.xlu0 %1297
        %1299 = vrot.lane.b32.xlu0 %v1194, 8
        %v1300 = vpop.permute.xlu0 %1299
        %1301 = vrot.lane.b32.xlu0 %v1234, 8
        %v1302 = vpop.permute.xlu0 %1301
        %1303 = vrot.lane.b32.xlu0 %v1197, 8
        %v1304 = vpop.permute.xlu0 %1303
        %1305 = vrot.lane.b32.xlu0 %v1235, 8
        %v1306 = vpop.permute.xlu0 %1305
        %1307 = vrot.lane.b32.xlu0 %v1200, 8
        %v1308 = vpop.permute.xlu0 %1307
        %1309 = vrot.lane.b32.xlu0 %v1236, 8
        %v1310 = vpop.permute.xlu0 %1309
        %1311 = vrot.lane.b32.xlu0 %v1203, 8
        %v1312 = vpop.permute.xlu0 %1311
        %1313 = vrot.lane.b32.xlu0 %v1237, 8
        %v1314 = vpop.permute.xlu0 %1313
        %1315 = vrot.lane.b32.xlu0 %v1206, 8
        %v1316 = vpop.permute.xlu0 %1315
        %1317 = vrot.lane.b32.xlu0 %v1238, 8
        %v1318 = vpop.permute.xlu0 %1317
        %vm1351 = vcmask 97344
        %1352 = vst.msk [vmem:[%s995] sm:$0xff] %vm1351, %v1256
        %1353 = vst.msk [vmem:[%s995 + $0x8] sm:$0xff] %vm1351, %v1258
        %1354 = vst.msk [vmem:[%s995 + $0x10] sm:$0xff] %vm1351, %v1260
        %1355 = vst.msk [vmem:[%s995 + $0x18] sm:$0xff] %vm1351, %v1262
        %1356 = vst.msk [vmem:[%s995 + $0x20] sm:$0xff] %vm1351, %v1264
        %1357 = vst.msk [vmem:[%s995 + $0x28] sm:$0xff] %vm1351, %v1266
        %1358 = vst.msk [vmem:[%s995 + $0x30] sm:$0xff] %vm1351, %v1268
        %1359 = vst.msk [vmem:[%s995 + $0x38] sm:$0xff] %vm1351, %v1270
        %1360 = vst.msk [vmem:[%s995 + $0x40] sm:$0xff] %vm1351, %v1272
        %1361 = vst.msk [vmem:[%s995 + $0x48] sm:$0xff] %vm1351, %v1274
        %1362 = vst.msk [vmem:[%s995 + $0x50] sm:$0xff] %vm1351, %v1276
        %1363 = vst.msk [vmem:[%s995 + $0x58] sm:$0xff] %vm1351, %v1278
        %1364 = vst.msk [vmem:[%s995 + $0x60] sm:$0xff] %vm1351, %v1280
        %1365 = vst.msk [vmem:[%s995 + $0x68] sm:$0xff] %vm1351, %v1282
        %1366 = vst.msk [vmem:[%s995 + $0x70] sm:$0xff] %vm1351, %v1284
        %1367 = vst.msk [vmem:[%s995 + $0x78] sm:$0xff] %vm1351, %v1286
        %1368 = vst.msk [vmem:[%s995 + $0x80] sm:$0xff] %vm1351, %v1288
        %1369 = vst.msk [vmem:[%s995 + $0x88] sm:$0xff] %vm1351, %v1290
        %1370 = vst.msk [vmem:[%s995 + $0x90] sm:$0xff] %vm1351, %v1292
        %1371 = vst.msk [vmem:[%s995 + $0x98] sm:$0xff] %vm1351, %v1294
        %1372 = vst.msk [vmem:[%s995 + $0xa0] sm:$0xff] %vm1351, %v1296
        %1373 = vst.msk [vmem:[%s995 + $0xa8] sm:$0xff] %vm1351, %v1298
        %1374 = vst.msk [vmem:[%s995 + $0xb0] sm:$0xff] %vm1351, %v1300
        %1375 = vst.msk [vmem:[%s995 + $0xb8] sm:$0xff] %vm1351, %v1302
        %1376 = vst.msk [vmem:[%s995 + $0xc0] sm:$0xff] %vm1351, %v1304
        %1377 = vst.msk [vmem:[%s995 + $0xc8] sm:$0xff] %vm1351, %v1306
        %1378 = vst.msk [vmem:[%s995 + $0xd0] sm:$0xff] %vm1351, %v1308
        %1379 = vst.msk [vmem:[%s995 + $0xd8] sm:$0xff] %vm1351, %v1310
        %1380 = vst.msk [vmem:[%s995 + $0xe0] sm:$0xff] %vm1351, %v1312
        %1381 = vst.msk [vmem:[%s995 + $0xe8] sm:$0xff] %vm1351, %v1314
        %1382 = vst.msk [vmem:[%s995 + $0xf0] sm:$0xff] %vm1351, %v1316
        %1383 = vst.msk [vmem:[%s995 + $0xf8] sm:$0xff] %vm1351, %v1318
        %v1384 = vld [vmem:[#allocation2] sm:$0xff]
        %v1385 = vld [vmem:[#allocation2 + $0x8] sm:$0xff]
        %v1386 = vld [vmem:[#allocation2 + $0x10] sm:$0xff]
        %v1387 = vld [vmem:[#allocation2 + $0x18] sm:$0xff]
        %v1388 = vld [vmem:[#allocation2 + $0x20] sm:$0xff]
        %v1389 = vld [vmem:[#allocation2 + $0x28] sm:$0xff]
        %v1390 = vld [vmem:[#allocation2 + $0x30] sm:$0xff]
        %v1391 = vld [vmem:[#allocation2 + $0x38] sm:$0xff]
        %v1392 = vld [vmem:[#allocation2 + $0x40] sm:$0xff]
        %v1393 = vld [vmem:[#allocation2 + $0x48] sm:$0xff]
        %v1394 = vld [vmem:[#allocation2 + $0x50] sm:$0xff]
        %v1395 = vld [vmem:[#allocation2 + $0x58] sm:$0xff]
        %v1396 = vld [vmem:[#allocation2 + $0x60] sm:$0xff]
        %v1397 = vld [vmem:[#allocation2 + $0x68] sm:$0xff]
        %v1398 = vld [vmem:[#allocation2 + $0x70] sm:$0xff]
        %v1399 = vld [vmem:[#allocation2 + $0x78] sm:$0xff]
        %v1400 = vld [vmem:[#allocation2 + $0x80] sm:$0xff]
        %v1401 = vld [vmem:[#allocation2 + $0x88] sm:$0xff]
        %v1402 = vld [vmem:[#allocation2 + $0x90] sm:$0xff]
        %v1403 = vld [vmem:[#allocation2 + $0x98] sm:$0xff]
        %v1404 = vld [vmem:[#allocation2 + $0xa0] sm:$0xff]
        %v1405 = vld [vmem:[#allocation2 + $0xa8] sm:$0xff]
        %v1406 = vld [vmem:[#allocation2 + $0xb0] sm:$0xff]
        %v1407 = vld [vmem:[#allocation2 + $0xb8] sm:$0xff]
        %v1408 = vld [vmem:[#allocation2 + $0xc0] sm:$0xff]
        %v1409 = vld [vmem:[#allocation2 + $0xc8] sm:$0xff]
        %v1410 = vld [vmem:[#allocation2 + $0xd0] sm:$0xff]
        %v1411 = vld [vmem:[#allocation2 + $0xd8] sm:$0xff]
        %v1412 = vld [vmem:[#allocation2 + $0xe0] sm:$0xff]
        %v1413 = vld [vmem:[#allocation2 + $0xe8] sm:$0xff]
        %v1414 = vld [vmem:[#allocation2 + $0xf0] sm:$0xff]
        %v1415 = vld [vmem:[#allocation2 + $0xf8] sm:$0xff]
        %v1416 = vld [vmem:[%s2] sm:$0xff]
        %v1417 = vld [vmem:[%s2 + $0x8] sm:$0xf]
        %v1418 = vld [vmem:[%s995] sm:$0xff]
        %v1419 = vld [vmem:[%s995 + $0x8] sm:$0xff]
        %v1420 = vld [vmem:[%s995 + $0x10] sm:$0xff]
        %v1421 = vld [vmem:[%s995 + $0x18] sm:$0xff]
        %v1422 = vld [vmem:[%s995 + $0x20] sm:$0xff]
        %v1423 = vld [vmem:[%s995 + $0x28] sm:$0xff]
        %v1424 = vld [vmem:[%s995 + $0x30] sm:$0xff]
        %v1425 = vld [vmem:[%s995 + $0x38] sm:$0xff]
        %v1426 = vld [vmem:[%s995 + $0x40] sm:$0xff]
        %v1427 = vld [vmem:[%s995 + $0x48] sm:$0xff]
        %v1428 = vld [vmem:[%s995 + $0x50] sm:$0xff]
        %v1429 = vld [vmem:[%s995 + $0x58] sm:$0xff]
        %v1430 = vld [vmem:[%s995 + $0x60] sm:$0xff]
        %v1431 = vld [vmem:[%s995 + $0x68] sm:$0xff]
        %v1432 = vld [vmem:[%s995 + $0x70] sm:$0xff]
        %v1433 = vld [vmem:[%s995 + $0x78] sm:$0xff]
        %v1434 = vld [vmem:[%s995 + $0x80] sm:$0xff]
        %v1435 = vld [vmem:[%s995 + $0x88] sm:$0xff]
        %v1436 = vld [vmem:[%s995 + $0x90] sm:$0xff]
        %v1437 = vld [vmem:[%s995 + $0x98] sm:$0xff]
        %v1438 = vld [vmem:[%s995 + $0xa0] sm:$0xff]
        %v1439 = vld [vmem:[%s995 + $0xa8] sm:$0xff]
        %v1440 = vld [vmem:[%s995 + $0xb0] sm:$0xff]
        %v1441 = vld [vmem:[%s995 + $0xb8] sm:$0xff]
        %v1442 = vld [vmem:[%s995 + $0xc0] sm:$0xff]
        %v1443 = vld [vmem:[%s995 + $0xc8] sm:$0xff]
        %v1444 = vld [vmem:[%s995 + $0xd0] sm:$0xff]
        %v1445 = vld [vmem:[%s995 + $0xd8] sm:$0xff]
        %v1446 = vld [vmem:[%s995 + $0xe0] sm:$0xff]
        %v1447 = vld [vmem:[%s995 + $0xe8] sm:$0xff]
        %v1448 = vld [vmem:[%s995 + $0xf0] sm:$0xff]
        %v1449 = vld [vmem:[%s995 + $0xf8] sm:$0xff]
        %s1450 = scalar_lea.vmem %s2, 16
        %v1451 = vld [vmem:[%s1450] sm:$0xff]
        %v1452 = vld [vmem:[%s1450 + $0x8] sm:$0xf]
        %v1454 = vsel %vm398, %v1418, 0
        %v1457 = vsel %vm398, %v1419, 0
        %v1460 = vsel %vm398, %v1420, 0
        %v1463 = vsel %vm398, %v1421, 0
        %v1466 = vsel %vm398, %v1422, 0
        %v1469 = vsel %vm398, %v1423, 0
        %v1472 = vsel %vm398, %v1424, 0
        %v1475 = vsel %vm398, %v1425, 0
        %v1478 = vsel %vm398, %v1426, 0
        %v1481 = vsel %vm398, %v1427, 0
        %v1484 = vsel %vm398, %v1428, 0
        %v1487 = vsel %vm398, %v1429, 0
        %v1490 = vsel %vm398, %v1430, 0
        %v1493 = vsel %vm398, %v1431, 0
        %v1496 = vsel %vm398, %v1432, 0
        %v1499 = vsel %vm398, %v1433, 0
        %v1502 = vsel %vm398, %v1434, 0
        %v1505 = vsel %vm398, %v1435, 0
        %v1508 = vsel %vm398, %v1436, 0
        %v1511 = vsel %vm398, %v1437, 0
        %v1514 = vsel %vm398, %v1438, 0
        %v1517 = vsel %vm398, %v1439, 0
        %v1520 = vsel %vm398, %v1440, 0
        %v1523 = vsel %vm398, %v1441, 0
        %v1526 = vsel %vm398, %v1442, 0
        %v1529 = vsel %vm398, %v1443, 0
        %v1532 = vsel %vm398, %v1444, 0
        %v1535 = vsel %vm398, %v1445, 0
        %v1538 = vsel %vm398, %v1446, 0
        %v1541 = vsel %vm398, %v1447, 0
        %v1544 = vsel %vm398, %v1448, 0
        %v1547 = vsel %vm398, %v1449, 0
        %vm1549 = vcmask 1043456
        %v1551 = vsel %vm1549, %v1452, 0
        %1553 = vmatprep.subr.mxu0 0.0
        %1554 = vmatpush1.msra.mxu0 %v1451
        %1555 = vmatprep.subr.mxu0 0.0
        %1556 = vmatpush1.msra.mxu0 %v1551
        %1557 = vmatprep.subr.mxu0 0.0
        %1558 = vmatpush1.msra.mxu0 0.0
        %1559 = vmatprep.subr.mxu0 0.0
        %1560 = vmatpush1.msra.mxu0 0.0
        %1561 = vmatprep.subr.mxu0 0.0
        %1562 = vmatpush1.msra.mxu0 0.0
        %1563 = vmatprep.subr.mxu0 0.0
        %1564 = vmatpush1.msra.mxu0 0.0
        %1565 = vmatprep.subr.mxu0 0.0
        %1566 = vmatpush1.msra.mxu0 0.0
        %1567 = vmatprep.subr.mxu0 0.0
        %1568 = vmatpush1.msra.mxu0 0.0
        %1569 = vmatprep.subr.mxu0 0.0
        %1570 = vmatpush1.msra.mxu0 0.0
        %1571 = vmatprep.subr.mxu0 0.0
        %1572 = vmatpush1.msra.mxu0 0.0
        %1573 = vmatprep.subr.mxu0 0.0
        %1574 = vmatpush1.msra.mxu0 0.0
        %1575 = vmatprep.subr.mxu0 0.0
        %1576 = vmatpush1.msra.mxu0 0.0
        %1577 = vmatprep.subr.mxu0 0.0
        %1578 = vmatpush1.msra.mxu0 0.0
        %1579 = vmatprep.subr.mxu0 0.0
        %1580 = vmatpush1.msra.mxu0 0.0
        %1581 = vmatprep.subr.mxu0 0.0
        %1582 = vmatpush1.msra.mxu0 0.0
        %1583 = vmatprep.subr.mxu0 0.0
        %1584 = vmatpush1.msra.mxu0 0.0
        %1585 = vmatprep.subr.mxu0 0.0
        %1586 = vmatpush1.msra.mxu0 0.0
        %1587 = vmatprep.subr.mxu0 0.0
        %1588 = vmatpush1.msra.mxu0 0.0
        %1589 = vmatprep.subr.mxu0 0.0
        %1590 = vmatpush1.msra.mxu0 0.0
        %1591 = vmatprep.subr.mxu0 0.0
        %1592 = vmatpush1.msra.mxu0 0.0
        %1593 = vmatprep.subr.mxu0 0.0
        %1594 = vmatpush1.msra.mxu0 0.0
        %1595 = vmatprep.subr.mxu0 0.0
        %1596 = vmatpush1.msra.mxu0 0.0
        %1597 = vmatprep.subr.mxu0 0.0
        %1598 = vmatpush1.msra.mxu0 0.0
        %1599 = vmatprep.subr.mxu0 0.0
        %1600 = vmatpush1.msra.mxu0 0.0
        %1601 = vmatprep.subr.mxu0 0.0
        %1602 = vmatpush1.msra.mxu0 0.0
        %1603 = vmatprep.subr.mxu0 0.0
        %1604 = vmatpush1.msra.mxu0 0.0
        %1605 = vmatprep.subr.mxu0 0.0
        %1606 = vmatpush1.msra.mxu0 0.0
        %1607 = vmatprep.subr.mxu0 0.0
        %1608 = vmatpush1.msra.mxu0 0.0
        %1609 = vmatprep.subr.mxu0 0.0
        %1610 = vmatpush1.msra.mxu0 0.0
        %1611 = vmatprep.subr.mxu0 0.0
        %1612 = vmatpush1.msra.mxu0 0.0
        %1613 = vmatprep.subr.mxu0 0.0
        %1614 = vmatpush1.msra.mxu0 0.0
        %1615 = vmatprep.subr.mxu0 0.0
        %1616 = vmatpush1.msra.mxu0 0.0
        %1617 = vmatprep.mubr.f32.mxu0 0.0
        %1618 = vmatmul.mubr.f32.gmra.mrb[0].mxu0 %v1454
        %v1619 = vpop.f32.mrb[0].mxu0
        %v1620 = vadd.f32 0.0, %v1619
        %v1621 = vpop.f32.mrb[0].mxu0
        %1622 = vmatprep.mubr.f32.mxu0 0.0
        %1623 = vmatmul.mubr.f32.gmra.mrb[0].mxu0 %v1457
        %v1624 = vpop.f32.mrb[0].mxu0
        %v1625 = vadd.f32 0.0, %v1624
        %v1626 = vpop.f32.mrb[0].mxu0
        %1627 = vmatprep.mubr.f32.mxu0 0.0
        %1628 = vmatmul.mubr.f32.gmra.mrb[0].mxu0 %v1460
        %v1629 = vpop.f32.mrb[0].mxu0
        %v1630 = vadd.f32 0.0, %v1629
        %v1631 = vpop.f32.mrb[0].mxu0
        %1632 = vmatprep.mubr.f32.mxu0 0.0
        %1633 = vmatmul.mubr.f32.gmra.mrb[0].mxu0 %v1463
        %v1634 = vpop.f32.mrb[0].mxu0
        %v1635 = vadd.f32 0.0, %v1634
        %v1636 = vpop.f32.mrb[0].mxu0
        %1637 = vmatprep.mubr.f32.mxu0 0.0
        %1638 = vmatmul.mubr.f32.gmra.mrb[0].mxu0 %v1466
        %v1639 = vpop.f32.mrb[0].mxu0
        %v1640 = vadd.f32 0.0, %v1639
        %v1641 = vpop.f32.mrb[0].mxu0
        %1642 = vmatprep.mubr.f32.mxu0 0.0
        %1643 = vmatmul.mubr.f32.gmra.mrb[0].mxu0 %v1469
        %v1644 = vpop.f32.mrb[0].mxu0
        %v1645 = vadd.f32 0.0, %v1644
        %v1646 = vpop.f32.mrb[0].mxu0
        %1647 = vmatprep.mubr.f32.mxu0 0.0
        %1648 = vmatmul.mubr.f32.gmra.mrb[0].mxu0 %v1472
        %v1649 = vpop.f32.mrb[0].mxu0
        %v1650 = vadd.f32 0.0, %v1649
        %v1651 = vpop.f32.mrb[0].mxu0
        %1652 = vmatprep.mubr.f32.mxu0 0.0
        %1653 = vmatmul.mubr.f32.gmra.mrb[0].mxu0 %v1475
        %v1654 = vpop.f32.mrb[0].mxu0
        %v1655 = vadd.f32 0.0, %v1654
        %v1656 = vpop.f32.mrb[0].mxu0
        %1657 = vmatprep.mubr.f32.mxu0 0.0
        %1658 = vmatmul.mubr.f32.gmra.mrb[0].mxu0 %v1478
        %v1659 = vpop.f32.mrb[0].mxu0
        %v1660 = vadd.f32 0.0, %v1659
        %v1661 = vpop.f32.mrb[0].mxu0
        %1662 = vmatprep.mubr.f32.mxu0 0.0
        %1663 = vmatmul.mubr.f32.gmra.mrb[0].mxu0 %v1481
        %v1664 = vpop.f32.mrb[0].mxu0
        %v1665 = vadd.f32 0.0, %v1664
        %v1666 = vpop.f32.mrb[0].mxu0
        %1667 = vmatprep.mubr.f32.mxu0 0.0
        %1668 = vmatmul.mubr.f32.gmra.mrb[0].mxu0 %v1484
        %v1669 = vpop.f32.mrb[0].mxu0
        %v1670 = vadd.f32 0.0, %v1669
        %v1671 = vpop.f32.mrb[0].mxu0
        %1672 = vmatprep.mubr.f32.mxu0 0.0
        %1673 = vmatmul.mubr.f32.gmra.mrb[0].mxu0 %v1487
        %v1674 = vpop.f32.mrb[0].mxu0
        %v1675 = vadd.f32 0.0, %v1674
        %v1676 = vpop.f32.mrb[0].mxu0
        %1677 = vmatprep.mubr.f32.mxu0 0.0
        %1678 = vmatmul.mubr.f32.gmra.mrb[0].mxu0 %v1490
        %v1679 = vpop.f32.mrb[0].mxu0
        %v1680 = vadd.f32 0.0, %v1679
        %v1681 = vpop.f32.mrb[0].mxu0
        %1682 = vmatprep.mubr.f32.mxu0 0.0
        %1683 = vmatmul.mubr.f32.gmra.mrb[0].mxu0 %v1493
        %v1684 = vpop.f32.mrb[0].mxu0
        %v1685 = vadd.f32 0.0, %v1684
        %v1686 = vpop.f32.mrb[0].mxu0
        %1687 = vmatprep.mubr.f32.mxu0 0.0
        %1688 = vmatmul.mubr.f32.gmra.mrb[0].mxu0 %v1496
        %v1689 = vpop.f32.mrb[0].mxu0
        %v1690 = vadd.f32 0.0, %v1689
        %v1691 = vpop.f32.mrb[0].mxu0
        %1692 = vmatprep.mubr.f32.mxu0 0.0
        %1693 = vmatmul.mubr.f32.gmra.mrb[0].mxu0 %v1499
        %v1694 = vpop.f32.mrb[0].mxu0
        %v1695 = vadd.f32 0.0, %v1694
        %v1696 = vpop.f32.mrb[0].mxu0
        %1697 = vmatprep.mubr.f32.mxu0 0.0
        %1698 = vmatmul.mubr.f32.gmra.mrb[0].mxu0 %v1502
        %v1699 = vpop.f32.mrb[0].mxu0
        %v1700 = vadd.f32 0.0, %v1699
        %v1701 = vpop.f32.mrb[0].mxu0
        %1702 = vmatprep.mubr.f32.mxu0 0.0
        %1703 = vmatmul.mubr.f32.gmra.mrb[0].mxu0 %v1505
        %v1704 = vpop.f32.mrb[0].mxu0
        %v1705 = vadd.f32 0.0, %v1704
        %v1706 = vpop.f32.mrb[0].mxu0
        %1707 = vmatprep.mubr.f32.mxu0 0.0
        %1708 = vmatmul.mubr.f32.gmra.mrb[0].mxu0 %v1508
        %v1709 = vpop.f32.mrb[0].mxu0
        %v1710 = vadd.f32 0.0, %v1709
        %v1711 = vpop.f32.mrb[0].mxu0
        %1712 = vmatprep.mubr.f32.mxu0 0.0
        %1713 = vmatmul.mubr.f32.gmra.mrb[0].mxu0 %v1511
        %v1714 = vpop.f32.mrb[0].mxu0
        %v1715 = vadd.f32 0.0, %v1714
        %v1716 = vpop.f32.mrb[0].mxu0
        %1717 = vmatprep.mubr.f32.mxu0 0.0
        %1718 = vmatmul.mubr.f32.gmra.mrb[0].mxu0 %v1514
        %v1719 = vpop.f32.mrb[0].mxu0
        %v1720 = vadd.f32 0.0, %v1719
        %v1721 = vpop.f32.mrb[0].mxu0
        %1722 = vmatprep.mubr.f32.mxu0 0.0
        %1723 = vmatmul.mubr.f32.gmra.mrb[0].mxu0 %v1517
        %v1724 = vpop.f32.mrb[0].mxu0
        %v1725 = vadd.f32 0.0, %v1724
        %v1726 = vpop.f32.mrb[0].mxu0
        %1727 = vmatprep.mubr.f32.mxu0 0.0
        %1728 = vmatmul.mubr.f32.gmra.mrb[0].mxu0 %v1520
        %v1729 = vpop.f32.mrb[0].mxu0
        %v1730 = vadd.f32 0.0, %v1729
        %v1731 = vpop.f32.mrb[0].mxu0
        %1732 = vmatprep.mubr.f32.mxu0 0.0
        %1733 = vmatmul.mubr.f32.gmra.mrb[0].mxu0 %v1523
        %v1734 = vpop.f32.mrb[0].mxu0
        %v1735 = vadd.f32 0.0, %v1734
        %v1736 = vpop.f32.mrb[0].mxu0
        %1737 = vmatprep.mubr.f32.mxu0 0.0
        %1738 = vmatmul.mubr.f32.gmra.mrb[0].mxu0 %v1526
        %v1739 = vpop.f32.mrb[0].mxu0
        %v1740 = vadd.f32 0.0, %v1739
        %v1741 = vpop.f32.mrb[0].mxu0
        %1742 = vmatprep.mubr.f32.mxu0 0.0
        %1743 = vmatmul.mubr.f32.gmra.mrb[0].mxu0 %v1529
        %v1744 = vpop.f32.mrb[0].mxu0
        %v1745 = vadd.f32 0.0, %v1744
        %v1746 = vpop.f32.mrb[0].mxu0
        %1747 = vmatprep.mubr.f32.mxu0 0.0
        %1748 = vmatmul.mubr.f32.gmra.mrb[0].mxu0 %v1532
        %v1749 = vpop.f32.mrb[0].mxu0
        %v1750 = vadd.f32 0.0, %v1749
        %v1751 = vpop.f32.mrb[0].mxu0
        %1752 = vmatprep.mubr.f32.mxu0 0.0
        %1753 = vmatmul.mubr.f32.gmra.mrb[0].mxu0 %v1535
        %v1754 = vpop.f32.mrb[0].mxu0
        %v1755 = vadd.f32 0.0, %v1754
        %v1756 = vpop.f32.mrb[0].mxu0
        %1757 = vmatprep.mubr.f32.mxu0 0.0
        %1758 = vmatmul.mubr.f32.gmra.mrb[0].mxu0 %v1538
        %v1759 = vpop.f32.mrb[0].mxu0
        %v1760 = vadd.f32 0.0, %v1759
        %v1761 = vpop.f32.mrb[0].mxu0
        %1762 = vmatprep.mubr.f32.mxu0 0.0
        %1763 = vmatmul.mubr.f32.gmra.mrb[0].mxu0 %v1541
        %v1764 = vpop.f32.mrb[0].mxu0
        %v1765 = vadd.f32 0.0, %v1764
        %v1766 = vpop.f32.mrb[0].mxu0
        %1767 = vmatprep.mubr.f32.mxu0 0.0
        %1768 = vmatmul.mubr.f32.gmra.mrb[0].mxu0 %v1544
        %v1769 = vpop.f32.mrb[0].mxu0
        %v1770 = vadd.f32 0.0, %v1769
        %v1771 = vpop.f32.mrb[0].mxu0
        %1772 = vmatprep.mubr.f32.mxu0 0.0
        %1773 = vmatmul.mubr.f32.gmra.mrb[0].mxu0 %v1547
        %v1774 = vpop.f32.mrb[0].mxu0
        %v1775 = vadd.f32 0.0, %v1774
        %v1776 = vpop.f32.mrb[0].mxu0
        %1777 = vdwg.mxu0
        %v1779 = vsel %vm398, %v1384, 0
        %v1782 = vsel %vm398, %v1385, 0
        %v1785 = vsel %vm398, %v1386, 0
        %v1788 = vsel %vm398, %v1387, 0
        %v1791 = vsel %vm398, %v1388, 0
        %v1794 = vsel %vm398, %v1389, 0
        %v1797 = vsel %vm398, %v1390, 0
        %v1800 = vsel %vm398, %v1391, 0
        %v1803 = vsel %vm398, %v1392, 0
        %v1806 = vsel %vm398, %v1393, 0
        %v1809 = vsel %vm398, %v1394, 0
        %v1812 = vsel %vm398, %v1395, 0
        %v1815 = vsel %vm398, %v1396, 0
        %v1818 = vsel %vm398, %v1397, 0
        %v1821 = vsel %vm398, %v1398, 0
        %v1824 = vsel %vm398, %v1399, 0
        %v1827 = vsel %vm398, %v1400, 0
        %v1830 = vsel %vm398, %v1401, 0
        %v1833 = vsel %vm398, %v1402, 0
        %v1836 = vsel %vm398, %v1403, 0
        %v1839 = vsel %vm398, %v1404, 0
        %v1842 = vsel %vm398, %v1405, 0
        %v1845 = vsel %vm398, %v1406, 0
        %v1848 = vsel %vm398, %v1407, 0
        %v1851 = vsel %vm398, %v1408, 0
        %v1854 = vsel %vm398, %v1409, 0
        %v1857 = vsel %vm398, %v1410, 0
        %v1860 = vsel %vm398, %v1411, 0
        %v1863 = vsel %vm398, %v1412, 0
        %v1866 = vsel %vm398, %v1413, 0
        %v1869 = vsel %vm398, %v1414, 0
        %v1872 = vsel %vm398, %v1415, 0
        %v1875 = vsel %vm1549, %v1417, 0
        %1877 = vmatprep.subr.mxu0 0.0
        %1878 = vmatpush1.msra.mxu0 %v1416
        %1879 = vmatprep.subr.mxu0 0.0
        %1880 = vmatpush1.msra.mxu0 %v1875
        %1881 = vmatprep.subr.mxu0 0.0
        %1882 = vmatpush1.msra.mxu0 0.0
        %1883 = vmatprep.subr.mxu0 0.0
        %1884 = vmatpush1.msra.mxu0 0.0
        %1885 = vmatprep.subr.mxu0 0.0
        %1886 = vmatpush1.msra.mxu0 0.0
        %1887 = vmatprep.subr.mxu0 0.0
        %1888 = vmatpush1.msra.mxu0 0.0
        %1889 = vmatprep.subr.mxu0 0.0
        %1890 = vmatpush1.msra.mxu0 0.0
        %1891 = vmatprep.subr.mxu0 0.0
        %1892 = vmatpush1.msra.mxu0 0.0
        %1893 = vmatprep.subr.mxu0 0.0
        %1894 = vmatpush1.msra.mxu0 0.0
        %1895 = vmatprep.subr.mxu0 0.0
        %1896 = vmatpush1.msra.mxu0 0.0
        %1897 = vmatprep.subr.mxu0 0.0
        %1898 = vmatpush1.msra.mxu0 0.0
        %1899 = vmatprep.subr.mxu0 0.0
        %1900 = vmatpush1.msra.mxu0 0.0
        %1901 = vmatprep.subr.mxu0 0.0
        %1902 = vmatpush1.msra.mxu0 0.0
        %1903 = vmatprep.subr.mxu0 0.0
        %1904 = vmatpush1.msra.mxu0 0.0
        %1905 = vmatprep.subr.mxu0 0.0
        %1906 = vmatpush1.msra.mxu0 0.0
        %1907 = vmatprep.subr.mxu0 0.0
        %1908 = vmatpush1.msra.mxu0 0.0
        %1909 = vmatprep.subr.mxu0 0.0
        %1910 = vmatpush1.msra.mxu0 0.0
        %1911 = vmatprep.subr.mxu0 0.0
        %1912 = vmatpush1.msra.mxu0 0.0
        %1913 = vmatprep.subr.mxu0 0.0
        %1914 = vmatpush1.msra.mxu0 0.0
        %1915 = vmatprep.subr.mxu0 0.0
        %1916 = vmatpush1.msra.mxu0 0.0
        %1917 = vmatprep.subr.mxu0 0.0
        %1918 = vmatpush1.msra.mxu0 0.0
        %1919 = vmatprep.subr.mxu0 0.0
        %1920 = vmatpush1.msra.mxu0 0.0
        %1921 = vmatprep.subr.mxu0 0.0
        %1922 = vmatpush1.msra.mxu0 0.0
        %1923 = vmatprep.subr.mxu0 0.0
        %1924 = vmatpush1.msra.mxu0 0.0
        %1925 = vmatprep.subr.mxu0 0.0
        %1926 = vmatpush1.msra.mxu0 0.0
        %1927 = vmatprep.subr.mxu0 0.0
        %1928 = vmatpush1.msra.mxu0 0.0
        %1929 = vmatprep.subr.mxu0 0.0
        %1930 = vmatpush1.msra.mxu0 0.0
        %1931 = vmatprep.subr.mxu0 0.0
        %1932 = vmatpush1.msra.mxu0 0.0
        %1933 = vmatprep.subr.mxu0 0.0
        %1934 = vmatpush1.msra.mxu0 0.0
        %1935 = vmatprep.subr.mxu0 0.0
        %1936 = vmatpush1.msra.mxu0 0.0
        %1937 = vmatprep.subr.mxu0 0.0
        %1938 = vmatpush1.msra.mxu0 0.0
        %1939 = vmatprep.subr.mxu0 0.0
        %1940 = vmatpush1.msra.mxu0 0.0
        %1941 = vmatprep.mubr.f32.mxu0 0.0
        %1942 = vmatmul.mubr.f32.gmra.mrb[0].mxu0 %v1779
        %v1943 = vpop.f32.mrb[0].mxu0
        %v1944 = vadd.f32 %v1620, %v1943
        %v1945 = vpop.f32.mrb[0].mxu0
        %1946 = vmatprep.mubr.f32.mxu0 0.0
        %1947 = vmatmul.mubr.f32.gmra.mrb[0].mxu0 %v1782
        %v1948 = vpop.f32.mrb[0].mxu0
        %v1949 = vadd.f32 %v1625, %v1948
        %v1950 = vpop.f32.mrb[0].mxu0
        %1951 = vmatprep.mubr.f32.mxu0 0.0
        %1952 = vmatmul.mubr.f32.gmra.mrb[0].mxu0 %v1785
        %v1953 = vpop.f32.mrb[0].mxu0
        %v1954 = vadd.f32 %v1630, %v1953
        %v1955 = vpop.f32.mrb[0].mxu0
        %1956 = vmatprep.mubr.f32.mxu0 0.0
        %1957 = vmatmul.mubr.f32.gmra.mrb[0].mxu0 %v1788
        %v1958 = vpop.f32.mrb[0].mxu0
        %v1959 = vadd.f32 %v1635, %v1958
        %v1960 = vpop.f32.mrb[0].mxu0
        %1961 = vmatprep.mubr.f32.mxu0 0.0
        %1962 = vmatmul.mubr.f32.gmra.mrb[0].mxu0 %v1791
        %v1963 = vpop.f32.mrb[0].mxu0
        %v1964 = vadd.f32 %v1640, %v1963
        %v1965 = vpop.f32.mrb[0].mxu0
        %1966 = vmatprep.mubr.f32.mxu0 0.0
        %1967 = vmatmul.mubr.f32.gmra.mrb[0].mxu0 %v1794
        %v1968 = vpop.f32.mrb[0].mxu0
        %v1969 = vadd.f32 %v1645, %v1968
        %v1970 = vpop.f32.mrb[0].mxu0
        %1971 = vmatprep.mubr.f32.mxu0 0.0
        %1972 = vmatmul.mubr.f32.gmra.mrb[0].mxu0 %v1797
        %v1973 = vpop.f32.mrb[0].mxu0
        %v1974 = vadd.f32 %v1650, %v1973
        %v1975 = vpop.f32.mrb[0].mxu0
        %1976 = vmatprep.mubr.f32.mxu0 0.0
        %1977 = vmatmul.mubr.f32.gmra.mrb[0].mxu0 %v1800
        %v1978 = vpop.f32.mrb[0].mxu0
        %v1979 = vadd.f32 %v1655, %v1978
        %v1980 = vpop.f32.mrb[0].mxu0
        %1981 = vmatprep.mubr.f32.mxu0 0.0
        %1982 = vmatmul.mubr.f32.gmra.mrb[0].mxu0 %v1803
        %v1983 = vpop.f32.mrb[0].mxu0
        %v1984 = vadd.f32 %v1660, %v1983
        %v1985 = vpop.f32.mrb[0].mxu0
        %1986 = vmatprep.mubr.f32.mxu0 0.0
        %1987 = vmatmul.mubr.f32.gmra.mrb[0].mxu0 %v1806
        %v1988 = vpop.f32.mrb[0].mxu0
        %v1989 = vadd.f32 %v1665, %v1988
        %v1990 = vpop.f32.mrb[0].mxu0
        %1991 = vmatprep.mubr.f32.mxu0 0.0
        %1992 = vmatmul.mubr.f32.gmra.mrb[0].mxu0 %v1809
        %v1993 = vpop.f32.mrb[0].mxu0
        %v1994 = vadd.f32 %v1670, %v1993
        %v1995 = vpop.f32.mrb[0].mxu0
        %1996 = vmatprep.mubr.f32.mxu0 0.0
        %1997 = vmatmul.mubr.f32.gmra.mrb[0].mxu0 %v1812
        %v1998 = vpop.f32.mrb[0].mxu0
        %v1999 = vadd.f32 %v1675, %v1998
        %v2000 = vpop.f32.mrb[0].mxu0
        %2001 = vmatprep.mubr.f32.mxu0 0.0
        %2002 = vmatmul.mubr.f32.gmra.mrb[0].mxu0 %v1815
        %v2003 = vpop.f32.mrb[0].mxu0
        %v2004 = vadd.f32 %v1680, %v2003
        %v2005 = vpop.f32.mrb[0].mxu0
        %2006 = vmatprep.mubr.f32.mxu0 0.0
        %2007 = vmatmul.mubr.f32.gmra.mrb[0].mxu0 %v1818
        %v2008 = vpop.f32.mrb[0].mxu0
        %v2009 = vadd.f32 %v1685, %v2008
        %v2010 = vpop.f32.mrb[0].mxu0
        %2011 = vmatprep.mubr.f32.mxu0 0.0
        %2012 = vmatmul.mubr.f32.gmra.mrb[0].mxu0 %v1821
        %v2013 = vpop.f32.mrb[0].mxu0
        %v2014 = vadd.f32 %v1690, %v2013
        %v2015 = vpop.f32.mrb[0].mxu0
        %2016 = vmatprep.mubr.f32.mxu0 0.0
        %2017 = vmatmul.mubr.f32.gmra.mrb[0].mxu0 %v1824
        %v2018 = vpop.f32.mrb[0].mxu0
        %v2019 = vadd.f32 %v1695, %v2018
        %v2020 = vpop.f32.mrb[0].mxu0
        %2021 = vmatprep.mubr.f32.mxu0 0.0
        %2022 = vmatmul.mubr.f32.gmra.mrb[0].mxu0 %v1827
        %v2023 = vpop.f32.mrb[0].mxu0
        %v2024 = vadd.f32 %v1700, %v2023
        %v2025 = vpop.f32.mrb[0].mxu0
        %2026 = vmatprep.mubr.f32.mxu0 0.0
        %2027 = vmatmul.mubr.f32.gmra.mrb[0].mxu0 %v1830
        %v2028 = vpop.f32.mrb[0].mxu0
        %v2029 = vadd.f32 %v1705, %v2028
        %v2030 = vpop.f32.mrb[0].mxu0
        %2031 = vmatprep.mubr.f32.mxu0 0.0
        %2032 = vmatmul.mubr.f32.gmra.mrb[0].mxu0 %v1833
        %v2033 = vpop.f32.mrb[0].mxu0
        %v2034 = vadd.f32 %v1710, %v2033
        %v2035 = vpop.f32.mrb[0].mxu0
        %2036 = vmatprep.mubr.f32.mxu0 0.0
        %2037 = vmatmul.mubr.f32.gmra.mrb[0].mxu0 %v1836
        %v2038 = vpop.f32.mrb[0].mxu0
        %v2039 = vadd.f32 %v1715, %v2038
        %v2040 = vpop.f32.mrb[0].mxu0
        %2041 = vmatprep.mubr.f32.mxu0 0.0
        %2042 = vmatmul.mubr.f32.gmra.mrb[0].mxu0 %v1839
        %v2043 = vpop.f32.mrb[0].mxu0
        %v2044 = vadd.f32 %v1720, %v2043
        %v2045 = vpop.f32.mrb[0].mxu0
        %2046 = vmatprep.mubr.f32.mxu0 0.0
        %2047 = vmatmul.mubr.f32.gmra.mrb[0].mxu0 %v1842
        %v2048 = vpop.f32.mrb[0].mxu0
        %v2049 = vadd.f32 %v1725, %v2048
        %v2050 = vpop.f32.mrb[0].mxu0
        %2051 = vmatprep.mubr.f32.mxu0 0.0
        %2052 = vmatmul.mubr.f32.gmra.mrb[0].mxu0 %v1845
        %v2053 = vpop.f32.mrb[0].mxu0
        %v2054 = vadd.f32 %v1730, %v2053
        %v2055 = vpop.f32.mrb[0].mxu0
        %2056 = vmatprep.mubr.f32.mxu0 0.0
        %2057 = vmatmul.mubr.f32.gmra.mrb[0].mxu0 %v1848
        %v2058 = vpop.f32.mrb[0].mxu0
        %v2059 = vadd.f32 %v1735, %v2058
        %v2060 = vpop.f32.mrb[0].mxu0
        %2061 = vmatprep.mubr.f32.mxu0 0.0
        %2062 = vmatmul.mubr.f32.gmra.mrb[0].mxu0 %v1851
        %v2063 = vpop.f32.mrb[0].mxu0
        %v2064 = vadd.f32 %v1740, %v2063
        %v2065 = vpop.f32.mrb[0].mxu0
        %2066 = vmatprep.mubr.f32.mxu0 0.0
        %2067 = vmatmul.mubr.f32.gmra.mrb[0].mxu0 %v1854
        %v2068 = vpop.f32.mrb[0].mxu0
        %v2069 = vadd.f32 %v1745, %v2068
        %v2070 = vpop.f32.mrb[0].mxu0
        %2071 = vmatprep.mubr.f32.mxu0 0.0
        %2072 = vmatmul.mubr.f32.gmra.mrb[0].mxu0 %v1857
        %v2073 = vpop.f32.mrb[0].mxu0
        %v2074 = vadd.f32 %v1750, %v2073
        %v2075 = vpop.f32.mrb[0].mxu0
        %2076 = vmatprep.mubr.f32.mxu0 0.0
        %2077 = vmatmul.mubr.f32.gmra.mrb[0].mxu0 %v1860
        %v2078 = vpop.f32.mrb[0].mxu0
        %v2079 = vadd.f32 %v1755, %v2078
        %v2080 = vpop.f32.mrb[0].mxu0
        %2081 = vmatprep.mubr.f32.mxu0 0.0
        %2082 = vmatmul.mubr.f32.gmra.mrb[0].mxu0 %v1863
        %v2083 = vpop.f32.mrb[0].mxu0
        %v2084 = vadd.f32 %v1760, %v2083
        %v2085 = vpop.f32.mrb[0].mxu0
        %2086 = vmatprep.mubr.f32.mxu0 0.0
        %2087 = vmatmul.mubr.f32.gmra.mrb[0].mxu0 %v1866
        %v2088 = vpop.f32.mrb[0].mxu0
        %v2089 = vadd.f32 %v1765, %v2088
        %v2090 = vpop.f32.mrb[0].mxu0
        %2091 = vmatprep.mubr.f32.mxu0 0.0
        %2092 = vmatmul.mubr.f32.gmra.mrb[0].mxu0 %v1869
        %v2093 = vpop.f32.mrb[0].mxu0
        %v2094 = vadd.f32 %v1770, %v2093
        %v2095 = vpop.f32.mrb[0].mxu0
        %2096 = vmatprep.mubr.f32.mxu0 0.0
        %2097 = vmatmul.mubr.f32.gmra.mrb[0].mxu0 %v1872
        %v2098 = vpop.f32.mrb[0].mxu0
        %v2099 = vadd.f32 %v1775, %v2098
        %v2100 = vpop.f32.mrb[0].mxu0
        %2101 = vdwg.mxu0
        %s2102 = scalar_lea.vmem [#allocation2], 32
        %v2103 = vld [vmem:[%s2102] sm:$0xff]
        %v2104 = vld [vmem:[%s2102 + $0x8] sm:$0xff]
        %v2105 = vld [vmem:[%s2102 + $0x10] sm:$0xff]
        %v2106 = vld [vmem:[%s2102 + $0x18] sm:$0xff]
        %v2107 = vld [vmem:[%s2102 + $0x20] sm:$0xff]
        %v2108 = vld [vmem:[%s2102 + $0x28] sm:$0xff]
        %v2109 = vld [vmem:[%s2102 + $0x30] sm:$0xff]
        %v2110 = vld [vmem:[%s2102 + $0x38] sm:$0xff]
        %v2111 = vld [vmem:[%s2102 + $0x40] sm:$0xff]
        %v2112 = vld [vmem:[%s2102 + $0x48] sm:$0xff]
        %v2113 = vld [vmem:[%s2102 + $0x50] sm:$0xff]
        %v2114 = vld [vmem:[%s2102 + $0x58] sm:$0xff]
        %v2115 = vld [vmem:[%s2102 + $0x60] sm:$0xff]
        %v2116 = vld [vmem:[%s2102 + $0x68] sm:$0xff]
        %v2117 = vld [vmem:[%s2102 + $0x70] sm:$0xff]
        %v2118 = vld [vmem:[%s2102 + $0x78] sm:$0xff]
        %v2119 = vld [vmem:[%s2102 + $0x80] sm:$0xff]
        %v2120 = vld [vmem:[%s2102 + $0x88] sm:$0xff]
        %v2121 = vld [vmem:[%s2102 + $0x90] sm:$0xff]
        %v2122 = vld [vmem:[%s2102 + $0x98] sm:$0xff]
        %v2123 = vld [vmem:[%s2102 + $0xa0] sm:$0xff]
        %v2124 = vld [vmem:[%s2102 + $0xa8] sm:$0xff]
        %v2125 = vld [vmem:[%s2102 + $0xb0] sm:$0xff]
        %v2126 = vld [vmem:[%s2102 + $0xb8] sm:$0xff]
        %v2127 = vld [vmem:[%s2102 + $0xc0] sm:$0xff]
        %v2128 = vld [vmem:[%s2102 + $0xc8] sm:$0xff]
        %v2129 = vld [vmem:[%s2102 + $0xd0] sm:$0xff]
        %v2130 = vld [vmem:[%s2102 + $0xd8] sm:$0xff]
        %v2131 = vld [vmem:[%s2102 + $0xe0] sm:$0xff]
        %v2132 = vld [vmem:[%s2102 + $0xe8] sm:$0xff]
        %v2133 = vld [vmem:[%s2102 + $0xf0] sm:$0xff]
        %v2134 = vld [vmem:[%s2102 + $0xf8] sm:$0xff]
        %s2135 = scalar_lea.vmem %s2, 32
        %v2136 = vld [vmem:[%s2135] sm:$0xff]
        %v2137 = vld [vmem:[%s2135 + $0x8] sm:$0xf]
        %v2139 = vsel %vm398, %v2103, 0
        %v2142 = vsel %vm398, %v2104, 0
        %v2145 = vsel %vm398, %v2105, 0
        %v2148 = vsel %vm398, %v2106, 0
        %v2151 = vsel %vm398, %v2107, 0
        %v2154 = vsel %vm398, %v2108, 0
        %v2157 = vsel %vm398, %v2109, 0
        %v2160 = vsel %vm398, %v2110, 0
        %v2163 = vsel %vm398, %v2111, 0
        %v2166 = vsel %vm398, %v2112, 0
        %v2169 = vsel %vm398, %v2113, 0
        %v2172 = vsel %vm398, %v2114, 0
        %v2175 = vsel %vm398, %v2115, 0
        %v2178 = vsel %vm398, %v2116, 0
        %v2181 = vsel %vm398, %v2117, 0
        %v2184 = vsel %vm398, %v2118, 0
        %v2187 = vsel %vm398, %v2119, 0
        %v2190 = vsel %vm398, %v2120, 0
        %v2193 = vsel %vm398, %v2121, 0
        %v2196 = vsel %vm398, %v2122, 0
        %v2199 = vsel %vm398, %v2123, 0
        %v2202 = vsel %vm398, %v2124, 0
        %v2205 = vsel %vm398, %v2125, 0
        %v2208 = vsel %vm398, %v2126, 0
        %v2211 = vsel %vm398, %v2127, 0
        %v2214 = vsel %vm398, %v2128, 0
        %v2217 = vsel %vm398, %v2129, 0
        %v2220 = vsel %vm398, %v2130, 0
        %v2223 = vsel %vm398, %v2131, 0
        %v2226 = vsel %vm398, %v2132, 0
        %v2229 = vsel %vm398, %v2133, 0
        %v2232 = vsel %vm398, %v2134, 0
        %v2235 = vsel %vm1549, %v2137, 0
        %2237 = vmatprep.subr.mxu0 0.0
        %2238 = vmatpush1.msra.mxu0 %v2136
        %2239 = vmatprep.subr.mxu0 0.0
        %2240 = vmatpush1.msra.mxu0 %v2235
        %2241 = vmatprep.subr.mxu0 0.0
        %2242 = vmatpush1.msra.mxu0 0.0
        %2243 = vmatprep.subr.mxu0 0.0
        %2244 = vmatpush1.msra.mxu0 0.0
        %2245 = vmatprep.subr.mxu0 0.0
        %2246 = vmatpush1.msra.mxu0 0.0
        %2247 = vmatprep.subr.mxu0 0.0
        %2248 = vmatpush1.msra.mxu0 0.0
        %2249 = vmatprep.subr.mxu0 0.0
        %2250 = vmatpush1.msra.mxu0 0.0
        %2251 = vmatprep.subr.mxu0 0.0
        %2252 = vmatpush1.msra.mxu0 0.0
        %2253 = vmatprep.subr.mxu0 0.0
        %2254 = vmatpush1.msra.mxu0 0.0
        %2255 = vmatprep.subr.mxu0 0.0
        %2256 = vmatpush1.msra.mxu0 0.0
        %2257 = vmatprep.subr.mxu0 0.0
        %2258 = vmatpush1.msra.mxu0 0.0
        %2259 = vmatprep.subr.mxu0 0.0
        %2260 = vmatpush1.msra.mxu0 0.0
        %2261 = vmatprep.subr.mxu0 0.0
        %2262 = vmatpush1.msra.mxu0 0.0
        %2263 = vmatprep.subr.mxu0 0.0
        %2264 = vmatpush1.msra.mxu0 0.0
        %2265 = vmatprep.subr.mxu0 0.0
        %2266 = vmatpush1.msra.mxu0 0.0
        %2267 = vmatprep.subr.mxu0 0.0
        %2268 = vmatpush1.msra.mxu0 0.0
        %2269 = vmatprep.subr.mxu0 0.0
        %2270 = vmatpush1.msra.mxu0 0.0
        %2271 = vmatprep.subr.mxu0 0.0
        %2272 = vmatpush1.msra.mxu0 0.0
        %2273 = vmatprep.subr.mxu0 0.0
        %2274 = vmatpush1.msra.mxu0 0.0
        %2275 = vmatprep.subr.mxu0 0.0
        %2276 = vmatpush1.msra.mxu0 0.0
        %2277 = vmatprep.subr.mxu0 0.0
        %2278 = vmatpush1.msra.mxu0 0.0
        %2279 = vmatprep.subr.mxu0 0.0
        %2280 = vmatpush1.msra.mxu0 0.0
        %2281 = vmatprep.subr.mxu0 0.0
        %2282 = vmatpush1.msra.mxu0 0.0
        %2283 = vmatprep.subr.mxu0 0.0
        %2284 = vmatpush1.msra.mxu0 0.0
        %2285 = vmatprep.subr.mxu0 0.0
        %2286 = vmatpush1.msra.mxu0 0.0
        %2287 = vmatprep.subr.mxu0 0.0
        %2288 = vmatpush1.msra.mxu0 0.0
        %2289 = vmatprep.subr.mxu0 0.0
        %2290 = vmatpush1.msra.mxu0 0.0
        %2291 = vmatprep.subr.mxu0 0.0
        %2292 = vmatpush1.msra.mxu0 0.0
        %2293 = vmatprep.subr.mxu0 0.0
        %2294 = vmatpush1.msra.mxu0 0.0
        %2295 = vmatprep.subr.mxu0 0.0
        %2296 = vmatpush1.msra.mxu0 0.0
        %2297 = vmatprep.subr.mxu0 0.0
        %2298 = vmatpush1.msra.mxu0 0.0
        %2299 = vmatprep.subr.mxu0 0.0
        %2300 = vmatpush1.msra.mxu0 0.0
        %2301 = vmatprep.mubr.f32.mxu0 0.0
        %2302 = vmatmul.mubr.f32.gmra.mrb[0].mxu0 %v2139
        %v2303 = vpop.f32.mrb[0].mxu0
        %v2304 = vadd.f32 0.0, %v2303
        %v2305 = vpop.f32.mrb[0].mxu0
        %2306 = vmatprep.mubr.f32.mxu0 0.0
        %2307 = vmatmul.mubr.f32.gmra.mrb[0].mxu0 %v2142
        %v2308 = vpop.f32.mrb[0].mxu0
        %v2309 = vadd.f32 0.0, %v2308
        %v2310 = vpop.f32.mrb[0].mxu0
        %2311 = vmatprep.mubr.f32.mxu0 0.0
        %2312 = vmatmul.mubr.f32.gmra.mrb[0].mxu0 %v2145
        %v2313 = vpop.f32.mrb[0].mxu0
        %v2314 = vadd.f32 0.0, %v2313
        %v2315 = vpop.f32.mrb[0].mxu0
        %2316 = vmatprep.mubr.f32.mxu0 0.0
        %2317 = vmatmul.mubr.f32.gmra.mrb[0].mxu0 %v2148
        %v2318 = vpop.f32.mrb[0].mxu0
        %v2319 = vadd.f32 0.0, %v2318
        %v2320 = vpop.f32.mrb[0].mxu0
        %2321 = vmatprep.mubr.f32.mxu0 0.0
        %2322 = vmatmul.mubr.f32.gmra.mrb[0].mxu0 %v2151
        %v2323 = vpop.f32.mrb[0].mxu0
        %v2324 = vadd.f32 0.0, %v2323
        %v2325 = vpop.f32.mrb[0].mxu0
        %2326 = vmatprep.mubr.f32.mxu0 0.0
        %2327 = vmatmul.mubr.f32.gmra.mrb[0].mxu0 %v2154
        %v2328 = vpop.f32.mrb[0].mxu0
        %v2329 = vadd.f32 0.0, %v2328
        %v2330 = vpop.f32.mrb[0].mxu0
        %2331 = vmatprep.mubr.f32.mxu0 0.0
        %2332 = vmatmul.mubr.f32.gmra.mrb[0].mxu0 %v2157
        %v2333 = vpop.f32.mrb[0].mxu0
        %v2334 = vadd.f32 0.0, %v2333
        %v2335 = vpop.f32.mrb[0].mxu0
        %2336 = vmatprep.mubr.f32.mxu0 0.0
        %2337 = vmatmul.mubr.f32.gmra.mrb[0].mxu0 %v2160
        %v2338 = vpop.f32.mrb[0].mxu0
        %v2339 = vadd.f32 0.0, %v2338
        %v2340 = vpop.f32.mrb[0].mxu0
        %2341 = vmatprep.mubr.f32.mxu0 0.0
        %2342 = vmatmul.mubr.f32.gmra.mrb[0].mxu0 %v2163
        %v2343 = vpop.f32.mrb[0].mxu0
        %v2344 = vadd.f32 0.0, %v2343
        %v2345 = vpop.f32.mrb[0].mxu0
        %2346 = vmatprep.mubr.f32.mxu0 0.0
        %2347 = vmatmul.mubr.f32.gmra.mrb[0].mxu0 %v2166
        %v2348 = vpop.f32.mrb[0].mxu0
        %v2349 = vadd.f32 0.0, %v2348
        %v2350 = vpop.f32.mrb[0].mxu0
        %2351 = vmatprep.mubr.f32.mxu0 0.0
        %2352 = vmatmul.mubr.f32.gmra.mrb[0].mxu0 %v2169
        %v2353 = vpop.f32.mrb[0].mxu0
        %v2354 = vadd.f32 0.0, %v2353
        %v2355 = vpop.f32.mrb[0].mxu0
        %2356 = vmatprep.mubr.f32.mxu0 0.0
        %2357 = vmatmul.mubr.f32.gmra.mrb[0].mxu0 %v2172
        %v2358 = vpop.f32.mrb[0].mxu0
        %v2359 = vadd.f32 0.0, %v2358
        %v2360 = vpop.f32.mrb[0].mxu0
        %2361 = vmatprep.mubr.f32.mxu0 0.0
        %2362 = vmatmul.mubr.f32.gmra.mrb[0].mxu0 %v2175
        %v2363 = vpop.f32.mrb[0].mxu0
        %v2364 = vadd.f32 0.0, %v2363
        %v2365 = vpop.f32.mrb[0].mxu0
        %2366 = vmatprep.mubr.f32.mxu0 0.0
        %2367 = vmatmul.mubr.f32.gmra.mrb[0].mxu0 %v2178
        %v2368 = vpop.f32.mrb[0].mxu0
        %v2369 = vadd.f32 0.0, %v2368
        %v2370 = vpop.f32.mrb[0].mxu0
        %2371 = vmatprep.mubr.f32.mxu0 0.0
        %2372 = vmatmul.mubr.f32.gmra.mrb[0].mxu0 %v2181
        %v2373 = vpop.f32.mrb[0].mxu0
        %v2374 = vadd.f32 0.0, %v2373
        %v2375 = vpop.f32.mrb[0].mxu0
        %2376 = vmatprep.mubr.f32.mxu0 0.0
        %2377 = vmatmul.mubr.f32.gmra.mrb[0].mxu0 %v2184
        %v2378 = vpop.f32.mrb[0].mxu0
        %v2379 = vadd.f32 0.0, %v2378
        %v2380 = vpop.f32.mrb[0].mxu0
        %2381 = vmatprep.mubr.f32.mxu0 0.0
        %2382 = vmatmul.mubr.f32.gmra.mrb[0].mxu0 %v2187
        %v2383 = vpop.f32.mrb[0].mxu0
        %v2384 = vadd.f32 0.0, %v2383
        %v2385 = vpop.f32.mrb[0].mxu0
        %2386 = vmatprep.mubr.f32.mxu0 0.0
        %2387 = vmatmul.mubr.f32.gmra.mrb[0].mxu0 %v2190
        %v2388 = vpop.f32.mrb[0].mxu0
        %v2389 = vadd.f32 0.0, %v2388
        %v2390 = vpop.f32.mrb[0].mxu0
        %2391 = vmatprep.mubr.f32.mxu0 0.0
        %2392 = vmatmul.mubr.f32.gmra.mrb[0].mxu0 %v2193
        %v2393 = vpop.f32.mrb[0].mxu0
        %v2394 = vadd.f32 0.0, %v2393
        %v2395 = vpop.f32.mrb[0].mxu0
        %2396 = vmatprep.mubr.f32.mxu0 0.0
        %2397 = vmatmul.mubr.f32.gmra.mrb[0].mxu0 %v2196
        %v2398 = vpop.f32.mrb[0].mxu0
        %v2399 = vadd.f32 0.0, %v2398
        %v2400 = vpop.f32.mrb[0].mxu0
        %2401 = vmatprep.mubr.f32.mxu0 0.0
        %2402 = vmatmul.mubr.f32.gmra.mrb[0].mxu0 %v2199
        %v2403 = vpop.f32.mrb[0].mxu0
        %v2404 = vadd.f32 0.0, %v2403
        %v2405 = vpop.f32.mrb[0].mxu0
        %2406 = vmatprep.mubr.f32.mxu0 0.0
        %2407 = vmatmul.mubr.f32.gmra.mrb[0].mxu0 %v2202
        %v2408 = vpop.f32.mrb[0].mxu0
        %v2409 = vadd.f32 0.0, %v2408
        %v2410 = vpop.f32.mrb[0].mxu0
        %2411 = vmatprep.mubr.f32.mxu0 0.0
        %2412 = vmatmul.mubr.f32.gmra.mrb[0].mxu0 %v2205
        %v2413 = vpop.f32.mrb[0].mxu0
        %v2414 = vadd.f32 0.0, %v2413
        %v2415 = vpop.f32.mrb[0].mxu0
        %2416 = vmatprep.mubr.f32.mxu0 0.0
        %2417 = vmatmul.mubr.f32.gmra.mrb[0].mxu0 %v2208
        %v2418 = vpop.f32.mrb[0].mxu0
        %v2419 = vadd.f32 0.0, %v2418
        %v2420 = vpop.f32.mrb[0].mxu0
        %2421 = vmatprep.mubr.f32.mxu0 0.0
        %2422 = vmatmul.mubr.f32.gmra.mrb[0].mxu0 %v2211
        %v2423 = vpop.f32.mrb[0].mxu0
        %v2424 = vadd.f32 0.0, %v2423
        %v2425 = vpop.f32.mrb[0].mxu0
        %2426 = vmatprep.mubr.f32.mxu0 0.0
        %2427 = vmatmul.mubr.f32.gmra.mrb[0].mxu0 %v2214
        %v2428 = vpop.f32.mrb[0].mxu0
        %v2429 = vadd.f32 0.0, %v2428
        %v2430 = vpop.f32.mrb[0].mxu0
        %2431 = vmatprep.mubr.f32.mxu0 0.0
        %2432 = vmatmul.mubr.f32.gmra.mrb[0].mxu0 %v2217
        %v2433 = vpop.f32.mrb[0].mxu0
        %v2434 = vadd.f32 0.0, %v2433
        %v2435 = vpop.f32.mrb[0].mxu0
        %2436 = vmatprep.mubr.f32.mxu0 0.0
        %2437 = vmatmul.mubr.f32.gmra.mrb[0].mxu0 %v2220
        %v2438 = vpop.f32.mrb[0].mxu0
        %v2439 = vadd.f32 0.0, %v2438
        %v2440 = vpop.f32.mrb[0].mxu0
        %2441 = vmatprep.mubr.f32.mxu0 0.0
        %2442 = vmatmul.mubr.f32.gmra.mrb[0].mxu0 %v2223
        %v2443 = vpop.f32.mrb[0].mxu0
        %v2444 = vadd.f32 0.0, %v2443
        %v2445 = vpop.f32.mrb[0].mxu0
        %2446 = vmatprep.mubr.f32.mxu0 0.0
        %2447 = vmatmul.mubr.f32.gmra.mrb[0].mxu0 %v2226
        %v2448 = vpop.f32.mrb[0].mxu0
        %v2449 = vadd.f32 0.0, %v2448
        %v2450 = vpop.f32.mrb[0].mxu0
        %2451 = vmatprep.mubr.f32.mxu0 0.0
        %2452 = vmatmul.mubr.f32.gmra.mrb[0].mxu0 %v2229
        %v2453 = vpop.f32.mrb[0].mxu0
        %v2454 = vadd.f32 0.0, %v2453
        %v2455 = vpop.f32.mrb[0].mxu0
        %2456 = vmatprep.mubr.f32.mxu0 0.0
        %2457 = vmatmul.mubr.f32.gmra.mrb[0].mxu0 %v2232
        %v2458 = vpop.f32.mrb[0].mxu0
        %v2459 = vadd.f32 0.0, %v2458
        %v2460 = vpop.f32.mrb[0].mxu0
        %2461 = vdwg.mxu0
        %v2462 = vadd.f32 %v1944, %v2304
        %v2463 = vadd.f32 %v1949, %v2309
        %v2464 = vadd.f32 %v1954, %v2314
        %v2465 = vadd.f32 %v1959, %v2319
        %v2466 = vadd.f32 %v1964, %v2324
        %v2467 = vadd.f32 %v1969, %v2329
        %v2468 = vadd.f32 %v1974, %v2334
        %v2469 = vadd.f32 %v1979, %v2339
        %v2470 = vadd.f32 %v1984, %v2344
        %v2471 = vadd.f32 %v1989, %v2349
        %v2472 = vadd.f32 %v1994, %v2354
        %v2473 = vadd.f32 %v1999, %v2359
        %v2474 = vadd.f32 %v2004, %v2364
        %v2475 = vadd.f32 %v2009, %v2369
        %v2476 = vadd.f32 %v2014, %v2374
        %v2477 = vadd.f32 %v2019, %v2379
        %v2478 = vadd.f32 %v2024, %v2384
        %v2479 = vadd.f32 %v2029, %v2389
        %v2480 = vadd.f32 %v2034, %v2394
        %v2481 = vadd.f32 %v2039, %v2399
        %v2482 = vadd.f32 %v2044, %v2404
        %v2483 = vadd.f32 %v2049, %v2409
        %v2484 = vadd.f32 %v2054, %v2414
        %v2485 = vadd.f32 %v2059, %v2419
        %v2486 = vadd.f32 %v2064, %v2424
        %v2487 = vadd.f32 %v2069, %v2429
        %v2488 = vadd.f32 %v2074, %v2434
        %v2489 = vadd.f32 %v2079, %v2439
        %v2490 = vadd.f32 %v2084, %v2444
        %v2491 = vadd.f32 %v2089, %v2449
        %v2492 = vadd.f32 %v2094, %v2454
        %v2493 = vadd.f32 %v2099, %v2459
        %v2494 = vld [vmem:[%s6] sm:$0x1]
        %v2496 = vlaneseq
        %v2497 = vshrl.u32 %v2496, 7
        %v2498 = vsub.s32 0, %v2497
        %v2499 = vrot.slane %v2494, %v2498
        %v2501 = vmul.f32 %v2462, %v2499
        %v2502 = vmul.f32 %v2463, %v2499
        %v2503 = vmul.f32 %v2464, %v2499
        %v2504 = vmul.f32 %v2465, %v2499
        %v2505 = vmul.f32 %v2466, %v2499
        %v2506 = vmul.f32 %v2467, %v2499
        %v2507 = vmul.f32 %v2468, %v2499
        %v2508 = vmul.f32 %v2469, %v2499
        %v2509 = vmul.f32 %v2470, %v2499
        %v2510 = vmul.f32 %v2471, %v2499
        %v2511 = vmul.f32 %v2472, %v2499
        %v2512 = vmul.f32 %v2473, %v2499
        %v2513 = vmul.f32 %v2474, %v2499
        %v2514 = vmul.f32 %v2475, %v2499
        %v2515 = vmul.f32 %v2476, %v2499
        %v2516 = vmul.f32 %v2477, %v2499
        %v2517 = vmul.f32 %v2478, %v2499
        %v2518 = vmul.f32 %v2479, %v2499
        %v2519 = vmul.f32 %v2480, %v2499
        %v2520 = vmul.f32 %v2481, %v2499
        %v2521 = vmul.f32 %v2482, %v2499
        %v2522 = vmul.f32 %v2483, %v2499
        %v2523 = vmul.f32 %v2484, %v2499
        %v2524 = vmul.f32 %v2485, %v2499
        %v2525 = vmul.f32 %v2486, %v2499
        %v2526 = vmul.f32 %v2487, %v2499
        %v2527 = vmul.f32 %v2488, %v2499
        %v2528 = vmul.f32 %v2489, %v2499
        %v2529 = vmul.f32 %v2490, %v2499
        %v2530 = vmul.f32 %v2491, %v2499
        %v2531 = vmul.f32 %v2492, %v2499
        %v2532 = vmul.f32 %v2493, %v2499
        %v2533 = vld [vmem:[%s7] sm:$0x1]
        %v2535 = vlaneseq
        %v2536 = vshrl.u32 %v2535, 7
        %v2537 = vsub.s32 0, %v2536
        %v2538 = vrot.slane %v2533, %v2537
        %v2540 = vadd.f32 %v2501, %v2538
        %v2541 = vadd.f32 %v2502, %v2538
        %v2542 = vadd.f32 %v2503, %v2538
        %v2543 = vadd.f32 %v2504, %v2538
        %v2544 = vadd.f32 %v2505, %v2538
        %v2545 = vadd.f32 %v2506, %v2538
        %v2546 = vadd.f32 %v2507, %v2538
        %v2547 = vadd.f32 %v2508, %v2538
        %v2548 = vadd.f32 %v2509, %v2538
        %v2549 = vadd.f32 %v2510, %v2538
        %v2550 = vadd.f32 %v2511, %v2538
        %v2551 = vadd.f32 %v2512, %v2538
        %v2552 = vadd.f32 %v2513, %v2538
        %v2553 = vadd.f32 %v2514, %v2538
        %v2554 = vadd.f32 %v2515, %v2538
        %v2555 = vadd.f32 %v2516, %v2538
        %v2556 = vadd.f32 %v2517, %v2538
        %v2557 = vadd.f32 %v2518, %v2538
        %v2558 = vadd.f32 %v2519, %v2538
        %v2559 = vadd.f32 %v2520, %v2538
        %v2560 = vadd.f32 %v2521, %v2538
        %v2561 = vadd.f32 %v2522, %v2538
        %v2562 = vadd.f32 %v2523, %v2538
        %v2563 = vadd.f32 %v2524, %v2538
        %v2564 = vadd.f32 %v2525, %v2538
        %v2565 = vadd.f32 %v2526, %v2538
        %v2566 = vadd.f32 %v2527, %v2538
        %v2567 = vadd.f32 %v2528, %v2538
        %v2568 = vadd.f32 %v2529, %v2538
        %v2569 = vadd.f32 %v2530, %v2538
        %v2570 = vadd.f32 %v2531, %v2538
        %v2571 = vadd.f32 %v2532, %v2538
        %v2572 = vmax.f32 %v2540, 0.0
        %v2573 = vmax.f32 %v2541, 0.0
        %v2574 = vmax.f32 %v2542, 0.0
        %v2575 = vmax.f32 %v2543, 0.0
        %v2576 = vmax.f32 %v2544, 0.0
        %v2577 = vmax.f32 %v2545, 0.0
        %v2578 = vmax.f32 %v2546, 0.0
        %v2579 = vmax.f32 %v2547, 0.0
        %v2580 = vmax.f32 %v2548, 0.0
        %v2581 = vmax.f32 %v2549, 0.0
        %v2582 = vmax.f32 %v2550, 0.0
        %v2583 = vmax.f32 %v2551, 0.0
        %v2584 = vmax.f32 %v2552, 0.0
        %v2585 = vmax.f32 %v2553, 0.0
        %v2586 = vmax.f32 %v2554, 0.0
        %v2587 = vmax.f32 %v2555, 0.0
        %v2588 = vmax.f32 %v2556, 0.0
        %v2589 = vmax.f32 %v2557, 0.0
        %v2590 = vmax.f32 %v2558, 0.0
        %v2591 = vmax.f32 %v2559, 0.0
        %v2592 = vmax.f32 %v2560, 0.0
        %v2593 = vmax.f32 %v2561, 0.0
        %v2594 = vmax.f32 %v2562, 0.0
        %v2595 = vmax.f32 %v2563, 0.0
        %v2596 = vmax.f32 %v2564, 0.0
        %v2597 = vmax.f32 %v2565, 0.0
        %v2598 = vmax.f32 %v2566, 0.0
        %v2599 = vmax.f32 %v2567, 0.0
        %v2600 = vmax.f32 %v2568, 0.0
        %v2601 = vmax.f32 %v2569, 0.0
        %v2602 = vmax.f32 %v2570, 0.0
        %v2603 = vmax.f32 %v2571, 0.0
        %v2604 = vld [vmem:[%s3] sm:$0xf]
        %v2606 = vsel %vm996, %v2572, 0
        %v2609 = vsel %vm996, %v2573, 0
        %v2612 = vsel %vm996, %v2574, 0
        %v2615 = vsel %vm996, %v2575, 0
        %v2618 = vsel %vm996, %v2576, 0
        %v2621 = vsel %vm996, %v2577, 0
        %v2624 = vsel %vm996, %v2578, 0
        %v2627 = vsel %vm996, %v2579, 0
        %v2630 = vsel %vm996, %v2580, 0
        %v2633 = vsel %vm996, %v2581, 0
        %v2636 = vsel %vm996, %v2582, 0
        %v2639 = vsel %vm996, %v2583, 0
        %v2642 = vsel %vm996, %v2584, 0
        %v2645 = vsel %vm996, %v2585, 0
        %v2648 = vsel %vm996, %v2586, 0
        %v2651 = vsel %vm996, %v2587, 0
        %v2654 = vsel %vm996, %v2588, 0
        %v2657 = vsel %vm996, %v2589, 0
        %v2660 = vsel %vm996, %v2590, 0
        %v2663 = vsel %vm996, %v2591, 0
        %v2666 = vsel %vm996, %v2592, 0
        %v2669 = vsel %vm996, %v2593, 0
        %v2672 = vsel %vm996, %v2594, 0
        %v2675 = vsel %vm996, %v2595, 0
        %v2678 = vsel %vm996, %v2596, 0
        %v2681 = vsel %vm996, %v2597, 0
        %v2684 = vsel %vm996, %v2598, 0
        %v2687 = vsel %vm996, %v2599, 0
        %v2690 = vsel %vm996, %v2600, 0
        %v2693 = vsel %vm996, %v2601, 0
        %v2696 = vsel %vm996, %v2602, 0
        %v2699 = vsel %vm996, %v2603, 0
        %v2702 = vsel %vm1549, %v2604, 0
        %2704 = vmatprep.subr.mxu0 0.0
        %2705 = vmatpush1.msra.mxu0 %v2702
        %2706 = vmatprep.subr.mxu0 0.0
        %2707 = vmatpush1.msra.mxu0 0.0
        %2708 = vmatprep.subr.mxu0 0.0
        %2709 = vmatpush1.msra.mxu0 0.0
        %2710 = vmatprep.subr.mxu0 0.0
        %2711 = vmatpush1.msra.mxu0 0.0
        %2712 = vmatprep.subr.mxu0 0.0
        %2713 = vmatpush1.msra.mxu0 0.0
        %2714 = vmatprep.subr.mxu0 0.0
        %2715 = vmatpush1.msra.mxu0 0.0
        %2716 = vmatprep.subr.mxu0 0.0
        %2717 = vmatpush1.msra.mxu0 0.0
        %2718 = vmatprep.subr.mxu0 0.0
        %2719 = vmatpush1.msra.mxu0 0.0
        %2720 = vmatprep.subr.mxu0 0.0
        %2721 = vmatpush1.msra.mxu0 0.0
        %2722 = vmatprep.subr.mxu0 0.0
        %2723 = vmatpush1.msra.mxu0 0.0
        %2724 = vmatprep.subr.mxu0 0.0
        %2725 = vmatpush1.msra.mxu0 0.0
        %2726 = vmatprep.subr.mxu0 0.0
        %2727 = vmatpush1.msra.mxu0 0.0
        %2728 = vmatprep.subr.mxu0 0.0
        %2729 = vmatpush1.msra.mxu0 0.0
        %2730 = vmatprep.subr.mxu0 0.0
        %2731 = vmatpush1.msra.mxu0 0.0
        %2732 = vmatprep.subr.mxu0 0.0
        %2733 = vmatpush1.msra.mxu0 0.0
        %2734 = vmatprep.subr.mxu0 0.0
        %2735 = vmatpush1.msra.mxu0 0.0
        %2736 = vmatprep.subr.mxu0 0.0
        %2737 = vmatpush1.msra.mxu0 0.0
        %2738 = vmatprep.subr.mxu0 0.0
        %2739 = vmatpush1.msra.mxu0 0.0
        %2740 = vmatprep.subr.mxu0 0.0
        %2741 = vmatpush1.msra.mxu0 0.0
        %2742 = vmatprep.subr.mxu0 0.0
        %2743 = vmatpush1.msra.mxu0 0.0
        %2744 = vmatprep.subr.mxu0 0.0
        %2745 = vmatpush1.msra.mxu0 0.0
        %2746 = vmatprep.subr.mxu0 0.0
        %2747 = vmatpush1.msra.mxu0 0.0
        %2748 = vmatprep.subr.mxu0 0.0
        %2749 = vmatpush1.msra.mxu0 0.0
        %2750 = vmatprep.subr.mxu0 0.0
        %2751 = vmatpush1.msra.mxu0 0.0
        %2752 = vmatprep.subr.mxu0 0.0
        %2753 = vmatpush1.msra.mxu0 0.0
        %2754 = vmatprep.subr.mxu0 0.0
        %2755 = vmatpush1.msra.mxu0 0.0
        %2756 = vmatprep.subr.mxu0 0.0
        %2757 = vmatpush1.msra.mxu0 0.0
        %2758 = vmatprep.subr.mxu0 0.0
        %2759 = vmatpush1.msra.mxu0 0.0
        %2760 = vmatprep.subr.mxu0 0.0
        %2761 = vmatpush1.msra.mxu0 0.0
        %2762 = vmatprep.subr.mxu0 0.0
        %2763 = vmatpush1.msra.mxu0 0.0
        %2764 = vmatprep.subr.mxu0 0.0
        %2765 = vmatpush1.msra.mxu0 0.0
        %2766 = vmatprep.subr.mxu0 0.0
        %2767 = vmatpush1.msra.mxu0 0.0
        %2768 = vmatprep.mubr.f32.mxu0 0.0
        %2769 = vmatmul.mubr.f32.gmra.mrb[0].mxu0 %v2606
        %v2770 = vpop.f32.mrb[0].mxu0
        %v2771 = vadd.f32 0.0, %v2770
        %v2772 = vpop.f32.mrb[0].mxu0
        %2773 = vmatprep.mubr.f32.mxu0 0.0
        %2774 = vmatmul.mubr.f32.gmra.mrb[0].mxu0 %v2609
        %v2775 = vpop.f32.mrb[0].mxu0
        %v2776 = vadd.f32 0.0, %v2775
        %v2777 = vpop.f32.mrb[0].mxu0
        %2778 = vmatprep.mubr.f32.mxu0 0.0
        %2779 = vmatmul.mubr.f32.gmra.mrb[0].mxu0 %v2612
        %v2780 = vpop.f32.mrb[0].mxu0
        %v2781 = vadd.f32 0.0, %v2780
        %v2782 = vpop.f32.mrb[0].mxu0
        %2783 = vmatprep.mubr.f32.mxu0 0.0
        %2784 = vmatmul.mubr.f32.gmra.mrb[0].mxu0 %v2615
        %v2785 = vpop.f32.mrb[0].mxu0
        %v2786 = vadd.f32 0.0, %v2785
        %v2787 = vpop.f32.mrb[0].mxu0
        %2788 = vmatprep.mubr.f32.mxu0 0.0
        %2789 = vmatmul.mubr.f32.gmra.mrb[0].mxu0 %v2618
        %v2790 = vpop.f32.mrb[0].mxu0
        %v2791 = vadd.f32 0.0, %v2790
        %v2792 = vpop.f32.mrb[0].mxu0
        %2793 = vmatprep.mubr.f32.mxu0 0.0
        %2794 = vmatmul.mubr.f32.gmra.mrb[0].mxu0 %v2621
        %v2795 = vpop.f32.mrb[0].mxu0
        %v2796 = vadd.f32 0.0, %v2795
        %v2797 = vpop.f32.mrb[0].mxu0
        %2798 = vmatprep.mubr.f32.mxu0 0.0
        %2799 = vmatmul.mubr.f32.gmra.mrb[0].mxu0 %v2624
        %v2800 = vpop.f32.mrb[0].mxu0
        %v2801 = vadd.f32 0.0, %v2800
        %v2802 = vpop.f32.mrb[0].mxu0
        %2803 = vmatprep.mubr.f32.mxu0 0.0
        %2804 = vmatmul.mubr.f32.gmra.mrb[0].mxu0 %v2627
        %v2805 = vpop.f32.mrb[0].mxu0
        %v2806 = vadd.f32 0.0, %v2805
        %v2807 = vpop.f32.mrb[0].mxu0
        %2808 = vmatprep.mubr.f32.mxu0 0.0
        %2809 = vmatmul.mubr.f32.gmra.mrb[0].mxu0 %v2630
        %v2810 = vpop.f32.mrb[0].mxu0
        %v2811 = vadd.f32 0.0, %v2810
        %v2812 = vpop.f32.mrb[0].mxu0
        %2813 = vmatprep.mubr.f32.mxu0 0.0
        %2814 = vmatmul.mubr.f32.gmra.mrb[0].mxu0 %v2633
        %v2815 = vpop.f32.mrb[0].mxu0
        %v2816 = vadd.f32 0.0, %v2815
        %v2817 = vpop.f32.mrb[0].mxu0
        %2818 = vmatprep.mubr.f32.mxu0 0.0
        %2819 = vmatmul.mubr.f32.gmra.mrb[0].mxu0 %v2636
        %v2820 = vpop.f32.mrb[0].mxu0
        %v2821 = vadd.f32 0.0, %v2820
        %v2822 = vpop.f32.mrb[0].mxu0
        %2823 = vmatprep.mubr.f32.mxu0 0.0
        %2824 = vmatmul.mubr.f32.gmra.mrb[0].mxu0 %v2639
        %v2825 = vpop.f32.mrb[0].mxu0
        %v2826 = vadd.f32 0.0, %v2825
        %v2827 = vpop.f32.mrb[0].mxu0
        %2828 = vmatprep.mubr.f32.mxu0 0.0
        %2829 = vmatmul.mubr.f32.gmra.mrb[0].mxu0 %v2642
        %v2830 = vpop.f32.mrb[0].mxu0
        %v2831 = vadd.f32 0.0, %v2830
        %v2832 = vpop.f32.mrb[0].mxu0
        %2833 = vmatprep.mubr.f32.mxu0 0.0
        %2834 = vmatmul.mubr.f32.gmra.mrb[0].mxu0 %v2645
        %v2835 = vpop.f32.mrb[0].mxu0
        %v2836 = vadd.f32 0.0, %v2835
        %v2837 = vpop.f32.mrb[0].mxu0
        %2838 = vmatprep.mubr.f32.mxu0 0.0
        %2839 = vmatmul.mubr.f32.gmra.mrb[0].mxu0 %v2648
        %v2840 = vpop.f32.mrb[0].mxu0
        %v2841 = vadd.f32 0.0, %v2840
        %v2842 = vpop.f32.mrb[0].mxu0
        %2843 = vmatprep.mubr.f32.mxu0 0.0
        %2844 = vmatmul.mubr.f32.gmra.mrb[0].mxu0 %v2651
        %v2845 = vpop.f32.mrb[0].mxu0
        %v2846 = vadd.f32 0.0, %v2845
        %v2847 = vpop.f32.mrb[0].mxu0
        %2848 = vmatprep.mubr.f32.mxu0 0.0
        %2849 = vmatmul.mubr.f32.gmra.mrb[0].mxu0 %v2654
        %v2850 = vpop.f32.mrb[0].mxu0
        %v2851 = vadd.f32 0.0, %v2850
        %v2852 = vpop.f32.mrb[0].mxu0
        %2853 = vmatprep.mubr.f32.mxu0 0.0
        %2854 = vmatmul.mubr.f32.gmra.mrb[0].mxu0 %v2657
        %v2855 = vpop.f32.mrb[0].mxu0
        %v2856 = vadd.f32 0.0, %v2855
        %v2857 = vpop.f32.mrb[0].mxu0
        %2858 = vmatprep.mubr.f32.mxu0 0.0
        %2859 = vmatmul.mubr.f32.gmra.mrb[0].mxu0 %v2660
        %v2860 = vpop.f32.mrb[0].mxu0
        %v2861 = vadd.f32 0.0, %v2860
        %v2862 = vpop.f32.mrb[0].mxu0
        %2863 = vmatprep.mubr.f32.mxu0 0.0
        %2864 = vmatmul.mubr.f32.gmra.mrb[0].mxu0 %v2663
        %v2865 = vpop.f32.mrb[0].mxu0
        %v2866 = vadd.f32 0.0, %v2865
        %v2867 = vpop.f32.mrb[0].mxu0
        %2868 = vmatprep.mubr.f32.mxu0 0.0
        %2869 = vmatmul.mubr.f32.gmra.mrb[0].mxu0 %v2666
        %v2870 = vpop.f32.mrb[0].mxu0
        %v2871 = vadd.f32 0.0, %v2870
        %v2872 = vpop.f32.mrb[0].mxu0
        %2873 = vmatprep.mubr.f32.mxu0 0.0
        %2874 = vmatmul.mubr.f32.gmra.mrb[0].mxu0 %v2669
        %v2875 = vpop.f32.mrb[0].mxu0
        %v2876 = vadd.f32 0.0, %v2875
        %v2877 = vpop.f32.mrb[0].mxu0
        %2878 = vmatprep.mubr.f32.mxu0 0.0
        %2879 = vmatmul.mubr.f32.gmra.mrb[0].mxu0 %v2672
        %v2880 = vpop.f32.mrb[0].mxu0
        %v2881 = vadd.f32 0.0, %v2880
        %v2882 = vpop.f32.mrb[0].mxu0
        %2883 = vmatprep.mubr.f32.mxu0 0.0
        %2884 = vmatmul.mubr.f32.gmra.mrb[0].mxu0 %v2675
        %v2885 = vpop.f32.mrb[0].mxu0
        %v2886 = vadd.f32 0.0, %v2885
        %v2887 = vpop.f32.mrb[0].mxu0
        %2888 = vmatprep.mubr.f32.mxu0 0.0
        %2889 = vmatmul.mubr.f32.gmra.mrb[0].mxu0 %v2678
        %v2890 = vpop.f32.mrb[0].mxu0
        %v2891 = vadd.f32 0.0, %v2890
        %v2892 = vpop.f32.mrb[0].mxu0
        %2893 = vmatprep.mubr.f32.mxu0 0.0
        %2894 = vmatmul.mubr.f32.gmra.mrb[0].mxu0 %v2681
        %v2895 = vpop.f32.mrb[0].mxu0
        %v2896 = vadd.f32 0.0, %v2895
        %v2897 = vpop.f32.mrb[0].mxu0
        %2898 = vmatprep.mubr.f32.mxu0 0.0
        %2899 = vmatmul.mubr.f32.gmra.mrb[0].mxu0 %v2684
        %v2900 = vpop.f32.mrb[0].mxu0
        %v2901 = vadd.f32 0.0, %v2900
        %v2902 = vpop.f32.mrb[0].mxu0
        %2903 = vmatprep.mubr.f32.mxu0 0.0
        %2904 = vmatmul.mubr.f32.gmra.mrb[0].mxu0 %v2687
        %v2905 = vpop.f32.mrb[0].mxu0
        %v2906 = vadd.f32 0.0, %v2905
        %v2907 = vpop.f32.mrb[0].mxu0
        %2908 = vmatprep.mubr.f32.mxu0 0.0
        %2909 = vmatmul.mubr.f32.gmra.mrb[0].mxu0 %v2690
        %v2910 = vpop.f32.mrb[0].mxu0
        %v2911 = vadd.f32 0.0, %v2910
        %v2912 = vpop.f32.mrb[0].mxu0
        %2913 = vmatprep.mubr.f32.mxu0 0.0
        %2914 = vmatmul.mubr.f32.gmra.mrb[0].mxu0 %v2693
        %v2915 = vpop.f32.mrb[0].mxu0
        %v2916 = vadd.f32 0.0, %v2915
        %v2917 = vpop.f32.mrb[0].mxu0
        %2918 = vmatprep.mubr.f32.mxu0 0.0
        %2919 = vmatmul.mubr.f32.gmra.mrb[0].mxu0 %v2696
        %v2920 = vpop.f32.mrb[0].mxu0
        %v2921 = vadd.f32 0.0, %v2920
        %v2922 = vpop.f32.mrb[0].mxu0
        %2923 = vmatprep.mubr.f32.mxu0 0.0
        %2924 = vmatmul.mubr.f32.gmra.mrb[0].mxu0 %v2699
        %v2925 = vpop.f32.mrb[0].mxu0
        %v2926 = vadd.f32 0.0, %v2925
        %v2927 = vpop.f32.mrb[0].mxu0
        %2928 = vdwg.mxu0
        %v2929 = vld [vmem:[%s8] sm:$0x1]
        %v2931 = vlaneseq
        %v2932 = vshrl.u32 %v2931, 7
        %v2933 = vsub.s32 0, %v2932
        %v2934 = vrot.slane %v2929, %v2933
        %v2936 = vmul.f32 %v2771, %v2934
        %v2937 = vmul.f32 %v2776, %v2934
        %v2938 = vmul.f32 %v2781, %v2934
        %v2939 = vmul.f32 %v2786, %v2934
        %v2940 = vmul.f32 %v2791, %v2934
        %v2941 = vmul.f32 %v2796, %v2934
        %v2942 = vmul.f32 %v2801, %v2934
        %v2943 = vmul.f32 %v2806, %v2934
        %v2944 = vmul.f32 %v2811, %v2934
        %v2945 = vmul.f32 %v2816, %v2934
        %v2946 = vmul.f32 %v2821, %v2934
        %v2947 = vmul.f32 %v2826, %v2934
        %v2948 = vmul.f32 %v2831, %v2934
        %v2949 = vmul.f32 %v2836, %v2934
        %v2950 = vmul.f32 %v2841, %v2934
        %v2951 = vmul.f32 %v2846, %v2934
        %v2952 = vmul.f32 %v2851, %v2934
        %v2953 = vmul.f32 %v2856, %v2934
        %v2954 = vmul.f32 %v2861, %v2934
        %v2955 = vmul.f32 %v2866, %v2934
        %v2956 = vmul.f32 %v2871, %v2934
        %v2957 = vmul.f32 %v2876, %v2934
        %v2958 = vmul.f32 %v2881, %v2934
        %v2959 = vmul.f32 %v2886, %v2934
        %v2960 = vmul.f32 %v2891, %v2934
        %v2961 = vmul.f32 %v2896, %v2934
        %v2962 = vmul.f32 %v2901, %v2934
        %v2963 = vmul.f32 %v2906, %v2934
        %v2964 = vmul.f32 %v2911, %v2934
        %v2965 = vmul.f32 %v2916, %v2934
        %v2966 = vmul.f32 %v2921, %v2934
        %v2967 = vmul.f32 %v2926, %v2934
        %v2968 = vld [vmem:[%s9] sm:$0x1]
        %v2970 = vlaneseq
        %v2971 = vshrl.u32 %v2970, 7
        %v2972 = vsub.s32 0, %v2971
        %v2973 = vrot.slane %v2968, %v2972
        %v2975 = vadd.f32 %v2936, %v2973
        %v2976 = vadd.f32 %v2937, %v2973
        %v2977 = vadd.f32 %v2938, %v2973
        %v2978 = vadd.f32 %v2939, %v2973
        %v2979 = vadd.f32 %v2940, %v2973
        %v2980 = vadd.f32 %v2941, %v2973
        %v2981 = vadd.f32 %v2942, %v2973
        %v2982 = vadd.f32 %v2943, %v2973
        %v2983 = vadd.f32 %v2944, %v2973
        %v2984 = vadd.f32 %v2945, %v2973
        %v2985 = vadd.f32 %v2946, %v2973
        %v2986 = vadd.f32 %v2947, %v2973
        %v2987 = vadd.f32 %v2948, %v2973
        %v2988 = vadd.f32 %v2949, %v2973
        %v2989 = vadd.f32 %v2950, %v2973
        %v2990 = vadd.f32 %v2951, %v2973
        %v2991 = vadd.f32 %v2952, %v2973
        %v2992 = vadd.f32 %v2953, %v2973
        %v2993 = vadd.f32 %v2954, %v2973
        %v2994 = vadd.f32 %v2955, %v2973
        %v2995 = vadd.f32 %v2956, %v2973
        %v2996 = vadd.f32 %v2957, %v2973
        %v2997 = vadd.f32 %v2958, %v2973
        %v2998 = vadd.f32 %v2959, %v2973
        %v2999 = vadd.f32 %v2960, %v2973
        %v3000 = vadd.f32 %v2961, %v2973
        %v3001 = vadd.f32 %v2962, %v2973
        %v3002 = vadd.f32 %v2963, %v2973
        %v3003 = vadd.f32 %v2964, %v2973
        %v3004 = vadd.f32 %v2965, %v2973
        %v3005 = vadd.f32 %v2966, %v2973
        %v3006 = vadd.f32 %v2967, %v2973
        %s3007 = smul.u32 %s393, 16
        %s3008 = scalar_lea.vmem %s355, %s3007 [#allocation3]
        %v3009 = vld [vmem:[%s3008] sm:$0xff]
        %v3010 = vld [vmem:[%s3008 + $0x8] sm:$0xff]
        %v3011 = vld [vmem:[%s3008 + $0x10] sm:$0xff]
        %v3012 = vld [vmem:[%s3008 + $0x18] sm:$0xff]
        %v3013 = vld [vmem:[%s3008 + $0x20] sm:$0xff]
        %v3014 = vld [vmem:[%s3008 + $0x28] sm:$0xff]
        %v3015 = vld [vmem:[%s3008 + $0x30] sm:$0xff]
        %v3016 = vld [vmem:[%s3008 + $0x38] sm:$0xff]
        %v3017 = vld [vmem:[%s3008 + $0x40] sm:$0xff]
        %v3018 = vld [vmem:[%s3008 + $0x48] sm:$0xff]
        %v3019 = vld [vmem:[%s3008 + $0x50] sm:$0xff]
        %v3020 = vld [vmem:[%s3008 + $0x58] sm:$0xff]
        %v3021 = vld [vmem:[%s3008 + $0x60] sm:$0xff]
        %v3022 = vld [vmem:[%s3008 + $0x68] sm:$0xff]
        %v3023 = vld [vmem:[%s3008 + $0x70] sm:$0xff]
        %v3024 = vld [vmem:[%s3008 + $0x78] sm:$0xff]
        %v3025 = vld [vmem:[%s3008 + $0x80] sm:$0xff]
        %v3026 = vld [vmem:[%s3008 + $0x88] sm:$0xff]
        %v3027 = vld [vmem:[%s3008 + $0x90] sm:$0xff]
        %v3028 = vld [vmem:[%s3008 + $0x98] sm:$0xff]
        %v3029 = vld [vmem:[%s3008 + $0xa0] sm:$0xff]
        %v3030 = vld [vmem:[%s3008 + $0xa8] sm:$0xff]
        %v3031 = vld [vmem:[%s3008 + $0xb0] sm:$0xff]
        %v3032 = vld [vmem:[%s3008 + $0xb8] sm:$0xff]
        %v3033 = vld [vmem:[%s3008 + $0xc0] sm:$0xff]
        %v3034 = vld [vmem:[%s3008 + $0xc8] sm:$0xff]
        %v3035 = vld [vmem:[%s3008 + $0xd0] sm:$0xff]
        %v3036 = vld [vmem:[%s3008 + $0xd8] sm:$0xff]
        %v3037 = vld [vmem:[%s3008 + $0xe0] sm:$0xff]
        %v3038 = vld [vmem:[%s3008 + $0xe8] sm:$0xff]
        %v3039 = vld [vmem:[%s3008 + $0xf0] sm:$0xff]
        %v3040 = vld [vmem:[%s3008 + $0xf8] sm:$0xff]
        %v3041 = vadd.f32 %v2975, %v3009
        %v3042 = vadd.f32 %v2976, %v3010
        %v3043 = vadd.f32 %v2977, %v3011
        %v3044 = vadd.f32 %v2978, %v3012
        %v3045 = vadd.f32 %v2979, %v3013
        %v3046 = vadd.f32 %v2980, %v3014
        %v3047 = vadd.f32 %v2981, %v3015
        %v3048 = vadd.f32 %v2982, %v3016
        %v3049 = vadd.f32 %v2983, %v3017
        %v3050 = vadd.f32 %v2984, %v3018
        %v3051 = vadd.f32 %v2985, %v3019
        %v3052 = vadd.f32 %v2986, %v3020
        %v3053 = vadd.f32 %v2987, %v3021
        %v3054 = vadd.f32 %v2988, %v3022
        %v3055 = vadd.f32 %v2989, %v3023
        %v3056 = vadd.f32 %v2990, %v3024
        %v3057 = vadd.f32 %v2991, %v3025
        %v3058 = vadd.f32 %v2992, %v3026
        %v3059 = vadd.f32 %v2993, %v3027
        %v3060 = vadd.f32 %v2994, %v3028
        %v3061 = vadd.f32 %v2995, %v3029
        %v3062 = vadd.f32 %v2996, %v3030
        %v3063 = vadd.f32 %v2997, %v3031
        %v3064 = vadd.f32 %v2998, %v3032
        %v3065 = vadd.f32 %v2999, %v3033
        %v3066 = vadd.f32 %v3000, %v3034
        %v3067 = vadd.f32 %v3001, %v3035
        %v3068 = vadd.f32 %v3002, %v3036
        %v3069 = vadd.f32 %v3003, %v3037
        %v3070 = vadd.f32 %v3004, %v3038
        %v3071 = vadd.f32 %v3005, %v3039
        %v3072 = vadd.f32 %v3006, %v3040
        %v3073 = vmax.f32 %v3041, 0.0
        %v3074 = vmax.f32 %v3042, 0.0
        %v3075 = vmax.f32 %v3043, 0.0
        %v3076 = vmax.f32 %v3044, 0.0
        %v3077 = vmax.f32 %v3045, 0.0
        %v3078 = vmax.f32 %v3046, 0.0
        %v3079 = vmax.f32 %v3047, 0.0
        %v3080 = vmax.f32 %v3048, 0.0
        %v3081 = vmax.f32 %v3049, 0.0
        %v3082 = vmax.f32 %v3050, 0.0
        %v3083 = vmax.f32 %v3051, 0.0
        %v3084 = vmax.f32 %v3052, 0.0
        %v3085 = vmax.f32 %v3053, 0.0
        %v3086 = vmax.f32 %v3054, 0.0
        %v3087 = vmax.f32 %v3055, 0.0
        %v3088 = vmax.f32 %v3056, 0.0
        %v3089 = vmax.f32 %v3057, 0.0
        %v3090 = vmax.f32 %v3058, 0.0
        %v3091 = vmax.f32 %v3059, 0.0
        %v3092 = vmax.f32 %v3060, 0.0
        %v3093 = vmax.f32 %v3061, 0.0
        %v3094 = vmax.f32 %v3062, 0.0
        %v3095 = vmax.f32 %v3063, 0.0
        %v3096 = vmax.f32 %v3064, 0.0
        %v3097 = vmax.f32 %v3065, 0.0
        %v3098 = vmax.f32 %v3066, 0.0
        %v3099 = vmax.f32 %v3067, 0.0
        %v3100 = vmax.f32 %v3068, 0.0
        %v3101 = vmax.f32 %v3069, 0.0
        %v3102 = vmax.f32 %v3070, 0.0
        %v3103 = vmax.f32 %v3071, 0.0
        %v3104 = vmax.f32 %v3072, 0.0
        %3105 = vst.msk [vmem:[%s391] sm:$0xff] %vm436, %v3073
        %3106 = vst.msk [vmem:[%s391 + $0x8] sm:$0xff] %vm436, %v3074
        %3107 = vst.msk [vmem:[%s391 + $0x10] sm:$0xff] %vm436, %v3075
        %3108 = vst.msk [vmem:[%s391 + $0x18] sm:$0xff] %vm436, %v3076
        %3109 = vst.msk [vmem:[%s391 + $0x20] sm:$0xff] %vm436, %v3077
        %3110 = vst.msk [vmem:[%s391 + $0x28] sm:$0xff] %vm436, %v3078
        %3111 = vst.msk [vmem:[%s391 + $0x30] sm:$0xff] %vm436, %v3079
        %3112 = vst.msk [vmem:[%s391 + $0x38] sm:$0xff] %vm436, %v3080
        %3113 = vst.msk [vmem:[%s391 + $0x40] sm:$0xff] %vm436, %v3081
        %3114 = vst.msk [vmem:[%s391 + $0x48] sm:$0xff] %vm436, %v3082
        %3115 = vst.msk [vmem:[%s391 + $0x50] sm:$0xff] %vm436, %v3083
        %3116 = vst.msk [vmem:[%s391 + $0x58] sm:$0xff] %vm436, %v3084
        %3117 = vst.msk [vmem:[%s391 + $0x60] sm:$0xff] %vm436, %v3085
        %3118 = vst.msk [vmem:[%s391 + $0x68] sm:$0xff] %vm436, %v3086
        %3119 = vst.msk [vmem:[%s391 + $0x70] sm:$0xff] %vm436, %v3087
        %3120 = vst.msk [vmem:[%s391 + $0x78] sm:$0xff] %vm436, %v3088
        %3121 = vst.msk [vmem:[%s391 + $0x80] sm:$0xff] %vm436, %v3089
        %3122 = vst.msk [vmem:[%s391 + $0x88] sm:$0xff] %vm436, %v3090
        %3123 = vst.msk [vmem:[%s391 + $0x90] sm:$0xff] %vm436, %v3091
        %3124 = vst.msk [vmem:[%s391 + $0x98] sm:$0xff] %vm436, %v3092
        %3125 = vst.msk [vmem:[%s391 + $0xa0] sm:$0xff] %vm436, %v3093
        %3126 = vst.msk [vmem:[%s391 + $0xa8] sm:$0xff] %vm436, %v3094
        %3127 = vst.msk [vmem:[%s391 + $0xb0] sm:$0xff] %vm436, %v3095
        %3128 = vst.msk [vmem:[%s391 + $0xb8] sm:$0xff] %vm436, %v3096
        %3129 = vst.msk [vmem:[%s391 + $0xc0] sm:$0xff] %vm436, %v3097
        %3130 = vst.msk [vmem:[%s391 + $0xc8] sm:$0xff] %vm436, %v3098
        %3131 = vst.msk [vmem:[%s391 + $0xd0] sm:$0xff] %vm436, %v3099
        %3132 = vst.msk [vmem:[%s391 + $0xd8] sm:$0xff] %vm436, %v3100
        %3133 = vst.msk [vmem:[%s391 + $0xe0] sm:$0xff] %vm436, %v3101
        %3134 = vst.msk [vmem:[%s391 + $0xe8] sm:$0xff] %vm436, %v3102
        %3135 = vst.msk [vmem:[%s391 + $0xf0] sm:$0xff] %vm436, %v3103
        %3136 = vst.msk [vmem:[%s391 + $0xf8] sm:$0xff] %vm436, %v3104
        %s3137 = sand.u32 %s264, 1
        %s3138 = scalar_lea.sflag [#allocation5], %s3137
        %s3139 = sand.u32 %s264, 1
        %s3140 = smul.addr %s3139, 256
        %s3141 = scalar_lea.vmem [#allocation6], %s3140
        // Predicated region
        $region65: #{bottleneck_forward.1} parent=59 // pred_check
          %p3142 = pneg %p274
        $region66: #{bottleneck_forward.1} parent=59 // pred_check_branch
          %3144 = sbr.rel (%p3142) target = $region68
        $region67: #{bottleneck_forward.1} parent=59 // pred_region
          %s3145 = smul.u32 16, %s32
          %s3147 = ssub.s32 4096, 4096
          %3148 = vsyncadd %s3138, %s3147
          %s3149 = smul.addr %s3145, 2
          %s3150 = smul.addr %s31, 32
          %s3151 = sadd.s32 %s3149, %s3150
          %s3152 = smul.addr %s3151, 128
          %s3153 = scalar_lea.hbm %s10, %s3152
          %s3154 = sshll.u32 %s3141, 4
          %s3155 = int_to_ptr.vmem [resolvable:$true] %s3154
          %3160 = dma.vmem_to_hbm [thread:$0]  %s3155, 4096, %s3153, %s3138, 128, 128, 8
        $region68: #{bottleneck_forward.1} parent=59 // pred_fallthru
          _
      $region60: #{bottleneck_forward.1} parent=5 // pred_fallthru
        _
      %p3161 = scmp.le.s32.totalorder 2, %s22
      // Predicated region
      $region69: #{bottleneck_forward.1} parent=5 // pred_check
        %p3162 = pneg %p3161
      $region70: #{bottleneck_forward.1} parent=5 // pred_check_branch
        %3164 = sbr.rel (%p3162) target = $region72
      $region71: #{bottleneck_forward.1} parent=5 // pred_region
        %s3165 = ssub.s32 %s22, 2
        // Predicated region
        $region73: #{bottleneck_forward.1} parent=71 // pred_check
          %p3166 = pneg %p280
        $region74: #{bottleneck_forward.1} parent=71 // pred_check_branch
          %3168 = sbr.rel (%p3166) target = $region76
        $region75: #{bottleneck_forward.1} parent=71 // pred_region
          %s3169 = sand.u32 %s265, 1
          %s3170 = scalar_lea.sflag [#allocation5], %s3169
          %s3171 = sand.u32 %s265, 1
          %s3172 = smul.addr %s3171, 256
          %s3173 = scalar_lea.vmem [#allocation6], %s3172
          %3174 = dma.done %s3170, 4096
        $region76: #{bottleneck_forward.1} parent=71 // pred_fallthru
          _
      $region72: #{bottleneck_forward.1} parent=5 // pred_fallthru
        _
    $region6: #{bottleneck_forward.1} parent=1 // loop_footer
      %s26 = sadd.s32 1, %s22
    $region7: #{bottleneck_forward.1} parent=1 // loop_footer_branch
      %21 = sbr.rel target = $region3
    $region8: #{bottleneck_forward.1} parent=1 // loop_exit
      _
    %3175 = vsyncpa [#allocation4], 1
    %s3176 = scalar_lea.sflag [#allocation4], 1
    %3177 = vsyncpa %s3176, 1
    %3178 = vsyncpa [#allocation5], 1
    %s3179 = scalar_lea.sflag [#allocation5], 1
    %3180 = vsyncpa %s3179, 1

</llo_original>
